<compile_context>
chip_gen: v7x
topology: tpu7x:2x2x1
jax: 0.10.0
libtpu: 0.0.40
codegen_flags: <defaults>
</compile_context>

<pallas_src>
import functools
import math

import jax
import jax.numpy as jnp
from jax import lax
from jax.experimental import pallas as pl
from jax.experimental.pallas import tpu as pltpu

EPS = 1e-5                       # PyTorch BatchNorm2d default eps
VMEM_LIMIT = 64 * 1024 * 1024    # fits physical VMEM on v5e/v6e/v7x


def _relu6(x):
    return jnp.clip(x, 0.0, 6.0)


def _row_tile(m):
    """Row-tile (pixel axis) size: big tiles amortise per-step overhead."""
    for t in (1024, 512, 256, 128):
        if m >= t:
            return t
    return max(8, 8 * pl.cdiv(m, 8))


# ----------------------------------------------------------------------------
# Kernel A: fused [expansion 1x1 (BN1 pre-folded) + ReLU6] -> depthwise conv
#           (+ accumulation of BN2 sum / sum-of-squares across the grid).
# Grid: one step per image; the expanded image stays in VMEM only.
# ----------------------------------------------------------------------------
def _expand_dw_kernel(xp_ref, w1_ref, b1_ref, wdw_ref,
                      d_ref, dsum_ref, dsq_ref, *, kh, kw, sh, sw):
    n = pl.program_id(0)
    Hp, Wp, cin = xp_ref.shape
    Ho, Wo, cexp = d_ref.shape

    xp = xp_ref[...]                                   # (Hp, Wp, Cin) f32
    w1 = w1_ref[...]                                   # (Cin, Cexp) f32, BN1 scale folded in

    # Expansion 1x1 conv as Cin broadcast-FMA taps on the VPU: with Cin ~ 4 an
    # MXU matmul would waste nearly all of the 128-lane / MXU width.
    e = jnp.zeros((Hp, Wp, cexp), jnp.float32) + b1_ref[...].reshape(1, 1, cexp)
    for ci in range(cin):
        e = e + xp[:, :, ci:ci + 1] * w1[ci:ci + 1, :].reshape(1, 1, cexp)
    e = _relu6(e)                                      # ReLU6(BN1(expansion))

    # Depthwise conv, valid padding, kh*kw shifted taps accumulated in f32.
    wdw = wdw_ref[...]                                 # (kh*kw, Cexp)
    acc = jnp.zeros((Ho, Wo, cexp), jnp.float32)
    for dh in range(kh):
        for dw in range(kw):
            tap = e[dh:dh + (Ho - 1) * sh + 1:sh,
                    dw:dw + (Wo - 1) * sw + 1:sw, :]
            widx = dh * kw + dw
            acc = acc + tap * wdw[widx:widx + 1, :].reshape(1, 1, cexp)

    d_ref[...] = acc.astype(d_ref.dtype)               # bf16 inter-stage tensor

    # One-pass BN2 statistics (sum & sumsq), accumulated across the grid.
    @pl.when(n == 0)
    def _init():
        dsum_ref[...] = jnp.zeros_like(dsum_ref)
        dsq_ref[...] = jnp.zeros_like(dsq_ref)

    dsum_ref[...] += jnp.sum(jnp.sum(acc, axis=0), axis=0, keepdims=True)
    dsq_ref[...] += jnp.sum(jnp.sum(acc * acc, axis=0), axis=0, keepdims=True)


def fused_expand_depthwise(xp, w1_eff, b1, w_dw, *, kernel_size, stride):
    N, Hp, Wp, cin = xp.shape
    kh, kw = kernel_size
    sh, sw = stride
    cexp = w1_eff.shape[1]
    Ho = (Hp - kh) // sh + 1
    Wo = (Wp - kw) // sw + 1
    kern = functools.partial(_expand_dw_kernel, kh=kh, kw=kw, sh=sh, sw=sw)
    return pl.pallas_call(
        kern,
        grid=(N,),
        in_specs=[
            pl.BlockSpec((None, Hp, Wp, cin), lambda n: (n, 0, 0, 0)),
            pl.BlockSpec((cin, cexp), lambda n: (0, 0)),
            pl.BlockSpec((1, cexp), lambda n: (0, 0)),
            pl.BlockSpec((kh * kw, cexp), lambda n: (0, 0)),
        ],
        out_specs=[
            pl.BlockSpec((None, Ho, Wo, cexp), lambda n: (n, 0, 0, 0)),
            pl.BlockSpec((1, cexp), lambda n: (0, 0)),
            pl.BlockSpec((1, cexp), lambda n: (0, 0)),
        ],
        out_shape=[
            jax.ShapeDtypeStruct((N, Ho, Wo, cexp), jnp.bfloat16),
            jax.ShapeDtypeStruct((1, cexp), jnp.float32),
            jax.ShapeDtypeStruct((1, cexp), jnp.float32),
        ],
        # grid axis carries accumulators -> must be sequential ("arbitrary").
        compiler_params=pltpu.CompilerParams(
            dimension_semantics=("arbitrary",),
            vmem_limit_bytes=VMEM_LIMIT),
    )(xp, w1_eff, b1, w_dw)


# ----------------------------------------------------------------------------
# Kernel B: row-tiled BN2 affine + ReLU6 + pointwise matmul (bf16 MXU inputs,
#           f32 accumulation), accumulating BN3 sum / sum-of-squares.
# ----------------------------------------------------------------------------
def _bn2_pointwise_kernel(d_ref, s2_ref, t2_ref, wpw_ref,
                          z_ref, zsum_ref, zsq_ref, *, m_valid, tm):
    i = pl.program_id(0)
    a = _relu6(d_ref[...].astype(jnp.float32) * s2_ref[...] + t2_ref[...])
    # Zero rows past the true pixel count (last, possibly partial, tile) so the
    # BN3 statistics remain exact.
    row = i * tm + lax.broadcasted_iota(jnp.int32, a.shape, 0)
    a = jnp.where(row < m_valid, a, 0.0)

    z = jnp.dot(a.astype(jnp.bfloat16), wpw_ref[...],
                preferred_element_type=jnp.float32)
    z_ref[...] = z

    @pl.when(i == 0)
    def _init():
        zsum_ref[...] = jnp.zeros_like(zsum_ref)
        zsq_ref[...] = jnp.zeros_like(zsq_ref)

    zsum_ref[...] += jnp.sum(z, axis=0, keepdims=True)
    zsq_ref[...] += jnp.sum(z * z, axis=0, keepdims=True)


def bn2_relu6_pointwise(d2, scale2, shift2, w_pw_bf16, *, tm):
    m2, cexp = d2.shape
    cout = w_pw_bf16.shape[1]
    kern = functools.partial(_bn2_pointwise_kernel, m_valid=m2, tm=tm)
    return pl.pallas_call(
        kern,
        grid=(pl.cdiv(m2, tm),),
        in_specs=[
            pl.BlockSpec((tm, cexp), lambda i: (i, 0)),
            pl.BlockSpec((1, cexp), lambda i: (0, 0)),
            pl.BlockSpec((1, cexp), lambda i: (0, 0)),
            pl.BlockSpec((cexp, cout), lambda i: (0, 0)),
        ],
        out_specs=[
            pl.BlockSpec((tm, cout), lambda i: (i, 0)),
            pl.BlockSpec((1, cout), lambda i: (0, 0)),
            pl.BlockSpec((1, cout), lambda i: (0, 0)),
        ],
        out_shape=[
            jax.ShapeDtypeStruct((m2, cout), jnp.float32),
            jax.ShapeDtypeStruct((1, cout), jnp.float32),
            jax.ShapeDtypeStruct((1, cout), jnp.float32),
        ],
        compiler_params=pltpu.CompilerParams(
            dimension_semantics=("arbitrary",),
            vmem_limit_bytes=VMEM_LIMIT),
    )(d2, scale2, shift2, w_pw_bf16)


# ----------------------------------------------------------------------------
# Kernel C: BN3 affine (linear bottleneck: no activation), row-tiled, parallel.
# ----------------------------------------------------------------------------
def _affine_kernel(z_ref, s_ref, t_ref, o_ref):
    o_ref[...] = z_ref[...] * s_ref[...] + t_ref[...]


def bn3_affine(zpre, scale3, shift3, *, tm):
    m2, cout = zpre.shape
    return pl.pallas_call(
        _affine_kernel,
        grid=(pl.cdiv(m2, tm),),
        in_specs=[
            pl.BlockSpec((tm, cout), lambda i: (i, 0)),
            pl.BlockSpec((1, cout), lambda i: (0, 0)),
            pl.BlockSpec((1, cout), lambda i: (0, 0)),
        ],
        out_specs=pl.BlockSpec((tm, cout), lambda i: (i, 0)),
        out_shape=jax.ShapeDtypeStruct((m2, cout), jnp.float32),
        compiler_params=pltpu.CompilerParams(
            dimension_semantics=("parallel",),   # independent tiles: megacore-shardable
            vmem_limit_bytes=VMEM_LIMIT),
    )(zpre, scale3, shift3)


# ----------------------------------------------------------------------------
# Parameters (deterministic, PyTorch-equivalent shapes, kernel-friendly layouts)
# ----------------------------------------------------------------------------
def init_params(key, in_channels, out_channels, kernel_size):
    ef = 6
    cexp = in_channels * ef
    kh, kw = kernel_size
    k1, k2, k3 = jax.random.split(key, 3)
    # PyTorch weight shapes: expansion (Cexp,Cin,1,1); depthwise (Cexp,1,KH,KW);
    # pointwise (Cout,Cexp,1,1).
    w_exp = jax.random.normal(k1, (cexp, in_channels, 1, 1), jnp.float32) / math.sqrt(in_channels)
    w_dw = jax.random.normal(k2, (cexp, 1, kh, kw), jnp.float32) / math.sqrt(kh * kw)
    w_pw = jax.random.normal(k3, (out_channels, cexp, 1, 1), jnp.float32) / math.sqrt(cexp)
    return dict(
        w_expand=jnp.transpose(w_exp[:, :, 0, 0], (1, 0)),                        # (Cin, Cexp)
        w_dw=jnp.transpose(w_dw[:, 0, :, :], (1, 2, 0)).reshape(kh * kw, cexp),   # (KH*KW, Cexp)
        w_pw=jnp.transpose(w_pw[:, :, 0, 0], (1, 0)),                             # (Cexp, Cout)
        gamma1=jnp.linspace(0.9, 1.1, cexp, dtype=jnp.float32),
        beta1=jnp.linspace(-0.05, 0.05, cexp, dtype=jnp.float32),
        gamma2=jnp.linspace(1.05, 0.95, cexp, dtype=jnp.float32),
        beta2=jnp.linspace(0.02, -0.02, cexp, dtype=jnp.float32),
        gamma3=jnp.linspace(0.98, 1.02, out_channels, dtype=jnp.float32),
        beta3=jnp.linspace(-0.01, 0.01, out_channels, dtype=jnp.float32),
    )


# ----------------------------------------------------------------------------
# Full forward pass (public API takes/returns PyTorch-style NCHW)
# ----------------------------------------------------------------------------
def inverted_residual_forward(x_nchw, params, *, kernel_size, stride):
    N, cin, H, W = x_nchw.shape
    kh, kw = kernel_size
    w1 = params['w_expand']                  # (Cin, Cexp)
    wdw = params['w_dw']                     # (kh*kw, Cexp)
    wpw = params['w_pw']                     # (Cexp, Cout)
    cexp = w1.shape[1]
    cout = wpw.shape[1]

    x = jnp.transpose(x_nchw, (0, 2, 3, 1)).astype(jnp.float32)     # NCHW -> NHWC

    # --- BN1 folded analytically via a tiny Gram pre-pass over the raw input.
    # y = x @ w1 is never materialised: mean(y) = mean(x) @ w1 and
    # E[y^2]_j = w_j^T (X^T X / M) w_j, so BN1 becomes a per-channel affine we
    # fold into the expansion weights (O(M*Cin^2) with Cin tiny; all per-pixel
    # tensor work stays in the Pallas kernels).
    x2d = x.reshape(-1, cin)
    m1 = x2d.shape[0]
    xmean = jnp.sum(x2d, axis=0) / m1
    xgram = x2d.T @ x2d
    mean1 = xmean @ w1
    ey2 = jnp.sum(w1 * (xgram @ w1), axis=0) / m1
    var1 = ey2 - mean1 * mean1                                       # biased batch variance
    s1 = params['gamma1'] * lax.rsqrt(var1 + EPS)
    t1 = params['beta1'] - mean1 * s1
    w1_eff = w1 * s1[None, :]
    b1 = t1.reshape(1, cexp)

    # --- ReflectionPad2d((0,0,0,1)) (stride==(1,1) only).  Padding the small
    # Cin-wide input commutes with the per-pixel expansion/BN1/ReLU6, so the
    # 6x-expanded tensor never round-trips HBM for the pad.
    if stride == (1, 1):
        xp = jnp.concatenate([x, x[:, H - 2:H - 1, :, :]], axis=1)
    else:
        xp = x

    # --- Fused expansion + ReLU6 + depthwise conv (+ BN2 stats), per-image grid.
    d, dsum, dsq = fused_expand_depthwise(xp, w1_eff, b1, wdw,
                                          kernel_size=kernel_size, stride=stride)
    _, Ho, Wo, _ = d.shape
    m2 = N * Ho * Wo

    mean2 = dsum[0] / m2
    var2 = dsq[0] / m2 - mean2 * mean2
    s2 = params['gamma2'] * lax.rsqrt(var2 + EPS)
    t2 = params['beta2'] - mean2 * s2

    # --- Row-tiled BN2 affine + ReLU6 + pointwise matmul (+ BN3 stats).
    tm = _row_tile(m2)
    d2 = d.reshape(m2, cexp)                                         # contiguous (free) reshape
    zpre, zsum, zsq = bn2_relu6_pointwise(
        d2, s2.reshape(1, cexp), t2.reshape(1, cexp),
        wpw.astype(jnp.bfloat16), tm=tm)

    mean3 = zsum[0] / m2
    var3 = zsq[0] / m2 - mean3 * mean3
    s3 = params['gamma3'] * lax.rsqrt(var3 + EPS)
    t3 = params['beta3'] - mean3 * s3

    # --- BN3 affine (no activation), row-tiled & parallel.
    out2d = bn3_affine(zpre, s3.reshape(1, cout), t3.reshape(1, cout), tm=tm)
    out = out2d.reshape(N, Ho, Wo, cout)
    return jnp.transpose(out, (0, 3, 1, 2))                          # NHWC -> NCHW


if __name__ == "__main__":
    key = jax.random.PRNGKey(0)
    k_x, k_p = jax.random.split(key)

    # Small shapes consistent with the module (NCHW input like PyTorch):
    N, Cin, H, W = 2, 4, 16, 16
    Cout = 8
    kernel_size = (3, 3)
    stride = (1, 1)

    x = jax.random.normal(k_x, (N, Cin, H, W), jnp.float32)
    params = init_params(k_p, Cin, Cout, kernel_size)

    fwd = jax.jit(functools.partial(inverted_residual_forward,
                                    kernel_size=kernel_size, stride=stride))
    out = jax.block_until_ready(fwd(x, params))

    # Expected: (2, 8, 15, 14) -> ReflectionPad adds 1 row, valid 3x3 removes 2.
    assert out.shape == (N, Cout, H + 1 - 2, W - 2), out.shape
    assert bool(jnp.all(jnp.isfinite(out)))
    print("KERNEL_OK")
</pallas_src>

<mosaic_0001>
module attributes {stable_mosaic.version = 11 : i64} {
  func.func @_expand_dw_kernel(%arg0: i32, %arg1: memref<1x17x16x4xf32, #tpu.memory_space<vmem>>, %arg2: memref<4x24xf32, #tpu.memory_space<vmem>>, %arg3: memref<1x24xf32, #tpu.memory_space<vmem>>, %arg4: memref<9x24xf32, #tpu.memory_space<vmem>>, %arg5: memref<1x15x14x24xbf16, #tpu.memory_space<vmem>>, %arg6: memref<1x24xf32, #tpu.memory_space<vmem>>, %arg7: memref<1x24xf32, #tpu.memory_space<vmem>>) attributes {dimension_semantics = [#tpu.dimension_semantics<arbitrary>], iteration_bounds = array<i64: 2>, scalar_prefetch = 0 : i64, scratch_operands = 0 : i64, tpu.core_type = #tpu.core_type<tc>, window_params = [{transform_indices = @transform_0, window_bounds = array<i64: 1, 17, 16, 4>}, {pipeline_mode = #tpu.pipeline_mode<synchronous>, transform_indices = @transform_1, window_bounds = array<i64: 4, 24>}, {pipeline_mode = #tpu.pipeline_mode<synchronous>, transform_indices = @transform_2, window_bounds = array<i64: 1, 24>}, {pipeline_mode = #tpu.pipeline_mode<synchronous>, transform_indices = @transform_3, window_bounds = array<i64: 9, 24>}, {transform_indices = @transform_4, window_bounds = array<i64: 1, 15, 14, 24>}, {pipeline_mode = #tpu.pipeline_mode<synchronous>, transform_indices = @transform_5, window_bounds = array<i64: 1, 24>}, {pipeline_mode = #tpu.pipeline_mode<synchronous>, transform_indices = @transform_6, window_bounds = array<i64: 1, 24>}]} {
    %c0 = arith.constant 0 : index
    %c0_0 = arith.constant 0 : index
    %c0_1 = arith.constant 0 : index
    %c0_2 = arith.constant 0 : index
    %0 = vector.load %arg1[%c0, %c0_0, %c0_1, %c0_2] : memref<1x17x16x4xf32, #tpu.memory_space<vmem>>, vector<1x17x16x4xf32>
    %1 = vector.shape_cast %0 : vector<1x17x16x4xf32> to vector<17x16x4xf32>
    %c0_3 = arith.constant 0 : index
    %c0_4 = arith.constant 0 : index
    %2 = vector.load %arg2[%c0_3, %c0_4] : memref<4x24xf32, #tpu.memory_space<vmem>>, vector<4x24xf32>
    %cst = arith.constant 0.000000e+00 : f32
    %3 = vector.broadcast %cst : f32 to vector<17x16x24xf32>
    %c0_5 = arith.constant 0 : index
    %c0_6 = arith.constant 0 : index
    %4 = vector.load %arg3[%c0_5, %c0_6] : memref<1x24xf32, #tpu.memory_space<vmem>>, vector<1x24xf32>
    %5 = vector.shape_cast %4 : vector<1x24xf32> to vector<1x1x24xf32>
    %6 = vector.broadcast %5 : vector<1x1x24xf32> to vector<17x16x24xf32>
    %7 = arith.addf %3, %6 : vector<17x16x24xf32>
    %8 = vector.extract_strided_slice %1 {offsets = [0, 0, 0], sizes = [17, 16, 1], strides = [1, 1, 1]} : vector<17x16x4xf32> to vector<17x16x1xf32>
    %9 = vector.extract_strided_slice %2 {offsets = [0, 0], sizes = [1, 24], strides = [1, 1]} : vector<4x24xf32> to vector<1x24xf32>
    %10 = vector.shape_cast %9 : vector<1x24xf32> to vector<1x1x24xf32>
    %11 = vector.broadcast %8 : vector<17x16x1xf32> to vector<17x16x24xf32>
    %12 = vector.broadcast %10 : vector<1x1x24xf32> to vector<17x16x24xf32>
    %13 = arith.mulf %11, %12 : vector<17x16x24xf32>
    %14 = arith.addf %7, %13 : vector<17x16x24xf32>
    %15 = vector.extract_strided_slice %1 {offsets = [0, 0, 1], sizes = [17, 16, 1], strides = [1, 1, 1]} : vector<17x16x4xf32> to vector<17x16x1xf32>
    %16 = vector.extract_strided_slice %2 {offsets = [1, 0], sizes = [1, 24], strides = [1, 1]} : vector<4x24xf32> to vector<1x24xf32>
    %17 = vector.shape_cast %16 : vector<1x24xf32> to vector<1x1x24xf32>
    %18 = vector.broadcast %15 : vector<17x16x1xf32> to vector<17x16x24xf32>
    %19 = vector.broadcast %17 : vector<1x1x24xf32> to vector<17x16x24xf32>
    %20 = arith.mulf %18, %19 : vector<17x16x24xf32>
    %21 = arith.addf %14, %20 : vector<17x16x24xf32>
    %22 = vector.extract_strided_slice %1 {offsets = [0, 0, 2], sizes = [17, 16, 1], strides = [1, 1, 1]} : vector<17x16x4xf32> to vector<17x16x1xf32>
    %23 = vector.extract_strided_slice %2 {offsets = [2, 0], sizes = [1, 24], strides = [1, 1]} : vector<4x24xf32> to vector<1x24xf32>
    %24 = vector.shape_cast %23 : vector<1x24xf32> to vector<1x1x24xf32>
    %25 = vector.broadcast %22 : vector<17x16x1xf32> to vector<17x16x24xf32>
    %26 = vector.broadcast %24 : vector<1x1x24xf32> to vector<17x16x24xf32>
    %27 = arith.mulf %25, %26 : vector<17x16x24xf32>
    %28 = arith.addf %21, %27 : vector<17x16x24xf32>
    %29 = vector.extract_strided_slice %1 {offsets = [0, 0, 3], sizes = [17, 16, 1], strides = [1, 1, 1]} : vector<17x16x4xf32> to vector<17x16x1xf32>
    %30 = vector.extract_strided_slice %2 {offsets = [3, 0], sizes = [1, 24], strides = [1, 1]} : vector<4x24xf32> to vector<1x24xf32>
    %31 = vector.shape_cast %30 : vector<1x24xf32> to vector<1x1x24xf32>
    %32 = vector.broadcast %29 : vector<17x16x1xf32> to vector<17x16x24xf32>
    %33 = vector.broadcast %31 : vector<1x1x24xf32> to vector<17x16x24xf32>
    %34 = arith.mulf %32, %33 : vector<17x16x24xf32>
    %35 = arith.addf %28, %34 : vector<17x16x24xf32>
    %cst_7 = arith.constant 0.000000e+00 : f32
    %cst_8 = arith.constant 6.000000e+00 : f32
    %36 = vector.broadcast %cst_7 : f32 to vector<17x16x24xf32>
    %37 = arith.maximumf %36, %35 : vector<17x16x24xf32>
    %38 = vector.broadcast %cst_8 : f32 to vector<17x16x24xf32>
    %39 = arith.minimumf %38, %37 : vector<17x16x24xf32>
    %c0_9 = arith.constant 0 : index
    %c0_10 = arith.constant 0 : index
    %40 = vector.load %arg4[%c0_9, %c0_10] : memref<9x24xf32, #tpu.memory_space<vmem>>, vector<9x24xf32>
    %cst_11 = arith.constant 0.000000e+00 : f32
    %41 = vector.broadcast %cst_11 : f32 to vector<15x14x24xf32>
    %42 = vector.extract_strided_slice %39 {offsets = [0, 0, 0], sizes = [15, 14, 24], strides = [1, 1, 1]} : vector<17x16x24xf32> to vector<15x14x24xf32>
    %43 = vector.extract_strided_slice %40 {offsets = [0, 0], sizes = [1, 24], strides = [1, 1]} : vector<9x24xf32> to vector<1x24xf32>
    %44 = vector.shape_cast %43 : vector<1x24xf32> to vector<1x1x24xf32>
    %45 = vector.broadcast %44 : vector<1x1x24xf32> to vector<15x14x24xf32>
    %46 = arith.mulf %42, %45 : vector<15x14x24xf32>
    %47 = arith.addf %41, %46 : vector<15x14x24xf32>
    %48 = vector.extract_strided_slice %39 {offsets = [0, 1, 0], sizes = [15, 14, 24], strides = [1, 1, 1]} : vector<17x16x24xf32> to vector<15x14x24xf32>
    %49 = vector.extract_strided_slice %40 {offsets = [1, 0], sizes = [1, 24], strides = [1, 1]} : vector<9x24xf32> to vector<1x24xf32>
    %50 = vector.shape_cast %49 : vector<1x24xf32> to vector<1x1x24xf32>
    %51 = vector.broadcast %50 : vector<1x1x24xf32> to vector<15x14x24xf32>
    %52 = arith.mulf %48, %51 : vector<15x14x24xf32>
    %53 = arith.addf %47, %52 : vector<15x14x24xf32>
    %54 = vector.extract_strided_slice %39 {offsets = [0, 2, 0], sizes = [15, 14, 24], strides = [1, 1, 1]} : vector<17x16x24xf32> to vector<15x14x24xf32>
    %55 = vector.extract_strided_slice %40 {offsets = [2, 0], sizes = [1, 24], strides = [1, 1]} : vector<9x24xf32> to vector<1x24xf32>
    %56 = vector.shape_cast %55 : vector<1x24xf32> to vector<1x1x24xf32>
    %57 = vector.broadcast %56 : vector<1x1x24xf32> to vector<15x14x24xf32>
    %58 = arith.mulf %54, %57 : vector<15x14x24xf32>
    %59 = arith.addf %53, %58 : vector<15x14x24xf32>
    %60 = vector.extract_strided_slice %39 {offsets = [1, 0, 0], sizes = [15, 14, 24], strides = [1, 1, 1]} : vector<17x16x24xf32> to vector<15x14x24xf32>
    %61 = vector.extract_strided_slice %40 {offsets = [3, 0], sizes = [1, 24], strides = [1, 1]} : vector<9x24xf32> to vector<1x24xf32>
    %62 = vector.shape_cast %61 : vector<1x24xf32> to vector<1x1x24xf32>
    %63 = vector.broadcast %62 : vector<1x1x24xf32> to vector<15x14x24xf32>
    %64 = arith.mulf %60, %63 : vector<15x14x24xf32>
    %65 = arith.addf %59, %64 : vector<15x14x24xf32>
    %66 = vector.extract_strided_slice %39 {offsets = [1, 1, 0], sizes = [15, 14, 24], strides = [1, 1, 1]} : vector<17x16x24xf32> to vector<15x14x24xf32>
    %67 = vector.extract_strided_slice %40 {offsets = [4, 0], sizes = [1, 24], strides = [1, 1]} : vector<9x24xf32> to vector<1x24xf32>
    %68 = vector.shape_cast %67 : vector<1x24xf32> to vector<1x1x24xf32>
    %69 = vector.broadcast %68 : vector<1x1x24xf32> to vector<15x14x24xf32>
    %70 = arith.mulf %66, %69 : vector<15x14x24xf32>
    %71 = arith.addf %65, %70 : vector<15x14x24xf32>
    %72 = vector.extract_strided_slice %39 {offsets = [1, 2, 0], sizes = [15, 14, 24], strides = [1, 1, 1]} : vector<17x16x24xf32> to vector<15x14x24xf32>
    %73 = vector.extract_strided_slice %40 {offsets = [5, 0], sizes = [1, 24], strides = [1, 1]} : vector<9x24xf32> to vector<1x24xf32>
    %74 = vector.shape_cast %73 : vector<1x24xf32> to vector<1x1x24xf32>
    %75 = vector.broadcast %74 : vector<1x1x24xf32> to vector<15x14x24xf32>
    %76 = arith.mulf %72, %75 : vector<15x14x24xf32>
    %77 = arith.addf %71, %76 : vector<15x14x24xf32>
    %78 = vector.extract_strided_slice %39 {offsets = [2, 0, 0], sizes = [15, 14, 24], strides = [1, 1, 1]} : vector<17x16x24xf32> to vector<15x14x24xf32>
    %79 = vector.extract_strided_slice %40 {offsets = [6, 0], sizes = [1, 24], strides = [1, 1]} : vector<9x24xf32> to vector<1x24xf32>
    %80 = vector.shape_cast %79 : vector<1x24xf32> to vector<1x1x24xf32>
    %81 = vector.broadcast %80 : vector<1x1x24xf32> to vector<15x14x24xf32>
    %82 = arith.mulf %78, %81 : vector<15x14x24xf32>
    %83 = arith.addf %77, %82 : vector<15x14x24xf32>
    %84 = vector.extract_strided_slice %39 {offsets = [2, 1, 0], sizes = [15, 14, 24], strides = [1, 1, 1]} : vector<17x16x24xf32> to vector<15x14x24xf32>
    %85 = vector.extract_strided_slice %40 {offsets = [7, 0], sizes = [1, 24], strides = [1, 1]} : vector<9x24xf32> to vector<1x24xf32>
    %86 = vector.shape_cast %85 : vector<1x24xf32> to vector<1x1x24xf32>
    %87 = vector.broadcast %86 : vector<1x1x24xf32> to vector<15x14x24xf32>
    %88 = arith.mulf %84, %87 : vector<15x14x24xf32>
    %89 = arith.addf %83, %88 : vector<15x14x24xf32>
    %90 = vector.extract_strided_slice %39 {offsets = [2, 2, 0], sizes = [15, 14, 24], strides = [1, 1, 1]} : vector<17x16x24xf32> to vector<15x14x24xf32>
    %91 = vector.extract_strided_slice %40 {offsets = [8, 0], sizes = [1, 24], strides = [1, 1]} : vector<9x24xf32> to vector<1x24xf32>
    %92 = vector.shape_cast %91 : vector<1x24xf32> to vector<1x1x24xf32>
    %93 = vector.broadcast %92 : vector<1x1x24xf32> to vector<15x14x24xf32>
    %94 = arith.mulf %90, %93 : vector<15x14x24xf32>
    %95 = arith.addf %89, %94 : vector<15x14x24xf32>
    %96 = arith.truncf %95 : vector<15x14x24xf32> to vector<15x14x24xbf16>
    %c0_12 = arith.constant 0 : index
    %c0_13 = arith.constant 0 : index
    %c0_14 = arith.constant 0 : index
    %c0_15 = arith.constant 0 : index
    %97 = vector.load %arg5[%c0_12, %c0_13, %c0_14, %c0_15] : memref<1x15x14x24xbf16, #tpu.memory_space<vmem>>, vector<1x15x14x24xbf16>
    %98 = vector.shape_cast %97 : vector<1x15x14x24xbf16> to vector<15x14x24xbf16>
    %99 = vector.shape_cast %96 : vector<15x14x24xbf16> to vector<1x15x14x24xbf16>
    tpu.vector_store %arg5[%c0_12, %c0_13, %c0_14, %c0_15], %99 {strides = array<i32>} : memref<1x15x14x24xbf16, #tpu.memory_space<vmem>>, vector<1x15x14x24xbf16>,
    %c0_i32 = arith.constant 0 : i32
    %100 = arith.cmpi eq, %arg0, %c0_i32 : i32
    %101 = arith.extui %100 : i1 to i32
    %c0_i32_16 = arith.constant 0 : i32
    %102 = arith.cmpi ne, %101, %c0_i32_16 : i32
    scf.if %102 {
      %cst_29 = arith.constant 0.000000e+00 : f32
      %116 = vector.broadcast %cst_29 : f32 to vector<1x24xf32>
      %c0_30 = arith.constant 0 : index
      %c0_31 = arith.constant 0 : index
      %117 = vector.load %arg6[%c0_30, %c0_31] : memref<1x24xf32, #tpu.memory_space<vmem>>, vector<1x24xf32>
      tpu.vector_store %arg6[%c0_30, %c0_31], %116 {strides = array<i32>} : memref<1x24xf32, #tpu.memory_space<vmem>>, vector<1x24xf32>,
      %cst_32 = arith.constant 0.000000e+00 : f32
      %118 = vector.broadcast %cst_32 : f32 to vector<1x24xf32>
      %c0_33 = arith.constant 0 : index
      %c0_34 = arith.constant 0 : index
      %119 = vector.load %arg7[%c0_33, %c0_34] : memref<1x24xf32, #tpu.memory_space<vmem>>, vector<1x24xf32>
      tpu.vector_store %arg7[%c0_33, %c0_34], %118 {strides = array<i32>} : memref<1x24xf32, #tpu.memory_space<vmem>>, vector<1x24xf32>,
    } else {
    }
    %c0_17 = arith.constant 0 : index
    %c0_18 = arith.constant 0 : index
    %103 = vector.load %arg6[%c0_17, %c0_18] : memref<1x24xf32, #tpu.memory_space<vmem>>, vector<1x24xf32>
    %cst_19 = arith.constant dense<0.000000e+00> : vector<14x24xf32>
    %104 = vector.multi_reduction <add>, %95, %cst_19 [0] : vector<15x14x24xf32> to vector<14x24xf32>
    %cst_20 = arith.constant dense<0.000000e+00> : vector<24xf32>
    %105 = vector.multi_reduction <add>, %104, %cst_20 [0] : vector<14x24xf32> to vector<24xf32>
    %106 = vector.shape_cast %105 : vector<24xf32> to vector<1x24xf32>
    %107 = arith.addf %103, %106 : vector<1x24xf32>
    %c0_21 = arith.constant 0 : index
    %c0_22 = arith.constant 0 : index
    %108 = vector.load %arg6[%c0_21, %c0_22] : memref<1x24xf32, #tpu.memory_space<vmem>>, vector<1x24xf32>
    tpu.vector_store %arg6[%c0_21, %c0_22], %107 {strides = array<i32>} : memref<1x24xf32, #tpu.memory_space<vmem>>, vector<1x24xf32>,
    %c0_23 = arith.constant 0 : index
    %c0_24 = arith.constant 0 : index
    %109 = vector.load %arg7[%c0_23, %c0_24] : memref<1x24xf32, #tpu.memory_space<vmem>>, vector<1x24xf32>
    %110 = arith.mulf %95, %95 : vector<15x14x24xf32>
    %cst_25 = arith.constant dense<0.000000e+00> : vector<14x24xf32>
    %111 = vector.multi_reduction <add>, %110, %cst_25 [0] : vector<15x14x24xf32> to vector<14x24xf32>
    %cst_26 = arith.constant dense<0.000000e+00> : vector<24xf32>
    %112 = vector.multi_reduction <add>, %111, %cst_26 [0] : vector<14x24xf32> to vector<24xf32>
    %113 = vector.shape_cast %112 : vector<24xf32> to vector<1x24xf32>
    %114 = arith.addf %109, %113 : vector<1x24xf32>
    %c0_27 = arith.constant 0 : index
    %c0_28 = arith.constant 0 : index
    %115 = vector.load %arg7[%c0_27, %c0_28] : memref<1x24xf32, #tpu.memory_space<vmem>>, vector<1x24xf32>
    tpu.vector_store %arg7[%c0_27, %c0_28], %114 {strides = array<i32>} : memref<1x24xf32, #tpu.memory_space<vmem>>, vector<1x24xf32>,
    return
  }
  func.func @transform_0(%arg0: i32) -> (i32, i32, i32, i32) {
    %c0_i32 = arith.constant 0 : i32
    %c0_i32_0 = arith.constant 0 : i32
    %c0_i32_1 = arith.constant 0 : i32
    %c0_i32_2 = arith.constant 0 : i32
    return %arg0, %c0_i32, %c0_i32_0, %c0_i32_1 : i32, i32, i32, i32
  }
  func.func @transform_1(%arg0: i32) -> (i32, i32) {
    %c0_i32 = arith.constant 0 : i32
    %c0_i32_0 = arith.constant 0 : i32
    %c0_i32_1 = arith.constant 0 : i32
    return %c0_i32, %c0_i32_0 : i32, i32
  }
  func.func @transform_2(%arg0: i32) -> (i32, i32) {
    %c0_i32 = arith.constant 0 : i32
    %c0_i32_0 = arith.constant 0 : i32
    %c0_i32_1 = arith.constant 0 : i32
    return %c0_i32, %c0_i32_0 : i32, i32
  }
  func.func @transform_3(%arg0: i32) -> (i32, i32) {
    %c0_i32 = arith.constant 0 : i32
    %c0_i32_0 = arith.constant 0 : i32
    %c0_i32_1 = arith.constant 0 : i32
    return %c0_i32, %c0_i32_0 : i32, i32
  }
  func.func @transform_4(%arg0: i32) -> (i32, i32, i32, i32) {
    %c0_i32 = arith.constant 0 : i32
    %c0_i32_0 = arith.constant 0 : i32
    %c0_i32_1 = arith.constant 0 : i32
    %c0_i32_2 = arith.constant 0 : i32
    return %arg0, %c0_i32, %c0_i32_0, %c0_i32_1 : i32, i32, i32, i32
  }
  func.func @transform_5(%arg0: i32) -> (i32, i32) {
    %c0_i32 = arith.constant 0 : i32
    %c0_i32_0 = arith.constant 0 : i32
    %c0_i32_1 = arith.constant 0 : i32
    return %c0_i32, %c0_i32_0 : i32, i32
  }
  func.func @transform_6(%arg0: i32) -> (i32, i32) {
    %c0_i32 = arith.constant 0 : i32
    %c0_i32_0 = arith.constant 0 : i32
    %c0_i32_1 = arith.constant 0 : i32
    return %c0_i32, %c0_i32_0 : i32, i32
  }
}

module attributes {stable_mosaic.version = 11 : i64} {
  func.func @_bn2_pointwise_kernel(%arg0: i32, %arg1: memref<256x24xbf16, #tpu.memory_space<vmem>>, %arg2: memref<1x24xf32, #tpu.memory_space<vmem>>, %arg3: memref<1x24xf32, #tpu.memory_space<vmem>>, %arg4: memref<24x8xbf16, #tpu.memory_space<vmem>>, %arg5: memref<256x8xf32, #tpu.memory_space<vmem>>, %arg6: memref<1x8xf32, #tpu.memory_space<vmem>>, %arg7: memref<1x8xf32, #tpu.memory_space<vmem>>) attributes {dimension_semantics = [#tpu.dimension_semantics<arbitrary>], iteration_bounds = array<i64: 2>, scalar_prefetch = 0 : i64, scratch_operands = 0 : i64, tpu.core_type = #tpu.core_type<tc>, window_params = [{transform_indices = @transform_0, window_bounds = array<i64: 256, 24>}, {pipeline_mode = #tpu.pipeline_mode<synchronous>, transform_indices = @transform_1, window_bounds = array<i64: 1, 24>}, {pipeline_mode = #tpu.pipeline_mode<synchronous>, transform_indices = @transform_2, window_bounds = array<i64: 1, 24>}, {pipeline_mode = #tpu.pipeline_mode<synchronous>, transform_indices = @transform_3, window_bounds = array<i64: 24, 8>}, {transform_indices = @transform_4, window_bounds = array<i64: 256, 8>}, {pipeline_mode = #tpu.pipeline_mode<synchronous>, transform_indices = @transform_5, window_bounds = array<i64: 1, 8>}, {pipeline_mode = #tpu.pipeline_mode<synchronous>, transform_indices = @transform_6, window_bounds = array<i64: 1, 8>}]} {
    %c0 = arith.constant 0 : index
    %c0_0 = arith.constant 0 : index
    %0 = vector.load %arg1[%c0, %c0_0] : memref<256x24xbf16, #tpu.memory_space<vmem>>, vector<256x24xbf16>
    %1 = arith.extf %0 : vector<256x24xbf16> to vector<256x24xf32>
    %c0_1 = arith.constant 0 : index
    %c0_2 = arith.constant 0 : index
    %2 = vector.load %arg2[%c0_1, %c0_2] : memref<1x24xf32, #tpu.memory_space<vmem>>, vector<1x24xf32>
    %3 = vector.broadcast %2 : vector<1x24xf32> to vector<256x24xf32>
    %4 = arith.mulf %1, %3 : vector<256x24xf32>
    %c0_3 = arith.constant 0 : index
    %c0_4 = arith.constant 0 : index
    %5 = vector.load %arg3[%c0_3, %c0_4] : memref<1x24xf32, #tpu.memory_space<vmem>>, vector<1x24xf32>
    %6 = vector.broadcast %5 : vector<1x24xf32> to vector<256x24xf32>
    %7 = arith.addf %4, %6 : vector<256x24xf32>
    %cst = arith.constant 0.000000e+00 : f32
    %cst_5 = arith.constant 6.000000e+00 : f32
    %8 = vector.broadcast %cst : f32 to vector<256x24xf32>
    %9 = arith.maximumf %8, %7 : vector<256x24xf32>
    %10 = vector.broadcast %cst_5 : f32 to vector<256x24xf32>
    %11 = arith.minimumf %10, %9 : vector<256x24xf32>
    %c256_i32 = arith.constant 256 : i32
    %12 = arith.muli %arg0, %c256_i32 : i32
    %13 = tpu.iota {dimensions = array<i32: 0>} : vector<256x24xi32>
    %14 = vector.broadcast %12 : i32 to vector<256x24xi32>
    %15 = arith.addi %14, %13 : vector<256x24xi32>
    %c420_i32 = arith.constant 420 : i32
    %16 = vector.broadcast %c420_i32 : i32 to vector<256x24xi32>
    %17 = arith.cmpi slt, %15, %16 : vector<256x24xi32>
    %cst_6 = arith.constant 0.000000e+00 : f32
    %18 = vector.broadcast %cst_6 : f32 to vector<256x24xf32>
    %19 = arith.select %17, %11, %18 : vector<256x24xi1>, vector<256x24xf32>
    %20 = arith.truncf %19 : vector<256x24xf32> to vector<256x24xbf16>
    %c0_7 = arith.constant 0 : index
    %c0_8 = arith.constant 0 : index
    %21 = vector.load %arg4[%c0_7, %c0_8] : memref<24x8xbf16, #tpu.memory_space<vmem>>, vector<24x8xbf16>
    %cst_9 = arith.constant dense<0.000000e+00> : vector<256x8xf32>
    %22 = tpu.matmul %20, %21, %cst_9 {dimension_numbers = #tpu.dot_dimension_numbers<[1], [0], [0], [1], [0, 0, 1, 1], [], []>} : vector<256x24xbf16>, vector<24x8xbf16>, vector<256x8xf32> -> vector<256x8xf32>
    %c0_10 = arith.constant 0 : index
    %c0_11 = arith.constant 0 : index
    %23 = vector.load %arg5[%c0_10, %c0_11] : memref<256x8xf32, #tpu.memory_space<vmem>>, vector<256x8xf32>
    tpu.vector_store %arg5[%c0_10, %c0_11], %22 {strides = array<i32>} : memref<256x8xf32, #tpu.memory_space<vmem>>, vector<256x8xf32>,
    %c0_i32 = arith.constant 0 : i32
    %24 = arith.cmpi eq, %arg0, %c0_i32 : i32
    %25 = arith.extui %24 : i1 to i32
    %c0_i32_12 = arith.constant 0 : i32
    %26 = arith.cmpi ne, %25, %c0_i32_12 : i32
    scf.if %26 {
      %cst_23 = arith.constant 0.000000e+00 : f32
      %38 = vector.broadcast %cst_23 : f32 to vector<1x8xf32>
      %c0_24 = arith.constant 0 : index
      %c0_25 = arith.constant 0 : index
      %39 = vector.load %arg6[%c0_24, %c0_25] : memref<1x8xf32, #tpu.memory_space<vmem>>, vector<1x8xf32>
      tpu.vector_store %arg6[%c0_24, %c0_25], %38 {strides = array<i32>} : memref<1x8xf32, #tpu.memory_space<vmem>>, vector<1x8xf32>,
      %cst_26 = arith.constant 0.000000e+00 : f32
      %40 = vector.broadcast %cst_26 : f32 to vector<1x8xf32>
      %c0_27 = arith.constant 0 : index
      %c0_28 = arith.constant 0 : index
      %41 = vector.load %arg7[%c0_27, %c0_28] : memref<1x8xf32, #tpu.memory_space<vmem>>, vector<1x8xf32>
      tpu.vector_store %arg7[%c0_27, %c0_28], %40 {strides = array<i32>} : memref<1x8xf32, #tpu.memory_space<vmem>>, vector<1x8xf32>,
    } else {
    }
    %c0_13 = arith.constant 0 : index
    %c0_14 = arith.constant 0 : index
    %27 = vector.load %arg6[%c0_13, %c0_14] : memref<1x8xf32, #tpu.memory_space<vmem>>, vector<1x8xf32>
    %cst_15 = arith.constant dense<0.000000e+00> : vector<8xf32>
    %28 = vector.multi_reduction <add>, %22, %cst_15 [0] : vector<256x8xf32> to vector<8xf32>
    %29 = vector.shape_cast %28 : vector<8xf32> to vector<1x8xf32>
    %30 = arith.addf %27, %29 : vector<1x8xf32>
    %c0_16 = arith.constant 0 : index
    %c0_17 = arith.constant 0 : index
    %31 = vector.load %arg6[%c0_16, %c0_17] : memref<1x8xf32, #tpu.memory_space<vmem>>, vector<1x8xf32>
    tpu.vector_store %arg6[%c0_16, %c0_17], %30 {strides = array<i32>} : memref<1x8xf32, #tpu.memory_space<vmem>>, vector<1x8xf32>,
    %c0_18 = arith.constant 0 : index
    %c0_19 = arith.constant 0 : index
    %32 = vector.load %arg7[%c0_18, %c0_19] : memref<1x8xf32, #tpu.memory_space<vmem>>, vector<1x8xf32>
    %33 = arith.mulf %22, %22 : vector<256x8xf32>
    %cst_20 = arith.constant dense<0.000000e+00> : vector<8xf32>
    %34 = vector.multi_reduction <add>, %33, %cst_20 [0] : vector<256x8xf32> to vector<8xf32>
    %35 = vector.shape_cast %34 : vector<8xf32> to vector<1x8xf32>
    %36 = arith.addf %32, %35 : vector<1x8xf32>
    %c0_21 = arith.constant 0 : index
    %c0_22 = arith.constant 0 : index
    %37 = vector.load %arg7[%c0_21, %c0_22] : memref<1x8xf32, #tpu.memory_space<vmem>>, vector<1x8xf32>
    tpu.vector_store %arg7[%c0_21, %c0_22], %36 {strides = array<i32>} : memref<1x8xf32, #tpu.memory_space<vmem>>, vector<1x8xf32>,
    return
  }
  func.func @transform_0(%arg0: i32) -> (i32, i32) {
    %c0_i32 = arith.constant 0 : i32
    %c0_i32_0 = arith.constant 0 : i32
    return %arg0, %c0_i32 : i32, i32
  }
  func.func @transform_1(%arg0: i32) -> (i32, i32) {
    %c0_i32 = arith.constant 0 : i32
    %c0_i32_0 = arith.constant 0 : i32
    %c0_i32_1 = arith.constant 0 : i32
    return %c0_i32, %c0_i32_0 : i32, i32
  }
  func.func @transform_2(%arg0: i32) -> (i32, i32) {
    %c0_i32 = arith.constant 0 : i32
    %c0_i32_0 = arith.constant 0 : i32
    %c0_i32_1 = arith.constant 0 : i32
    return %c0_i32, %c0_i32_0 : i32, i32
  }
  func.func @transform_3(%arg0: i32) -> (i32, i32) {
    %c0_i32 = arith.constant 0 : i32
    %c0_i32_0 = arith.constant 0 : i32
    %c0_i32_1 = arith.constant 0 : i32
    return %c0_i32, %c0_i32_0 : i32, i32
  }
  func.func @transform_4(%arg0: i32) -> (i32, i32) {
    %c0_i32 = arith.constant 0 : i32
    %c0_i32_0 = arith.constant 0 : i32
    return %arg0, %c0_i32 : i32, i32
  }
  func.func @transform_5(%arg0: i32) -> (i32, i32) {
    %c0_i32 = arith.constant 0 : i32
    %c0_i32_0 = arith.constant 0 : i32
    %c0_i32_1 = arith.constant 0 : i32
    return %c0_i32, %c0_i32_0 : i32, i32
  }
  func.func @transform_6(%arg0: i32) -> (i32, i32) {
    %c0_i32 = arith.constant 0 : i32
    %c0_i32_0 = arith.constant 0 : i32
    %c0_i32_1 = arith.constant 0 : i32
    return %c0_i32, %c0_i32_0 : i32, i32
  }
}

module attributes {stable_mosaic.version = 11 : i64} {
  func.func @_affine_kernel(%arg0: i32, %arg1: memref<256x8xf32, #tpu.memory_space<vmem>>, %arg2: memref<1x8xf32, #tpu.memory_space<vmem>>, %arg3: memref<1x8xf32, #tpu.memory_space<vmem>>, %arg4: memref<256x8xf32, #tpu.memory_space<vmem>>) attributes {dimension_semantics = [#tpu.dimension_semantics<parallel>], iteration_bounds = array<i64: 2>, scalar_prefetch = 0 : i64, scratch_operands = 0 : i64, tpu.core_type = #tpu.core_type<tc>, window_params = [{transform_indices = @transform_0, window_bounds = array<i64: 256, 8>}, {pipeline_mode = #tpu.pipeline_mode<synchronous>, transform_indices = @transform_1, window_bounds = array<i64: 1, 8>}, {pipeline_mode = #tpu.pipeline_mode<synchronous>, transform_indices = @transform_2, window_bounds = array<i64: 1, 8>}, {transform_indices = @transform_3, window_bounds = array<i64: 256, 8>}]} {
    %c0 = arith.constant 0 : index
    %c0_0 = arith.constant 0 : index
    %0 = vector.load %arg1[%c0, %c0_0] : memref<256x8xf32, #tpu.memory_space<vmem>>, vector<256x8xf32>
    %c0_1 = arith.constant 0 : index
    %c0_2 = arith.constant 0 : index
    %1 = vector.load %arg2[%c0_1, %c0_2] : memref<1x8xf32, #tpu.memory_space<vmem>>, vector<1x8xf32>
    %2 = vector.broadcast %1 : vector<1x8xf32> to vector<256x8xf32>
    %3 = arith.mulf %0, %2 : vector<256x8xf32>
    %c0_3 = arith.constant 0 : index
    %c0_4 = arith.constant 0 : index
    %4 = vector.load %arg3[%c0_3, %c0_4] : memref<1x8xf32, #tpu.memory_space<vmem>>, vector<1x8xf32>
    %5 = vector.broadcast %4 : vector<1x8xf32> to vector<256x8xf32>
    %6 = arith.addf %3, %5 : vector<256x8xf32>
    %c0_5 = arith.constant 0 : index
    %c0_6 = arith.constant 0 : index
    %7 = vector.load %arg4[%c0_5, %c0_6] : memref<256x8xf32, #tpu.memory_space<vmem>>, vector<256x8xf32>
    tpu.vector_store %arg4[%c0_5, %c0_6], %6 {strides = array<i32>} : memref<256x8xf32, #tpu.memory_space<vmem>>, vector<256x8xf32>,
    return
  }
  func.func @transform_0(%arg0: i32) -> (i32, i32) {
    %c0_i32 = arith.constant 0 : i32
    %c0_i32_0 = arith.constant 0 : i32
    return %arg0, %c0_i32 : i32, i32
  }
  func.func @transform_1(%arg0: i32) -> (i32, i32) {
    %c0_i32 = arith.constant 0 : i32
    %c0_i32_0 = arith.constant 0 : i32
    %c0_i32_1 = arith.constant 0 : i32
    return %c0_i32, %c0_i32_0 : i32, i32
  }
  func.func @transform_2(%arg0: i32) -> (i32, i32) {
    %c0_i32 = arith.constant 0 : i32
    %c0_i32_0 = arith.constant 0 : i32
    %c0_i32_1 = arith.constant 0 : i32
    return %c0_i32, %c0_i32_0 : i32, i32
  }
  func.func @transform_3(%arg0: i32) -> (i32, i32) {
    %c0_i32 = arith.constant 0 : i32
    %c0_i32_0 = arith.constant 0 : i32
    return %arg0, %c0_i32 : i32, i32
  }
}

</mosaic_0001>

<llo_original>
// kernel: inverted_residual_forward.5
$region0: #{inverted_residual_forward.5}
  #allocation0 [shape = 'u32[]', space=smem, size = 0x4, offset = 0x4, fixed_abs, tag = 'smem constant byte address 0x4 - core index']
  #allocation1 [shape = 'u32[144,128]{1,0:T(1,128)}', space=vmem, size = 0x12000, scoped, tag = 'internal scratch']
  %s0 = inlined_call_operand.hbm [shape: f32[420,8], index: 0, kind: input, shape index: {}]
  %s1 = inlined_call_operand.hbm [shape: f32[1,8], index: 1, kind: input, shape index: {}]
  %s2 = inlined_call_operand.hbm [shape: f32[1,8], index: 2, kind: input, shape index: {}]
  %s3 = inlined_call_operand.hbm [shape: f32[420,8], index: 3, kind: output, shape index: {}]
  %s4 = sld [smem:[#allocation0]]
  $region57: #{inverted_residual_forward.5} parent=0
    _
  %s6 = ssub.s32 1, %s4
  %s7 = scalar_select 0, %s6, %s4
  $region1: #{inverted_residual_forward.5} parent=0
    #allocation2 [shape = 'u8[262144]{0}', space=vmem, size = 0x40000, scoped, tag = 'input window, operand 0']
    #allocation3 [shape = 's32[2]{0}', space=sflag, size = 0x8, scoped, tag = 'scoped memory for inverted_residual_forward.5']
    #allocation4 [shape = 's32[2]{0}', space=sflag, size = 0x8, scoped, tag = 'scoped memory for inverted_residual_forward.5']
    #allocation5 [shape = 'u8[512]{0}', space=vmem, size = 0x400, scoped, tag = 'input window, operand 1, single buffered']
    #allocation6 [shape = 's32[1]{0}', space=sflag, size = 0x4, scoped, tag = 'scoped memory for inverted_residual_forward.5']
    #allocation7 [shape = 'u8[512]{0}', space=vmem, size = 0x400, scoped, tag = 'input window, operand 2, single buffered']
    #allocation8 [shape = 'u8[262144]{0}', space=vmem, size = 0x40000, scoped, tag = 'output window, operand 0']
    %8 = vsyncpa [#allocation3], 0
    %s9 = scalar_lea.sflag [#allocation3], 1
    %10 = vsyncpa %s9, 0
    %11 = vsyncpa [#allocation6], 0
    %12 = vsyncpa [#allocation4], 0
    %s13 = scalar_lea.sflag [#allocation4], 1
    %14 = vsyncpa %s13, 0
    loop: start=0, step=1, limit=4
    $region2: #{inverted_residual_forward.5} parent=1 // loop_pre_header
      _
    $region3: #{inverted_residual_forward.5} parent=1 // loop_header
      %s16 = sphi 0, %s20
      %p17 = scmp.ge.s32.totalorder %s16, 4
      %s26 = sphi 0, %s28
      %s29 = sphi 0, %s26
      %s30 = sphi 0, %s29
      %s46 = sphi 0, %s30
      %s50 = sphi 0, %s50
      %s52 = sphi 0, %s50
      %s53 = sphi 0, %s52
      %s67 = sphi 0, %s53
      %s71 = sphi 0, %s71
      %s73 = sphi 0, %s71
      %s74 = sphi 0, %s73
      %s88 = sphi 0, %s74
      %s94 = sphi 0, %s96
      %s97 = sphi 0, %s94
      %s98 = sphi 0, %s97
      %s114 = sphi 0, %s98
    $region4: #{inverted_residual_forward.5} parent=1 // loop_header_branch
      %19 = sbr.rel (%p17) target = $region8
    $region5: #{inverted_residual_forward.5} parent=1 // loop_body
      %s21 = ssub.s32 %s16, 1
      %s22 = ssub.s32 %s16, 2
      %s23 = sadd.s32 %s16, 1
      %s24 = ssub.s32 %s16, %s23
      %p25 = scmp.eq.s32.totalorder %s24, 0
      %s27 = sadd.s32 %s26, 1
      %s28 = scalar_select %p25, %s26, %s27
      %p31 = pneg %p25
      %p32 = scmp.eq.s32.totalorder %s16, 1
      %p33 = por %p31, %p32
      %p34 = scmp.ne.s32.totalorder %s26, %s29
      %p35 = scmp.eq.s32.totalorder %s16, 0
      %p36 = por %p34, %p35
      %p37 = scmp.ne.s32.totalorder %s26, %s29
      %p38 = scmp.eq.s32.totalorder %s21, 1
      %p39 = por %p37, %p38
      %p40 = scmp.ne.s32.totalorder %s29, %s30
      %p41 = scmp.eq.s32.totalorder %s21, 0
      %p42 = por %p40, %p41
      %p43 = scmp.ne.s32.totalorder %s29, %s30
      %p44 = scmp.eq.s32.totalorder %s22, 1
      %p45 = por %p43, %p44
      %p47 = scmp.ne.s32.totalorder %s30, %s46
      %p48 = scmp.eq.s32.totalorder %s22, 0
      %p49 = por %p47, %p48
      %s51 = sadd.s32 %s50, 1
      %p54 = scmp.eq.s32.totalorder %s16, 1
      %p55 = scmp.ne.s32.totalorder %s50, %s52
      %p56 = scmp.eq.s32.totalorder %s16, 0
      %p57 = por %p55, %p56
      %p58 = scmp.ne.s32.totalorder %s50, %s52
      %p59 = scmp.eq.s32.totalorder %s21, 1
      %p60 = por %p58, %p59
      %p61 = scmp.ne.s32.totalorder %s52, %s53
      %p62 = scmp.eq.s32.totalorder %s21, 0
      %p63 = por %p61, %p62
      %p64 = scmp.ne.s32.totalorder %s52, %s53
      %p65 = scmp.eq.s32.totalorder %s22, 1
      %p66 = por %p64, %p65
      %p68 = scmp.ne.s32.totalorder %s53, %s67
      %p69 = scmp.eq.s32.totalorder %s22, 0
      %p70 = por %p68, %p69
      %s72 = sadd.s32 %s71, 1
      %p75 = scmp.eq.s32.totalorder %s16, 1
      %p76 = scmp.ne.s32.totalorder %s71, %s73
      %p77 = scmp.eq.s32.totalorder %s16, 0
      %p78 = por %p76, %p77
      %p79 = scmp.ne.s32.totalorder %s71, %s73
      %p80 = scmp.eq.s32.totalorder %s21, 1
      %p81 = por %p79, %p80
      %p82 = scmp.ne.s32.totalorder %s73, %s74
      %p83 = scmp.eq.s32.totalorder %s21, 0
      %p84 = por %p82, %p83
      %p85 = scmp.ne.s32.totalorder %s73, %s74
      %p86 = scmp.eq.s32.totalorder %s22, 1
      %p87 = por %p85, %p86
      %p89 = scmp.ne.s32.totalorder %s74, %s88
      %p90 = scmp.eq.s32.totalorder %s22, 0
      %p91 = por %p89, %p90
      %s92 = ssub.s32 %s16, %s23
      %p93 = scmp.eq.s32.totalorder %s92, 0
      %s95 = sadd.s32 %s94, 1
      %s96 = scalar_select %p93, %s94, %s95
      %p99 = pneg %p93
      %p100 = scmp.eq.s32.totalorder %s16, 1
      %p101 = por %p99, %p100
      %p102 = scmp.ne.s32.totalorder %s94, %s97
      %p103 = scmp.eq.s32.totalorder %s16, 0
      %p104 = por %p102, %p103
      %p105 = scmp.ne.s32.totalorder %s94, %s97
      %p106 = scmp.eq.s32.totalorder %s21, 1
      %p107 = por %p105, %p106
      %p108 = scmp.ne.s32.totalorder %s97, %s98
      %p109 = scmp.eq.s32.totalorder %s21, 0
      %p110 = por %p108, %p109
      %p111 = scmp.ne.s32.totalorder %s97, %s98
      %p112 = scmp.eq.s32.totalorder %s22, 1
      %p113 = por %p111, %p112
      %p115 = scmp.ne.s32.totalorder %s98, %s114
      %p116 = scmp.eq.s32.totalorder %s22, 0
      %p117 = por %p115, %p116
      %p118 = scmp.le.s32.totalorder 1, %s16
      %p119 = scmp.lt.s32.totalorder %s16, 3
      %p120 = pnand %p118, %p119
      %p121 = pneg %p120
      // Predicated region
      $region9: #{inverted_residual_forward.5} parent=5 // pred_check
        _
      $region10: #{inverted_residual_forward.5} parent=5 // pred_check_branch
        %123 = sbr.rel (%p120) target = $region12
      $region11: #{inverted_residual_forward.5} parent=5 // pred_region
        %s124 = ssub.s32 %s16, 1
        // Predicated region
        $region13: #{inverted_residual_forward.5} parent=11 // pred_check
          %p125 = pneg %p63
        $region14: #{inverted_residual_forward.5} parent=11 // pred_check_branch
          %127 = sbr.rel (%p125) target = $region16
        $region15: #{inverted_residual_forward.5} parent=11 // pred_region
          %s129 = ssub.s32 16, 16
          %130 = vsyncadd [#allocation6], %s129
          %s132 = sshll.u32 [#allocation5], 4
          %s133 = int_to_ptr.vmem [resolvable:$true] %s132
          %135 = dma.hbm_to_vmem [thread:$0]  %s1, 16, %s133, [#allocation6]
        $region16: #{inverted_residual_forward.5} parent=11 // pred_fallthru
          _
        // Predicated region
        $region17: #{inverted_residual_forward.5} parent=11 // pred_check
          %p136 = pneg %p84
        $region18: #{inverted_residual_forward.5} parent=11 // pred_check_branch
          %138 = sbr.rel (%p136) target = $region20
        $region19: #{inverted_residual_forward.5} parent=11 // pred_region
          %s140 = ssub.s32 16, 16
          %141 = vsyncadd [#allocation6], %s140
          %s143 = sshll.u32 [#allocation7], 4
          %s144 = int_to_ptr.vmem [resolvable:$true] %s143
          %146 = dma.hbm_to_vmem [thread:$0]  %s2, 16, %s144, [#allocation6]
        $region20: #{inverted_residual_forward.5} parent=11 // pred_fallthru
          _
      $region12: #{inverted_residual_forward.5} parent=5 // pred_fallthru
        _
      %p147 = scmp.lt.s32.totalorder %s16, 2
      // Predicated region
      $region21: #{inverted_residual_forward.5} parent=5 // pred_check
        %p148 = pneg %p147
      $region22: #{inverted_residual_forward.5} parent=5 // pred_check_branch
        %150 = sbr.rel (%p148) target = $region24
      $region23: #{inverted_residual_forward.5} parent=5 // pred_region
        // Predicated region
        $region25: #{inverted_residual_forward.5} parent=23 // pred_check
          %p151 = pneg %p36
        $region26: #{inverted_residual_forward.5} parent=23 // pred_check_branch
          %153 = sbr.rel (%p151) target = $region28
        $region27: #{inverted_residual_forward.5} parent=23 // pred_region
          %s154 = sand.u32 %s26, 1
          %s155 = scalar_lea.sflag [#allocation3], %s154
          %s156 = sand.u32 %s26, 1
          %s157 = smul.addr %s156, 256
          %s158 = scalar_lea.vmem [#allocation2], %s157
          %s159 = smul.u32 32, %s16
          %s160 = ssub.s32 53, %s159
          %p161 = scmp.lt.s32.totalorder %s160, 32
          %s162 = scalar_select %p161, %s160, 32
          %s163 = smul.u32 128, %s162
          %s165 = ssub.s32 4096, %s163
          %166 = vsyncadd %s155, %s165
          %p167 = scmp.ne.s32.totalorder 0, %s163
          %s168 = smul.addr %s159, 128
          %s169 = scalar_lea.hbm %s0, %s168
          %s170 = smul.u32 8, %s162
          %s171 = sshll.u32 %s158, 4
          %s172 = int_to_ptr.vmem [resolvable:$true] %s171
          %s173 = sshll.u32 %s170, 4
          %177 = dma.hbm_to_vmem [thread:$0]  (%p167), %s169, %s173, %s172, %s155, 128, 128, 8
        $region28: #{inverted_residual_forward.5} parent=23 // pred_fallthru
          _
      $region24: #{inverted_residual_forward.5} parent=5 // pred_fallthru
        _
      %p178 = scmp.le.s32.totalorder 1, %s16
      %p179 = scmp.lt.s32.totalorder %s16, 3
      %p180 = pnand %p178, %p179
      %p181 = pneg %p180
      // Predicated region
      $region29: #{inverted_residual_forward.5} parent=5 // pred_check
        _
      $region30: #{inverted_residual_forward.5} parent=5 // pred_check_branch
        %183 = sbr.rel (%p180) target = $region32
      $region31: #{inverted_residual_forward.5} parent=5 // pred_region
        %s184 = ssub.s32 %s16, 1
        %s185 = sand.u32 %s29, 1
        %s186 = scalar_lea.sflag [#allocation3], %s185
        %s187 = sand.u32 %s29, 1
        %s188 = smul.addr %s187, 256
        %s189 = scalar_lea.vmem [#allocation2], %s188
        // Predicated region
        $region33: #{inverted_residual_forward.5} parent=31 // pred_check
          %p190 = pneg %p42
        $region34: #{inverted_residual_forward.5} parent=31 // pred_check_branch
          %192 = sbr.rel (%p190) target = $region36
        $region35: #{inverted_residual_forward.5} parent=31 // pred_region
          %193 = dma.done %s186, 4096
        $region36: #{inverted_residual_forward.5} parent=31 // pred_fallthru
          _
        // Predicated region
        $region37: #{inverted_residual_forward.5} parent=31 // pred_check
          %p194 = pneg %p63
        $region38: #{inverted_residual_forward.5} parent=31 // pred_check_branch
          %196 = sbr.rel (%p194) target = $region40
        $region39: #{inverted_residual_forward.5} parent=31 // pred_region
          %197 = dma.done [#allocation6], 16
        $region40: #{inverted_residual_forward.5} parent=31 // pred_fallthru
          _
        // Predicated region
        $region41: #{inverted_residual_forward.5} parent=31 // pred_check
          %p198 = pneg %p84
        $region42: #{inverted_residual_forward.5} parent=31 // pred_check_branch
          %200 = sbr.rel (%p198) target = $region44
        $region43: #{inverted_residual_forward.5} parent=31 // pred_region
          %201 = dma.done [#allocation6], 16
        $region44: #{inverted_residual_forward.5} parent=31 // pred_fallthru
          _
        %s202 = sand.u32 %s29, 1
        %s203 = scalar_lea.sflag [#allocation3], %s202
        %s204 = sand.u32 %s29, 1
        %s205 = smul.addr %s204, 256
        %s206 = scalar_lea.vmem [#allocation2], %s205
        %p207 = pneg %p42
        %p208 = pneg %p39
        %p209 = pneg %p63
        %p210 = pneg %p60
        %p211 = pneg %p84
        %p212 = pneg %p81
        %p213 = pneg %p110
        %p214 = pneg %p107
        %s215 = sand.u32 %s97, 1
        %s216 = scalar_lea.sflag [#allocation4], %s215
        %s217 = sand.u32 %s97, 1
        %s218 = smul.addr %s217, 256
        %s219 = scalar_lea.vmem [#allocation8], %s218
        %s220 = smul.u32 32, %s21
        %s221 = ssub.s32 53, %s220
        %p222 = scmp.lt.s32.totalorder %s221, 32
        %s223 = scalar_select %p222, %s221, 32
        %s224 = smul.u32 128, %s223
        %s225 = smul.u32 32, %s21
        %s226 = ssub.s32 53, %s225
        %p227 = scmp.lt.s32.totalorder %s226, 32
        %s228 = scalar_select %p227, %s226, 32
        %s229 = smul.u32 128, %s228
        %v230 = vld [vmem:[%s189] sm:$0xff]
        %v231 = vld [vmem:[%s189 + $0x8] sm:$0xff]
        %v232 = vld [vmem:[%s189 + $0x10] sm:$0xff]
        %v233 = vld [vmem:[%s189 + $0x18] sm:$0xff]
        %v234 = vld [vmem:[%s189 + $0x20] sm:$0xff]
        %v235 = vld [vmem:[%s189 + $0x28] sm:$0xff]
        %v236 = vld [vmem:[%s189 + $0x30] sm:$0xff]
        %v237 = vld [vmem:[%s189 + $0x38] sm:$0xff]
        %v238 = vld [vmem:[%s189 + $0x40] sm:$0xff]
        %v239 = vld [vmem:[%s189 + $0x48] sm:$0xff]
        %v240 = vld [vmem:[%s189 + $0x50] sm:$0xff]
        %v241 = vld [vmem:[%s189 + $0x58] sm:$0xff]
        %v242 = vld [vmem:[%s189 + $0x60] sm:$0xff]
        %v243 = vld [vmem:[%s189 + $0x68] sm:$0xff]
        %v244 = vld [vmem:[%s189 + $0x70] sm:$0xff]
        %v245 = vld [vmem:[%s189 + $0x78] sm:$0xff]
        %v246 = vld [vmem:[%s189 + $0x80] sm:$0xff]
        %v247 = vld [vmem:[%s189 + $0x88] sm:$0xff]
        %v248 = vld [vmem:[%s189 + $0x90] sm:$0xff]
        %v249 = vld [vmem:[%s189 + $0x98] sm:$0xff]
        %v250 = vld [vmem:[%s189 + $0xa0] sm:$0xff]
        %v251 = vld [vmem:[%s189 + $0xa8] sm:$0xff]
        %v252 = vld [vmem:[%s189 + $0xb0] sm:$0xff]
        %v253 = vld [vmem:[%s189 + $0xb8] sm:$0xff]
        %v254 = vld [vmem:[%s189 + $0xc0] sm:$0xff]
        %v255 = vld [vmem:[%s189 + $0xc8] sm:$0xff]
        %v256 = vld [vmem:[%s189 + $0xd0] sm:$0xff]
        %v257 = vld [vmem:[%s189 + $0xd8] sm:$0xff]
        %v258 = vld [vmem:[%s189 + $0xe0] sm:$0xff]
        %v259 = vld [vmem:[%s189 + $0xe8] sm:$0xff]
        %v260 = vld [vmem:[%s189 + $0xf0] sm:$0xff]
        %v261 = vld [vmem:[%s189 + $0xf8] sm:$0xff]
        %v262 = vld [vmem:[#allocation5] sm:$0x1]
        %v264 = vlaneseq
        %v265 = vshrl.u32 %v264, 7
        %v266 = vsub.s32 0, %v265
        %v267 = vrot.slane %v262, %v266
        %v269 = vmul.f32 %v230, %v267
        %v270 = vmul.f32 %v231, %v267
        %v271 = vmul.f32 %v232, %v267
        %v272 = vmul.f32 %v233, %v267
        %v273 = vmul.f32 %v234, %v267
        %v274 = vmul.f32 %v235, %v267
        %v275 = vmul.f32 %v236, %v267
        %v276 = vmul.f32 %v237, %v267
        %v277 = vmul.f32 %v238, %v267
        %v278 = vmul.f32 %v239, %v267
        %v279 = vmul.f32 %v240, %v267
        %v280 = vmul.f32 %v241, %v267
        %v281 = vmul.f32 %v242, %v267
        %v282 = vmul.f32 %v243, %v267
        %v283 = vmul.f32 %v244, %v267
        %v284 = vmul.f32 %v245, %v267
        %v285 = vmul.f32 %v246, %v267
        %v286 = vmul.f32 %v247, %v267
        %v287 = vmul.f32 %v248, %v267
        %v288 = vmul.f32 %v249, %v267
        %v289 = vmul.f32 %v250, %v267
        %v290 = vmul.f32 %v251, %v267
        %v291 = vmul.f32 %v252, %v267
        %v292 = vmul.f32 %v253, %v267
        %v293 = vmul.f32 %v254, %v267
        %v294 = vmul.f32 %v255, %v267
        %v295 = vmul.f32 %v256, %v267
        %v296 = vmul.f32 %v257, %v267
        %v297 = vmul.f32 %v258, %v267
        %v298 = vmul.f32 %v259, %v267
        %v299 = vmul.f32 %v260, %v267
        %v300 = vmul.f32 %v261, %v267
        %v301 = vld [vmem:[#allocation7] sm:$0x1]
        %v303 = vlaneseq
        %v304 = vshrl.u32 %v303, 7
        %v305 = vsub.s32 0, %v304
        %v306 = vrot.slane %v301, %v305
        %v308 = vadd.f32 %v269, %v306
        %v309 = vadd.f32 %v270, %v306
        %v310 = vadd.f32 %v271, %v306
        %v311 = vadd.f32 %v272, %v306
        %v312 = vadd.f32 %v273, %v306
        %v313 = vadd.f32 %v274, %v306
        %v314 = vadd.f32 %v275, %v306
        %v315 = vadd.f32 %v276, %v306
        %v316 = vadd.f32 %v277, %v306
        %v317 = vadd.f32 %v278, %v306
        %v318 = vadd.f32 %v279, %v306
        %v319 = vadd.f32 %v280, %v306
        %v320 = vadd.f32 %v281, %v306
        %v321 = vadd.f32 %v282, %v306
        %v322 = vadd.f32 %v283, %v306
        %v323 = vadd.f32 %v284, %v306
        %v324 = vadd.f32 %v285, %v306
        %v325 = vadd.f32 %v286, %v306
        %v326 = vadd.f32 %v287, %v306
        %v327 = vadd.f32 %v288, %v306
        %v328 = vadd.f32 %v289, %v306
        %v329 = vadd.f32 %v290, %v306
        %v330 = vadd.f32 %v291, %v306
        %v331 = vadd.f32 %v292, %v306
        %v332 = vadd.f32 %v293, %v306
        %v333 = vadd.f32 %v294, %v306
        %v334 = vadd.f32 %v295, %v306
        %v335 = vadd.f32 %v296, %v306
        %v336 = vadd.f32 %v297, %v306
        %v337 = vadd.f32 %v298, %v306
        %v338 = vadd.f32 %v299, %v306
        %v339 = vadd.f32 %v300, %v306
        %vm340 = vcmask 64512
        %341 = vst.msk [vmem:[%s219] sm:$0xff] %vm340, %v308
        %342 = vst.msk [vmem:[%s219 + $0x8] sm:$0xff] %vm340, %v309
        %343 = vst.msk [vmem:[%s219 + $0x10] sm:$0xff] %vm340, %v310
        %344 = vst.msk [vmem:[%s219 + $0x18] sm:$0xff] %vm340, %v311
        %345 = vst.msk [vmem:[%s219 + $0x20] sm:$0xff] %vm340, %v312
        %346 = vst.msk [vmem:[%s219 + $0x28] sm:$0xff] %vm340, %v313
        %347 = vst.msk [vmem:[%s219 + $0x30] sm:$0xff] %vm340, %v314
        %348 = vst.msk [vmem:[%s219 + $0x38] sm:$0xff] %vm340, %v315
        %349 = vst.msk [vmem:[%s219 + $0x40] sm:$0xff] %vm340, %v316
        %350 = vst.msk [vmem:[%s219 + $0x48] sm:$0xff] %vm340, %v317
        %351 = vst.msk [vmem:[%s219 + $0x50] sm:$0xff] %vm340, %v318
        %352 = vst.msk [vmem:[%s219 + $0x58] sm:$0xff] %vm340, %v319
        %353 = vst.msk [vmem:[%s219 + $0x60] sm:$0xff] %vm340, %v320
        %354 = vst.msk [vmem:[%s219 + $0x68] sm:$0xff] %vm340, %v321
        %355 = vst.msk [vmem:[%s219 + $0x70] sm:$0xff] %vm340, %v322
        %356 = vst.msk [vmem:[%s219 + $0x78] sm:$0xff] %vm340, %v323
        %357 = vst.msk [vmem:[%s219 + $0x80] sm:$0xff] %vm340, %v324
        %358 = vst.msk [vmem:[%s219 + $0x88] sm:$0xff] %vm340, %v325
        %359 = vst.msk [vmem:[%s219 + $0x90] sm:$0xff] %vm340, %v326
        %360 = vst.msk [vmem:[%s219 + $0x98] sm:$0xff] %vm340, %v327
        %361 = vst.msk [vmem:[%s219 + $0xa0] sm:$0xff] %vm340, %v328
        %362 = vst.msk [vmem:[%s219 + $0xa8] sm:$0xff] %vm340, %v329
        %363 = vst.msk [vmem:[%s219 + $0xb0] sm:$0xff] %vm340, %v330
        %364 = vst.msk [vmem:[%s219 + $0xb8] sm:$0xff] %vm340, %v331
        %365 = vst.msk [vmem:[%s219 + $0xc0] sm:$0xff] %vm340, %v332
        %366 = vst.msk [vmem:[%s219 + $0xc8] sm:$0xff] %vm340, %v333
        %367 = vst.msk [vmem:[%s219 + $0xd0] sm:$0xff] %vm340, %v334
        %368 = vst.msk [vmem:[%s219 + $0xd8] sm:$0xff] %vm340, %v335
        %369 = vst.msk [vmem:[%s219 + $0xe0] sm:$0xff] %vm340, %v336
        %370 = vst.msk [vmem:[%s219 + $0xe8] sm:$0xff] %vm340, %v337
        %371 = vst.msk [vmem:[%s219 + $0xf0] sm:$0xff] %vm340, %v338
        %372 = vst.msk [vmem:[%s219 + $0xf8] sm:$0xff] %vm340, %v339
        %s373 = sand.u32 %s97, 1
        %s374 = scalar_lea.sflag [#allocation4], %s373
        %s375 = sand.u32 %s97, 1
        %s376 = smul.addr %s375, 256
        %s377 = scalar_lea.vmem [#allocation8], %s376
        // Predicated region
        $region45: #{inverted_residual_forward.5} parent=31 // pred_check
          %p378 = pneg %p107
        $region46: #{inverted_residual_forward.5} parent=31 // pred_check_branch
          %380 = sbr.rel (%p378) target = $region48
        $region47: #{inverted_residual_forward.5} parent=31 // pred_region
          %s381 = smul.u32 32, %s21
          %s382 = ssub.s32 53, %s381
          %p383 = scmp.lt.s32.totalorder %s382, 32
          %s384 = scalar_select %p383, %s382, 32
          %s385 = smul.u32 128, %s384
          %s387 = ssub.s32 4096, %s385
          %388 = vsyncadd %s374, %s387
          %p389 = scmp.ne.s32.totalorder 0, %s385
          %s390 = smul.addr %s381, 128
          %s391 = scalar_lea.hbm %s3, %s390
          %s392 = smul.u32 8, %s384
          %s393 = sshll.u32 %s377, 4
          %s394 = int_to_ptr.vmem [resolvable:$true] %s393
          %s395 = sshll.u32 %s392, 4
          %399 = dma.vmem_to_hbm [thread:$0]  (%p389), %s394, %s395, %s391, %s374, 128, 128, 8
        $region48: #{inverted_residual_forward.5} parent=31 // pred_fallthru
          _
      $region32: #{inverted_residual_forward.5} parent=5 // pred_fallthru
        _
      %p400 = scmp.le.s32.totalorder 2, %s16
      // Predicated region
      $region49: #{inverted_residual_forward.5} parent=5 // pred_check
        %p401 = pneg %p400
      $region50: #{inverted_residual_forward.5} parent=5 // pred_check_branch
        %403 = sbr.rel (%p401) target = $region52
      $region51: #{inverted_residual_forward.5} parent=5 // pred_region
        %s404 = ssub.s32 %s16, 2
        // Predicated region
        $region53: #{inverted_residual_forward.5} parent=51 // pred_check
          %p405 = pneg %p113
        $region54: #{inverted_residual_forward.5} parent=51 // pred_check_branch
          %407 = sbr.rel (%p405) target = $region56
        $region55: #{inverted_residual_forward.5} parent=51 // pred_region
          %s408 = sand.u32 %s98, 1
          %s409 = scalar_lea.sflag [#allocation4], %s408
          %s410 = sand.u32 %s98, 1
          %s411 = smul.addr %s410, 256
          %s412 = scalar_lea.vmem [#allocation8], %s411
          %413 = dma.done %s409, 4096
        $region56: #{inverted_residual_forward.5} parent=51 // pred_fallthru
          _
      $region52: #{inverted_residual_forward.5} parent=5 // pred_fallthru
        _
    $region6: #{inverted_residual_forward.5} parent=1 // loop_footer
      %s20 = sadd.s32 1, %s16
    $region7: #{inverted_residual_forward.5} parent=1 // loop_footer_branch
      %15 = sbr.rel target = $region3
    $region8: #{inverted_residual_forward.5} parent=1 // loop_exit
      _
    %414 = vsyncpa [#allocation3], 1
    %s415 = scalar_lea.sflag [#allocation3], 1
    %416 = vsyncpa %s415, 1
    %417 = vsyncpa [#allocation6], 1
    %418 = vsyncpa [#allocation4], 1
    %s419 = scalar_lea.sflag [#allocation4], 1
    %420 = vsyncpa %s419, 1

// kernel: inverted_residual_forward.4
$region0: #{inverted_residual_forward.4}
  #allocation0 [shape = 'u32[]', space=smem, size = 0x4, offset = 0x4, fixed_abs, tag = 'smem constant byte address 0x4 - core index']
  #allocation1 [shape = 'u32[144,128]{1,0:T(1,128)}', space=vmem, size = 0x12000, scoped, tag = 'internal scratch']
  %s0 = inlined_call_operand.hbm [shape: bf16[420,24], index: 0, kind: input, shape index: {}]
  %s1 = inlined_call_operand.hbm [shape: f32[1,24], index: 1, kind: input, shape index: {}]
  %s2 = inlined_call_operand.hbm [shape: f32[1,24], index: 2, kind: input, shape index: {}]
  %s3 = inlined_call_operand.hbm [shape: bf16[24,8], index: 3, kind: input, shape index: {}]
  %s4 = inlined_call_operand.hbm [shape: f32[420,8], index: 4, kind: output, shape index: {0}]
  %s5 = inlined_call_operand.hbm [shape: f32[1,8], index: 5, kind: output, shape index: {1}]
  %s6 = inlined_call_operand.hbm [shape: f32[1,8], index: 6, kind: output, shape index: {2}]
  %7 = xla_tuple %s4, %s5, %s6
  %s8 = sld [smem:[#allocation0]]
  $region85: #{inverted_residual_forward.4} parent=0
    _
  %s10 = ssub.s32 1, %s8
  %s11 = scalar_select 0, %s10, %s8
  $region1: #{inverted_residual_forward.4} parent=0
    #allocation2 [shape = 'u8[131072]{0}', space=vmem, size = 0x20000, scoped, tag = 'input window, operand 0']
    #allocation3 [shape = 's32[2]{0}', space=sflag, size = 0x8, scoped, tag = 'scoped memory for inverted_residual_forward.4']
    #allocation4 [shape = 's32[2]{0}', space=sflag, size = 0x8, scoped, tag = 'scoped memory for inverted_residual_forward.4']
    #allocation5 [shape = 'u8[512]{0}', space=vmem, size = 0x400, scoped, tag = 'input window, operand 1, single buffered']
    #allocation6 [shape = 's32[1]{0}', space=sflag, size = 0x4, scoped, tag = 'scoped memory for inverted_residual_forward.4']
    #allocation7 [shape = 'u8[512]{0}', space=vmem, size = 0x400, scoped, tag = 'input window, operand 2, single buffered']
    #allocation8 [shape = 'u8[6144]{0}', space=vmem, size = 0x1800, scoped, tag = 'input window, operand 3, single buffered']
    #allocation9 [shape = 's32[1]{0}', space=sflag, size = 0x4, scoped, tag = 'scoped memory for inverted_residual_forward.4']
    #allocation10 [shape = 'u8[262144]{0}', space=vmem, size = 0x40000, scoped, tag = 'output window, operand 0']
    #allocation11 [shape = 'u8[512]{0}', space=vmem, size = 0x400, scoped, tag = 'output window, operand 1, single buffered']
    #allocation12 [shape = 's32[1]{0}', space=sflag, size = 0x4, scoped, tag = 'scoped memory for inverted_residual_forward.4']
    #allocation13 [shape = 'u8[512]{0}', space=vmem, size = 0x400, scoped, tag = 'output window, operand 2, single buffered']
    %12 = vsyncpa [#allocation3], 0
    %s13 = scalar_lea.sflag [#allocation3], 1
    %14 = vsyncpa %s13, 0
    %15 = vsyncpa [#allocation6], 0
    %16 = vsyncpa [#allocation9], 0
    %17 = vsyncpa [#allocation4], 0
    %s18 = scalar_lea.sflag [#allocation4], 1
    %19 = vsyncpa %s18, 0
    %20 = vsyncpa [#allocation12], 0
    loop: start=0, step=1, limit=4
    $region2: #{inverted_residual_forward.4} parent=1 // loop_pre_header
      _
    $region3: #{inverted_residual_forward.4} parent=1 // loop_header
      %s22 = sphi 0, %s26
      %p23 = scmp.ge.s32.totalorder %s22, 4
      %s32 = sphi 0, %s34
      %s35 = sphi 0, %s32
      %s36 = sphi 0, %s35
      %s52 = sphi 0, %s36
      %s56 = sphi 0, %s56
      %s58 = sphi 0, %s56
      %s59 = sphi 0, %s58
      %s73 = sphi 0, %s59
      %s77 = sphi 0, %s77
      %s79 = sphi 0, %s77
      %s80 = sphi 0, %s79
      %s94 = sphi 0, %s80
      %s98 = sphi 0, %s98
      %s100 = sphi 0, %s98
      %s101 = sphi 0, %s100
      %s115 = sphi 0, %s101
      %s121 = sphi 0, %s123
      %s124 = sphi 0, %s121
      %s125 = sphi 0, %s124
      %s141 = sphi 0, %s125
      %s145 = sphi 0, %s145
      %s147 = sphi 0, %s145
      %s148 = sphi 0, %s147
      %s162 = sphi 0, %s148
      %s166 = sphi 0, %s166
      %s168 = sphi 0, %s166
      %s169 = sphi 0, %s168
      %s183 = sphi 0, %s169
    $region4: #{inverted_residual_forward.4} parent=1 // loop_header_branch
      %25 = sbr.rel (%p23) target = $region8
    $region5: #{inverted_residual_forward.4} parent=1 // loop_body
      %s27 = ssub.s32 %s22, 1
      %s28 = ssub.s32 %s22, 2
      %s29 = sadd.s32 %s22, 1
      %s30 = ssub.s32 %s22, %s29
      %p31 = scmp.eq.s32.totalorder %s30, 0
      %s33 = sadd.s32 %s32, 1
      %s34 = scalar_select %p31, %s32, %s33
      %p37 = pneg %p31
      %p38 = scmp.eq.s32.totalorder %s22, 1
      %p39 = por %p37, %p38
      %p40 = scmp.ne.s32.totalorder %s32, %s35
      %p41 = scmp.eq.s32.totalorder %s22, 0
      %p42 = por %p40, %p41
      %p43 = scmp.ne.s32.totalorder %s32, %s35
      %p44 = scmp.eq.s32.totalorder %s27, 1
      %p45 = por %p43, %p44
      %p46 = scmp.ne.s32.totalorder %s35, %s36
      %p47 = scmp.eq.s32.totalorder %s27, 0
      %p48 = por %p46, %p47
      %p49 = scmp.ne.s32.totalorder %s35, %s36
      %p50 = scmp.eq.s32.totalorder %s28, 1
      %p51 = por %p49, %p50
      %p53 = scmp.ne.s32.totalorder %s36, %s52
      %p54 = scmp.eq.s32.totalorder %s28, 0
      %p55 = por %p53, %p54
      %s57 = sadd.s32 %s56, 1
      %p60 = scmp.eq.s32.totalorder %s22, 1
      %p61 = scmp.ne.s32.totalorder %s56, %s58
      %p62 = scmp.eq.s32.totalorder %s22, 0
      %p63 = por %p61, %p62
      %p64 = scmp.ne.s32.totalorder %s56, %s58
      %p65 = scmp.eq.s32.totalorder %s27, 1
      %p66 = por %p64, %p65
      %p67 = scmp.ne.s32.totalorder %s58, %s59
      %p68 = scmp.eq.s32.totalorder %s27, 0
      %p69 = por %p67, %p68
      %p70 = scmp.ne.s32.totalorder %s58, %s59
      %p71 = scmp.eq.s32.totalorder %s28, 1
      %p72 = por %p70, %p71
      %p74 = scmp.ne.s32.totalorder %s59, %s73
      %p75 = scmp.eq.s32.totalorder %s28, 0
      %p76 = por %p74, %p75
      %s78 = sadd.s32 %s77, 1
      %p81 = scmp.eq.s32.totalorder %s22, 1
      %p82 = scmp.ne.s32.totalorder %s77, %s79
      %p83 = scmp.eq.s32.totalorder %s22, 0
      %p84 = por %p82, %p83
      %p85 = scmp.ne.s32.totalorder %s77, %s79
      %p86 = scmp.eq.s32.totalorder %s27, 1
      %p87 = por %p85, %p86
      %p88 = scmp.ne.s32.totalorder %s79, %s80
      %p89 = scmp.eq.s32.totalorder %s27, 0
      %p90 = por %p88, %p89
      %p91 = scmp.ne.s32.totalorder %s79, %s80
      %p92 = scmp.eq.s32.totalorder %s28, 1
      %p93 = por %p91, %p92
      %p95 = scmp.ne.s32.totalorder %s80, %s94
      %p96 = scmp.eq.s32.totalorder %s28, 0
      %p97 = por %p95, %p96
      %s99 = sadd.s32 %s98, 1
      %p102 = scmp.eq.s32.totalorder %s22, 1
      %p103 = scmp.ne.s32.totalorder %s98, %s100
      %p104 = scmp.eq.s32.totalorder %s22, 0
      %p105 = por %p103, %p104
      %p106 = scmp.ne.s32.totalorder %s98, %s100
      %p107 = scmp.eq.s32.totalorder %s27, 1
      %p108 = por %p106, %p107
      %p109 = scmp.ne.s32.totalorder %s100, %s101
      %p110 = scmp.eq.s32.totalorder %s27, 0
      %p111 = por %p109, %p110
      %p112 = scmp.ne.s32.totalorder %s100, %s101
      %p113 = scmp.eq.s32.totalorder %s28, 1
      %p114 = por %p112, %p113
      %p116 = scmp.ne.s32.totalorder %s101, %s115
      %p117 = scmp.eq.s32.totalorder %s28, 0
      %p118 = por %p116, %p117
      %s119 = ssub.s32 %s22, %s29
      %p120 = scmp.eq.s32.totalorder %s119, 0
      %s122 = sadd.s32 %s121, 1
      %s123 = scalar_select %p120, %s121, %s122
      %p126 = pneg %p120
      %p127 = scmp.eq.s32.totalorder %s22, 1
      %p128 = por %p126, %p127
      %p129 = scmp.ne.s32.totalorder %s121, %s124
      %p130 = scmp.eq.s32.totalorder %s22, 0
      %p131 = por %p129, %p130
      %p132 = scmp.ne.s32.totalorder %s121, %s124
      %p133 = scmp.eq.s32.totalorder %s27, 1
      %p134 = por %p132, %p133
      %p135 = scmp.ne.s32.totalorder %s124, %s125
      %p136 = scmp.eq.s32.totalorder %s27, 0
      %p137 = por %p135, %p136
      %p138 = scmp.ne.s32.totalorder %s124, %s125
      %p139 = scmp.eq.s32.totalorder %s28, 1
      %p140 = por %p138, %p139
      %p142 = scmp.ne.s32.totalorder %s125, %s141
      %p143 = scmp.eq.s32.totalorder %s28, 0
      %p144 = por %p142, %p143
      %s146 = sadd.s32 %s145, 1
      %p149 = scmp.eq.s32.totalorder %s22, 1
      %p150 = scmp.ne.s32.totalorder %s145, %s147
      %p151 = scmp.eq.s32.totalorder %s22, 0
      %p152 = por %p150, %p151
      %p153 = scmp.ne.s32.totalorder %s145, %s147
      %p154 = scmp.eq.s32.totalorder %s27, 1
      %p155 = por %p153, %p154
      %p156 = scmp.ne.s32.totalorder %s147, %s148
      %p157 = scmp.eq.s32.totalorder %s27, 0
      %p158 = por %p156, %p157
      %p159 = scmp.ne.s32.totalorder %s147, %s148
      %p160 = scmp.eq.s32.totalorder %s28, 1
      %p161 = por %p159, %p160
      %p163 = scmp.ne.s32.totalorder %s148, %s162
      %p164 = scmp.eq.s32.totalorder %s28, 0
      %p165 = por %p163, %p164
      %s167 = sadd.s32 %s166, 1
      %p170 = scmp.eq.s32.totalorder %s22, 1
      %p171 = scmp.ne.s32.totalorder %s166, %s168
      %p172 = scmp.eq.s32.totalorder %s22, 0
      %p173 = por %p171, %p172
      %p174 = scmp.ne.s32.totalorder %s166, %s168
      %p175 = scmp.eq.s32.totalorder %s27, 1
      %p176 = por %p174, %p175
      %p177 = scmp.ne.s32.totalorder %s168, %s169
      %p178 = scmp.eq.s32.totalorder %s27, 0
      %p179 = por %p177, %p178
      %p180 = scmp.ne.s32.totalorder %s168, %s169
      %p181 = scmp.eq.s32.totalorder %s28, 1
      %p182 = por %p180, %p181
      %p184 = scmp.ne.s32.totalorder %s169, %s183
      %p185 = scmp.eq.s32.totalorder %s28, 0
      %p186 = por %p184, %p185
      %p187 = scmp.le.s32.totalorder 1, %s22
      %p188 = scmp.lt.s32.totalorder %s22, 3
      %p189 = pnand %p187, %p188
      %p190 = pneg %p189
      // Predicated region
      $region9: #{inverted_residual_forward.4} parent=5 // pred_check
        _
      $region10: #{inverted_residual_forward.4} parent=5 // pred_check_branch
        %192 = sbr.rel (%p189) target = $region12
      $region11: #{inverted_residual_forward.4} parent=5 // pred_region
        %s193 = ssub.s32 %s22, 1
        // Predicated region
        $region13: #{inverted_residual_forward.4} parent=11 // pred_check
          %p194 = pneg %p69
        $region14: #{inverted_residual_forward.4} parent=11 // pred_check_branch
          %196 = sbr.rel (%p194) target = $region16
        $region15: #{inverted_residual_forward.4} parent=11 // pred_region
          %s198 = ssub.s32 16, 16
          %199 = vsyncadd [#allocation6], %s198
          %s201 = sshll.u32 [#allocation5], 4
          %s202 = int_to_ptr.vmem [resolvable:$true] %s201
          %204 = dma.hbm_to_vmem [thread:$0]  %s1, 16, %s202, [#allocation6]
        $region16: #{inverted_residual_forward.4} parent=11 // pred_fallthru
          _
        // Predicated region
        $region17: #{inverted_residual_forward.4} parent=11 // pred_check
          %p205 = pneg %p90
        $region18: #{inverted_residual_forward.4} parent=11 // pred_check_branch
          %207 = sbr.rel (%p205) target = $region20
        $region19: #{inverted_residual_forward.4} parent=11 // pred_region
          %s209 = ssub.s32 16, 16
          %210 = vsyncadd [#allocation6], %s209
          %s212 = sshll.u32 [#allocation7], 4
          %s213 = int_to_ptr.vmem [resolvable:$true] %s212
          %215 = dma.hbm_to_vmem [thread:$0]  %s2, 16, %s213, [#allocation6]
        $region20: #{inverted_residual_forward.4} parent=11 // pred_fallthru
          _
        // Predicated region
        $region21: #{inverted_residual_forward.4} parent=11 // pred_check
          %p216 = pneg %p111
        $region22: #{inverted_residual_forward.4} parent=11 // pred_check_branch
          %218 = sbr.rel (%p216) target = $region24
        $region23: #{inverted_residual_forward.4} parent=11 // pred_region
          %s220 = ssub.s32 192, 192
          %221 = vsyncadd [#allocation9], %s220
          %s222 = sshll.u32 [#allocation8], 4
          %s223 = int_to_ptr.vmem [resolvable:$true] %s222
          %228 = dma.hbm_to_vmem [thread:$0]  %s3, 192, %s223, [#allocation9], 64, 64, 4
        $region24: #{inverted_residual_forward.4} parent=11 // pred_fallthru
          _
      $region12: #{inverted_residual_forward.4} parent=5 // pred_fallthru
        _
      %p229 = scmp.lt.s32.totalorder %s22, 2
      // Predicated region
      $region25: #{inverted_residual_forward.4} parent=5 // pred_check
        %p230 = pneg %p229
      $region26: #{inverted_residual_forward.4} parent=5 // pred_check_branch
        %232 = sbr.rel (%p230) target = $region28
      $region27: #{inverted_residual_forward.4} parent=5 // pred_region
        // Predicated region
        $region29: #{inverted_residual_forward.4} parent=27 // pred_check
          %p233 = pneg %p42
        $region30: #{inverted_residual_forward.4} parent=27 // pred_check_branch
          %235 = sbr.rel (%p233) target = $region32
        $region31: #{inverted_residual_forward.4} parent=27 // pred_region
          %s236 = sand.u32 %s32, 1
          %s237 = scalar_lea.sflag [#allocation3], %s236
          %s238 = sand.u32 %s32, 1
          %s239 = smul.addr %s238, 128
          %s240 = scalar_lea.vmem [#allocation2], %s239
          %s241 = smul.u32 32, %s22
          %s242 = ssub.s32 53, %s241
          %p243 = scmp.lt.s32.totalorder %s242, 32
          %s244 = scalar_select %p243, %s242, 32
          %s245 = smul.u32 64, %s244
          %s247 = ssub.s32 2048, %s245
          %248 = vsyncadd %s237, %s247
          %p249 = scmp.ne.s32.totalorder 0, %s245
          %s250 = smul.addr %s241, 64
          %s251 = scalar_lea.hbm %s0, %s250
          %s252 = smul.u32 4, %s244
          %s253 = sshll.u32 %s240, 4
          %s254 = int_to_ptr.vmem [resolvable:$true] %s253
          %s255 = sshll.u32 %s252, 4
          %259 = dma.hbm_to_vmem [thread:$0]  (%p249), %s251, %s255, %s254, %s237, 64, 64, 4
        $region32: #{inverted_residual_forward.4} parent=27 // pred_fallthru
          _
      $region28: #{inverted_residual_forward.4} parent=5 // pred_fallthru
        _
      %p260 = scmp.le.s32.totalorder 1, %s22
      %p261 = scmp.lt.s32.totalorder %s22, 3
      %p262 = pnand %p260, %p261
      %p263 = pneg %p262
      // Predicated region
      $region33: #{inverted_residual_forward.4} parent=5 // pred_check
        _
      $region34: #{inverted_residual_forward.4} parent=5 // pred_check_branch
        %265 = sbr.rel (%p262) target = $region36
      $region35: #{inverted_residual_forward.4} parent=5 // pred_region
        %s266 = ssub.s32 %s22, 1
        %s267 = sand.u32 %s35, 1
        %s268 = scalar_lea.sflag [#allocation3], %s267
        %s269 = sand.u32 %s35, 1
        %s270 = smul.addr %s269, 128
        %s271 = scalar_lea.vmem [#allocation2], %s270
        // Predicated region
        $region37: #{inverted_residual_forward.4} parent=35 // pred_check
          %p272 = pneg %p48
        $region38: #{inverted_residual_forward.4} parent=35 // pred_check_branch
          %274 = sbr.rel (%p272) target = $region40
        $region39: #{inverted_residual_forward.4} parent=35 // pred_region
          %275 = dma.done %s268, 2048
        $region40: #{inverted_residual_forward.4} parent=35 // pred_fallthru
          _
        // Predicated region
        $region41: #{inverted_residual_forward.4} parent=35 // pred_check
          %p276 = pneg %p69
        $region42: #{inverted_residual_forward.4} parent=35 // pred_check_branch
          %278 = sbr.rel (%p276) target = $region44
        $region43: #{inverted_residual_forward.4} parent=35 // pred_region
          %279 = dma.done [#allocation6], 16
        $region44: #{inverted_residual_forward.4} parent=35 // pred_fallthru
          _
        // Predicated region
        $region45: #{inverted_residual_forward.4} parent=35 // pred_check
          %p280 = pneg %p90
        $region46: #{inverted_residual_forward.4} parent=35 // pred_check_branch
          %282 = sbr.rel (%p280) target = $region48
        $region47: #{inverted_residual_forward.4} parent=35 // pred_region
          %283 = dma.done [#allocation6], 16
        $region48: #{inverted_residual_forward.4} parent=35 // pred_fallthru
          _
        // Predicated region
        $region49: #{inverted_residual_forward.4} parent=35 // pred_check
          %p284 = pneg %p111
        $region50: #{inverted_residual_forward.4} parent=35 // pred_check_branch
          %286 = sbr.rel (%p284) target = $region52
        $region51: #{inverted_residual_forward.4} parent=35 // pred_region
          %287 = dma.done [#allocation9], 192
        $region52: #{inverted_residual_forward.4} parent=35 // pred_fallthru
          _
        %s288 = sand.u32 %s35, 1
        %s289 = scalar_lea.sflag [#allocation3], %s288
        %s290 = sand.u32 %s35, 1
        %s291 = smul.addr %s290, 128
        %s292 = scalar_lea.vmem [#allocation2], %s291
        %p293 = pneg %p48
        %p294 = pneg %p45
        %p295 = pneg %p69
        %p296 = pneg %p66
        %p297 = pneg %p90
        %p298 = pneg %p87
        %p299 = pneg %p111
        %p300 = pneg %p108
        %p301 = pneg %p137
        %p302 = pneg %p134
        %s303 = sand.u32 %s124, 1
        %s304 = scalar_lea.sflag [#allocation4], %s303
        %s305 = sand.u32 %s124, 1
        %s306 = smul.addr %s305, 256
        %s307 = scalar_lea.vmem [#allocation10], %s306
        %p308 = pneg %p158
        %p309 = pneg %p155
        %p310 = pneg %p179
        %p311 = pneg %p176
        %s312 = smul.u32 32, %s27
        %s313 = ssub.s32 53, %s312
        %p314 = scmp.lt.s32.totalorder %s313, 32
        %s315 = scalar_select %p314, %s313, 32
        %s316 = smul.u32 64, %s315
        %s317 = smul.u32 32, %s27
        %s318 = ssub.s32 53, %s317
        %p319 = scmp.lt.s32.totalorder %s318, 32
        %s320 = scalar_select %p319, %s318, 32
        %s321 = smul.u32 128, %s320
        %v323 = vld [vmem:[%s271] sm:$0xf]
        %v324 = vld [vmem:[%s271 + $0x4] sm:$0xf]
        %v325 = vld [vmem:[%s271 + $0x8] sm:$0xf]
        %v326 = vld [vmem:[%s271 + $0xc] sm:$0xf]
        %v327 = vld [vmem:[%s271 + $0x10] sm:$0xf]
        %v328 = vld [vmem:[%s271 + $0x14] sm:$0xf]
        %v329 = vld [vmem:[%s271 + $0x18] sm:$0xf]
        %v330 = vld [vmem:[%s271 + $0x1c] sm:$0xf]
        %v331 = vld [vmem:[%s271 + $0x20] sm:$0xf]
        %v332 = vld [vmem:[%s271 + $0x24] sm:$0xf]
        %v333 = vld [vmem:[%s271 + $0x28] sm:$0xf]
        %v334 = vld [vmem:[%s271 + $0x2c] sm:$0xf]
        %v335 = vld [vmem:[%s271 + $0x30] sm:$0xf]
        %v336 = vld [vmem:[%s271 + $0x34] sm:$0xf]
        %v337 = vld [vmem:[%s271 + $0x38] sm:$0xf]
        %v338 = vld [vmem:[%s271 + $0x3c] sm:$0xf]
        %v339 = vld [vmem:[%s271 + $0x40] sm:$0xf]
        %v340 = vld [vmem:[%s271 + $0x44] sm:$0xf]
        %v341 = vld [vmem:[%s271 + $0x48] sm:$0xf]
        %v342 = vld [vmem:[%s271 + $0x4c] sm:$0xf]
        %v343 = vld [vmem:[%s271 + $0x50] sm:$0xf]
        %v344 = vld [vmem:[%s271 + $0x54] sm:$0xf]
        %v345 = vld [vmem:[%s271 + $0x58] sm:$0xf]
        %v346 = vld [vmem:[%s271 + $0x5c] sm:$0xf]
        %v347 = vld [vmem:[%s271 + $0x60] sm:$0xf]
        %v348 = vld [vmem:[%s271 + $0x64] sm:$0xf]
        %v349 = vld [vmem:[%s271 + $0x68] sm:$0xf]
        %v350 = vld [vmem:[%s271 + $0x6c] sm:$0xf]
        %v351 = vld [vmem:[%s271 + $0x70] sm:$0xf]
        %v352 = vld [vmem:[%s271 + $0x74] sm:$0xf]
        %v353 = vld [vmem:[%s271 + $0x78] sm:$0xf]
        %v354 = vld [vmem:[%s271 + $0x7c] sm:$0xf]
        %v355 = vunpack.c.l.bf16 %v323
        %v356 = vunpack.c.l.bf16 %v324
        %v357 = vunpack.c.l.bf16 %v325
        %v358 = vunpack.c.l.bf16 %v326
        %v359 = vunpack.c.l.bf16 %v327
        %v360 = vunpack.c.l.bf16 %v328
        %v361 = vunpack.c.l.bf16 %v329
        %v362 = vunpack.c.l.bf16 %v330
        %v363 = vunpack.c.l.bf16 %v331
        %v364 = vunpack.c.l.bf16 %v332
        %v365 = vunpack.c.l.bf16 %v333
        %v366 = vunpack.c.l.bf16 %v334
        %v367 = vunpack.c.l.bf16 %v335
        %v368 = vunpack.c.l.bf16 %v336
        %v369 = vunpack.c.l.bf16 %v337
        %v370 = vunpack.c.l.bf16 %v338
        %v371 = vunpack.c.l.bf16 %v339
        %v372 = vunpack.c.l.bf16 %v340
        %v373 = vunpack.c.l.bf16 %v341
        %v374 = vunpack.c.l.bf16 %v342
        %v375 = vunpack.c.l.bf16 %v343
        %v376 = vunpack.c.l.bf16 %v344
        %v377 = vunpack.c.l.bf16 %v345
        %v378 = vunpack.c.l.bf16 %v346
        %v379 = vunpack.c.l.bf16 %v347
        %v380 = vunpack.c.l.bf16 %v348
        %v381 = vunpack.c.l.bf16 %v349
        %v382 = vunpack.c.l.bf16 %v350
        %v383 = vunpack.c.l.bf16 %v351
        %v384 = vunpack.c.l.bf16 %v352
        %v385 = vunpack.c.l.bf16 %v353
        %v386 = vunpack.c.l.bf16 %v354
        %v387 = vld [vmem:[#allocation5] sm:$0x1]
        %v389 = vlaneseq
        %v390 = vshrl.u32 %v389, 7
        %v391 = vsub.s32 0, %v390
        %v392 = vrot.slane %v387, %v391
        %v394 = vmul.f32 %v355, %v392
        %v395 = vmul.f32 %v356, %v392
        %v396 = vmul.f32 %v357, %v392
        %v397 = vmul.f32 %v358, %v392
        %v398 = vmul.f32 %v359, %v392
        %v399 = vmul.f32 %v360, %v392
        %v400 = vmul.f32 %v361, %v392
        %v401 = vmul.f32 %v362, %v392
        %v402 = vmul.f32 %v363, %v392
        %v403 = vmul.f32 %v364, %v392
        %v404 = vmul.f32 %v365, %v392
        %v405 = vmul.f32 %v366, %v392
        %v406 = vmul.f32 %v367, %v392
        %v407 = vmul.f32 %v368, %v392
        %v408 = vmul.f32 %v369, %v392
        %v409 = vmul.f32 %v370, %v392
        %v410 = vmul.f32 %v371, %v392
        %v411 = vmul.f32 %v372, %v392
        %v412 = vmul.f32 %v373, %v392
        %v413 = vmul.f32 %v374, %v392
        %v414 = vmul.f32 %v375, %v392
        %v415 = vmul.f32 %v376, %v392
        %v416 = vmul.f32 %v377, %v392
        %v417 = vmul.f32 %v378, %v392
        %v418 = vmul.f32 %v379, %v392
        %v419 = vmul.f32 %v380, %v392
        %v420 = vmul.f32 %v381, %v392
        %v421 = vmul.f32 %v382, %v392
        %v422 = vmul.f32 %v383, %v392
        %v423 = vmul.f32 %v384, %v392
        %v424 = vmul.f32 %v385, %v392
        %v425 = vmul.f32 %v386, %v392
        %v426 = vld [vmem:[#allocation7] sm:$0x1]
        %v428 = vlaneseq
        %v429 = vshrl.u32 %v428, 7
        %v430 = vsub.s32 0, %v429
        %v431 = vrot.slane %v426, %v430
        %v433 = vadd.f32 %v394, %v431
        %v434 = vadd.f32 %v395, %v431
        %v435 = vadd.f32 %v396, %v431
        %v436 = vadd.f32 %v397, %v431
        %v437 = vadd.f32 %v398, %v431
        %v438 = vadd.f32 %v399, %v431
        %v439 = vadd.f32 %v400, %v431
        %v440 = vadd.f32 %v401, %v431
        %v441 = vadd.f32 %v402, %v431
        %v442 = vadd.f32 %v403, %v431
        %v443 = vadd.f32 %v404, %v431
        %v444 = vadd.f32 %v405, %v431
        %v445 = vadd.f32 %v406, %v431
        %v446 = vadd.f32 %v407, %v431
        %v447 = vadd.f32 %v408, %v431
        %v448 = vadd.f32 %v409, %v431
        %v449 = vadd.f32 %v410, %v431
        %v450 = vadd.f32 %v411, %v431
        %v451 = vadd.f32 %v412, %v431
        %v452 = vadd.f32 %v413, %v431
        %v453 = vadd.f32 %v414, %v431
        %v454 = vadd.f32 %v415, %v431
        %v455 = vadd.f32 %v416, %v431
        %v456 = vadd.f32 %v417, %v431
        %v457 = vadd.f32 %v418, %v431
        %v458 = vadd.f32 %v419, %v431
        %v459 = vadd.f32 %v420, %v431
        %v460 = vadd.f32 %v421, %v431
        %v461 = vadd.f32 %v422, %v431
        %v462 = vadd.f32 %v423, %v431
        %v463 = vadd.f32 %v424, %v431
        %v464 = vadd.f32 %v425, %v431
        %v465 = vmax.f32 %v433, 0.0
        %v466 = vmax.f32 %v434, 0.0
        %v467 = vmax.f32 %v435, 0.0
        %v468 = vmax.f32 %v436, 0.0
        %v469 = vmax.f32 %v437, 0.0
        %v470 = vmax.f32 %v438, 0.0
        %v471 = vmax.f32 %v439, 0.0
        %v472 = vmax.f32 %v440, 0.0
        %v473 = vmax.f32 %v441, 0.0
        %v474 = vmax.f32 %v442, 0.0
        %v475 = vmax.f32 %v443, 0.0
        %v476 = vmax.f32 %v444, 0.0
        %v477 = vmax.f32 %v445, 0.0
        %v478 = vmax.f32 %v446, 0.0
        %v479 = vmax.f32 %v447, 0.0
        %v480 = vmax.f32 %v448, 0.0
        %v481 = vmax.f32 %v449, 0.0
        %v482 = vmax.f32 %v450, 0.0
        %v483 = vmax.f32 %v451, 0.0
        %v484 = vmax.f32 %v452, 0.0
        %v485 = vmax.f32 %v453, 0.0
        %v486 = vmax.f32 %v454, 0.0
        %v487 = vmax.f32 %v455, 0.0
        %v488 = vmax.f32 %v456, 0.0
        %v489 = vmax.f32 %v457, 0.0
        %v490 = vmax.f32 %v458, 0.0
        %v491 = vmax.f32 %v459, 0.0
        %v492 = vmax.f32 %v460, 0.0
        %v493 = vmax.f32 %v461, 0.0
        %v494 = vmax.f32 %v462, 0.0
        %v495 = vmax.f32 %v463, 0.0
        %v496 = vmax.f32 %v464, 0.0
        %v497 = vmin.f32 %v465, 6.0
        %v498 = vmin.f32 %v466, 6.0
        %v499 = vmin.f32 %v467, 6.0
        %v500 = vmin.f32 %v468, 6.0
        %v501 = vmin.f32 %v469, 6.0
        %v502 = vmin.f32 %v470, 6.0
        %v503 = vmin.f32 %v471, 6.0
        %v504 = vmin.f32 %v472, 6.0
        %v505 = vmin.f32 %v473, 6.0
        %v506 = vmin.f32 %v474, 6.0
        %v507 = vmin.f32 %v475, 6.0
        %v508 = vmin.f32 %v476, 6.0
        %v509 = vmin.f32 %v477, 6.0
        %v510 = vmin.f32 %v478, 6.0
        %v511 = vmin.f32 %v479, 6.0
        %v512 = vmin.f32 %v480, 6.0
        %v513 = vmin.f32 %v481, 6.0
        %v514 = vmin.f32 %v482, 6.0
        %v515 = vmin.f32 %v483, 6.0
        %v516 = vmin.f32 %v484, 6.0
        %v517 = vmin.f32 %v485, 6.0
        %v518 = vmin.f32 %v486, 6.0
        %v519 = vmin.f32 %v487, 6.0
        %v520 = vmin.f32 %v488, 6.0
        %v521 = vmin.f32 %v489, 6.0
        %v522 = vmin.f32 %v490, 6.0
        %v523 = vmin.f32 %v491, 6.0
        %v524 = vmin.f32 %v492, 6.0
        %v525 = vmin.f32 %v493, 6.0
        %v526 = vmin.f32 %v494, 6.0
        %v527 = vmin.f32 %v495, 6.0
        %v528 = vmin.f32 %v496, 6.0
        %s529 = smul.u32 %s27, 256
        %v530 = vlaneseq
        %v531 = vshrl.u32 %v530, 7
        %v532 = vadd.s32 %v531, 8
        %v533 = vadd.s32 %v531, 16
        %v534 = vadd.s32 %v531, 24
        %v535 = vadd.s32 %v531, 32
        %v536 = vadd.s32 %v531, 40
        %v537 = vadd.s32 %v531, 48
        %v538 = vadd.s32 %v531, 56
        %v539 = vadd.s32 %v531, 64
        %v540 = vadd.s32 %v531, 72
        %v541 = vadd.s32 %v531, 80
        %v542 = vadd.s32 %v531, 88
        %v543 = vadd.s32 %v531, 96
        %v544 = vadd.s32 %v531, 104
        %v545 = vadd.s32 %v531, 112
        %v546 = vadd.s32 %v531, 120
        %v547 = vadd.s32 %v531, 128
        %v548 = vadd.s32 %v531, 136
        %v549 = vadd.s32 %v531, 144
        %v550 = vadd.s32 %v531, 152
        %v551 = vadd.s32 %v531, 160
        %v552 = vadd.s32 %v531, 168
        %v553 = vadd.s32 %v531, 176
        %v554 = vadd.s32 %v531, 184
        %v555 = vadd.s32 %v531, 192
        %v556 = vadd.s32 %v531, 200
        %v557 = vadd.s32 %v531, 208
        %v558 = vadd.s32 %v531, 216
        %v559 = vadd.s32 %v531, 224
        %v560 = vadd.s32 %v531, 232
        %v561 = vadd.s32 %v531, 240
        %v562 = vadd.s32 %v531, 248
        %v563 = vstv %s529
        %v564 = vadd.s32 %v563, %v531
        %v565 = vadd.s32 %v563, %v532
        %v566 = vadd.s32 %v563, %v533
        %v567 = vadd.s32 %v563, %v534
        %v568 = vadd.s32 %v563, %v535
        %v569 = vadd.s32 %v563, %v536
        %v570 = vadd.s32 %v563, %v537
        %v571 = vadd.s32 %v563, %v538
        %v572 = vadd.s32 %v563, %v539
        %v573 = vadd.s32 %v563, %v540
        %v574 = vadd.s32 %v563, %v541
        %v575 = vadd.s32 %v563, %v542
        %v576 = vadd.s32 %v563, %v543
        %v577 = vadd.s32 %v563, %v544
        %v578 = vadd.s32 %v563, %v545
        %v579 = vadd.s32 %v563, %v546
        %v580 = vadd.s32 %v563, %v547
        %v581 = vadd.s32 %v563, %v548
        %v582 = vadd.s32 %v563, %v549
        %v583 = vadd.s32 %v563, %v550
        %v584 = vadd.s32 %v563, %v551
        %v585 = vadd.s32 %v563, %v552
        %v586 = vadd.s32 %v563, %v553
        %v587 = vadd.s32 %v563, %v554
        %v588 = vadd.s32 %v563, %v555
        %v589 = vadd.s32 %v563, %v556
        %v590 = vadd.s32 %v563, %v557
        %v591 = vadd.s32 %v563, %v558
        %v592 = vadd.s32 %v563, %v559
        %v593 = vadd.s32 %v563, %v560
        %v594 = vadd.s32 %v563, %v561
        %v595 = vadd.s32 %v563, %v562
        %vm596 = vcmp.lt.s32.totalorder %v564, 420
        %vm597 = vcmp.lt.s32.totalorder %v565, 420
        %vm598 = vcmp.lt.s32.totalorder %v566, 420
        %vm599 = vcmp.lt.s32.totalorder %v567, 420
        %vm600 = vcmp.lt.s32.totalorder %v568, 420
        %vm601 = vcmp.lt.s32.totalorder %v569, 420
        %vm602 = vcmp.lt.s32.totalorder %v570, 420
        %vm603 = vcmp.lt.s32.totalorder %v571, 420
        %vm604 = vcmp.lt.s32.totalorder %v572, 420
        %vm605 = vcmp.lt.s32.totalorder %v573, 420
        %vm606 = vcmp.lt.s32.totalorder %v574, 420
        %vm607 = vcmp.lt.s32.totalorder %v575, 420
        %vm608 = vcmp.lt.s32.totalorder %v576, 420
        %vm609 = vcmp.lt.s32.totalorder %v577, 420
        %vm610 = vcmp.lt.s32.totalorder %v578, 420
        %vm611 = vcmp.lt.s32.totalorder %v579, 420
        %vm612 = vcmp.lt.s32.totalorder %v580, 420
        %vm613 = vcmp.lt.s32.totalorder %v581, 420
        %vm614 = vcmp.lt.s32.totalorder %v582, 420
        %vm615 = vcmp.lt.s32.totalorder %v583, 420
        %vm616 = vcmp.lt.s32.totalorder %v584, 420
        %vm617 = vcmp.lt.s32.totalorder %v585, 420
        %vm618 = vcmp.lt.s32.totalorder %v586, 420
        %vm619 = vcmp.lt.s32.totalorder %v587, 420
        %vm620 = vcmp.lt.s32.totalorder %v588, 420
        %vm621 = vcmp.lt.s32.totalorder %v589, 420
        %vm622 = vcmp.lt.s32.totalorder %v590, 420
        %vm623 = vcmp.lt.s32.totalorder %v591, 420
        %vm624 = vcmp.lt.s32.totalorder %v592, 420
        %vm625 = vcmp.lt.s32.totalorder %v593, 420
        %vm626 = vcmp.lt.s32.totalorder %v594, 420
        %vm627 = vcmp.lt.s32.totalorder %v595, 420
        %v628 = vsel %vm596, %v497, 0.0
        %v629 = vsel %vm597, %v498, 0.0
        %v630 = vsel %vm598, %v499, 0.0
        %v631 = vsel %vm599, %v500, 0.0
        %v632 = vsel %vm600, %v501, 0.0
        %v633 = vsel %vm601, %v502, 0.0
        %v634 = vsel %vm602, %v503, 0.0
        %v635 = vsel %vm603, %v504, 0.0
        %v636 = vsel %vm604, %v505, 0.0
        %v637 = vsel %vm605, %v506, 0.0
        %v638 = vsel %vm606, %v507, 0.0
        %v639 = vsel %vm607, %v508, 0.0
        %v640 = vsel %vm608, %v509, 0.0
        %v641 = vsel %vm609, %v510, 0.0
        %v642 = vsel %vm610, %v511, 0.0
        %v643 = vsel %vm611, %v512, 0.0
        %v644 = vsel %vm612, %v513, 0.0
        %v645 = vsel %vm613, %v514, 0.0
        %v646 = vsel %vm614, %v515, 0.0
        %v647 = vsel %vm615, %v516, 0.0
        %v648 = vsel %vm616, %v517, 0.0
        %v649 = vsel %vm617, %v518, 0.0
        %v650 = vsel %vm618, %v519, 0.0
        %v651 = vsel %vm619, %v520, 0.0
        %v652 = vsel %vm620, %v521, 0.0
        %v653 = vsel %vm621, %v522, 0.0
        %v654 = vsel %vm622, %v523, 0.0
        %v655 = vsel %vm623, %v524, 0.0
        %v656 = vsel %vm624, %v525, 0.0
        %v657 = vsel %vm625, %v526, 0.0
        %v658 = vsel %vm626, %v527, 0.0
        %v659 = vsel %vm627, %v528, 0.0
        %v660 = vpack.c.bf16 %v629, %v628
        %v661 = vpack.c.bf16 %v631, %v630
        %v662 = vpack.c.bf16 %v633, %v632
        %v663 = vpack.c.bf16 %v635, %v634
        %v664 = vpack.c.bf16 %v637, %v636
        %v665 = vpack.c.bf16 %v639, %v638
        %v666 = vpack.c.bf16 %v641, %v640
        %v667 = vpack.c.bf16 %v643, %v642
        %v668 = vpack.c.bf16 %v645, %v644
        %v669 = vpack.c.bf16 %v647, %v646
        %v670 = vpack.c.bf16 %v649, %v648
        %v671 = vpack.c.bf16 %v651, %v650
        %v672 = vpack.c.bf16 %v653, %v652
        %v673 = vpack.c.bf16 %v655, %v654
        %v674 = vpack.c.bf16 %v657, %v656
        %v675 = vpack.c.bf16 %v659, %v658
        %v676 = vld [vmem:[#allocation8] sm:$0xf]
        %v677 = vld [vmem:[#allocation8 + $0x4] sm:$0xf]
        %v678 = vld [vmem:[#allocation8 + $0x8] sm:$0xf]
        %v682 = vunpack.c.l.b16 %v676
        %v683 = vunpack.c.l.b16 %v677
        %v684 = vunpack.c.l.b16 %v678
        %v685 = vpack.c.b16 %v683, %v682
        %v686 = vpack.c.b16 %v684, %v684
        %vm688 = vcmask 195584
        %v690 = vsel %vm688, %v660, 0
        %v693 = vsel %vm688, %v661, 0
        %v696 = vsel %vm688, %v662, 0
        %v699 = vsel %vm688, %v663, 0
        %v702 = vsel %vm688, %v664, 0
        %v705 = vsel %vm688, %v665, 0
        %v708 = vsel %vm688, %v666, 0
        %v711 = vsel %vm688, %v667, 0
        %v714 = vsel %vm688, %v668, 0
        %v717 = vsel %vm688, %v669, 0
        %v720 = vsel %vm688, %v670, 0
        %v723 = vsel %vm688, %v671, 0
        %v726 = vsel %vm688, %v672, 0
        %v729 = vsel %vm688, %v673, 0
        %v732 = vsel %vm688, %v674, 0
        %v735 = vsel %vm688, %v675, 0
        %vm737 = vcmask 1043456
        %v739 = vsel %vm737, %v686, 0
        %741 = vmatprep.subr.bf16.mxu0 0
        %742 = vmatpush1.bf16.msra.mxu0 %v685
        %743 = vmatprep.subr.bf16.mxu0 0
        %744 = vmatpush1.bf16.msra.mxu0 %v739
        %745 = vmatprep.subr.bf16.mxu0 0
        %746 = vmatpush1.bf16.msra.mxu0 0
        %747 = vmatprep.subr.bf16.mxu0 0
        %748 = vmatpush1.bf16.msra.mxu0 0
        %749 = vmatprep.subr.bf16.mxu0 0
        %750 = vmatpush1.bf16.msra.mxu0 0
        %751 = vmatprep.subr.bf16.mxu0 0
        %752 = vmatpush1.bf16.msra.mxu0 0
        %753 = vmatprep.subr.bf16.mxu0 0
        %754 = vmatpush1.bf16.msra.mxu0 0
        %755 = vmatprep.subr.bf16.mxu0 0
        %756 = vmatpush1.bf16.msra.mxu0 0
        %757 = vmatprep.subr.bf16.mxu0 0
        %758 = vmatpush1.bf16.msra.mxu0 0
        %759 = vmatprep.subr.bf16.mxu0 0
        %760 = vmatpush1.bf16.msra.mxu0 0
        %761 = vmatprep.subr.bf16.mxu0 0
        %762 = vmatpush1.bf16.msra.mxu0 0
        %763 = vmatprep.subr.bf16.mxu0 0
        %764 = vmatpush1.bf16.msra.mxu0 0
        %765 = vmatprep.subr.bf16.mxu0 0
        %766 = vmatpush1.bf16.msra.mxu0 0
        %767 = vmatprep.subr.bf16.mxu0 0
        %768 = vmatpush1.bf16.msra.mxu0 0
        %769 = vmatprep.subr.bf16.mxu0 0
        %770 = vmatpush1.bf16.msra.mxu0 0
        %771 = vmatprep.subr.bf16.mxu0 0
        %772 = vmatpush1.bf16.msra.mxu0 0
        %773 = vmatprep.mubr.bf16.mxu0 0
        %774 = vmatmul.mubr.bf16.gmra.mrb[0].mxu0 %v690
        %v775 = vpop.f32.mrb[0].mxu0
        %v776 = vadd.f32 0.0, %v775
        %v777 = vpop.f32.mrb[0].mxu0
        %v778 = vpop.f32.mrb[0].mxu0
        %v779 = vadd.f32 0.0, %v778
        %v780 = vpop.f32.mrb[0].mxu0
        %781 = vmatprep.mubr.bf16.mxu0 0
        %782 = vmatmul.mubr.bf16.gmra.mrb[0].mxu0 %v693
        %v783 = vpop.f32.mrb[0].mxu0
        %v784 = vadd.f32 0.0, %v783
        %v785 = vpop.f32.mrb[0].mxu0
        %v786 = vpop.f32.mrb[0].mxu0
        %v787 = vadd.f32 0.0, %v786
        %v788 = vpop.f32.mrb[0].mxu0
        %789 = vmatprep.mubr.bf16.mxu0 0
        %790 = vmatmul.mubr.bf16.gmra.mrb[0].mxu0 %v696
        %v791 = vpop.f32.mrb[0].mxu0
        %v792 = vadd.f32 0.0, %v791
        %v793 = vpop.f32.mrb[0].mxu0
        %v794 = vpop.f32.mrb[0].mxu0
        %v795 = vadd.f32 0.0, %v794
        %v796 = vpop.f32.mrb[0].mxu0
        %797 = vmatprep.mubr.bf16.mxu0 0
        %798 = vmatmul.mubr.bf16.gmra.mrb[0].mxu0 %v699
        %v799 = vpop.f32.mrb[0].mxu0
        %v800 = vadd.f32 0.0, %v799
        %v801 = vpop.f32.mrb[0].mxu0
        %v802 = vpop.f32.mrb[0].mxu0
        %v803 = vadd.f32 0.0, %v802
        %v804 = vpop.f32.mrb[0].mxu0
        %805 = vmatprep.mubr.bf16.mxu0 0
        %806 = vmatmul.mubr.bf16.gmra.mrb[0].mxu0 %v702
        %v807 = vpop.f32.mrb[0].mxu0
        %v808 = vadd.f32 0.0, %v807
        %v809 = vpop.f32.mrb[0].mxu0
        %v810 = vpop.f32.mrb[0].mxu0
        %v811 = vadd.f32 0.0, %v810
        %v812 = vpop.f32.mrb[0].mxu0
        %813 = vmatprep.mubr.bf16.mxu0 0
        %814 = vmatmul.mubr.bf16.gmra.mrb[0].mxu0 %v705
        %v815 = vpop.f32.mrb[0].mxu0
        %v816 = vadd.f32 0.0, %v815
        %v817 = vpop.f32.mrb[0].mxu0
        %v818 = vpop.f32.mrb[0].mxu0
        %v819 = vadd.f32 0.0, %v818
        %v820 = vpop.f32.mrb[0].mxu0
        %821 = vmatprep.mubr.bf16.mxu0 0
        %822 = vmatmul.mubr.bf16.gmra.mrb[0].mxu0 %v708
        %v823 = vpop.f32.mrb[0].mxu0
        %v824 = vadd.f32 0.0, %v823
        %v825 = vpop.f32.mrb[0].mxu0
        %v826 = vpop.f32.mrb[0].mxu0
        %v827 = vadd.f32 0.0, %v826
        %v828 = vpop.f32.mrb[0].mxu0
        %829 = vmatprep.mubr.bf16.mxu0 0
        %830 = vmatmul.mubr.bf16.gmra.mrb[0].mxu0 %v711
        %v831 = vpop.f32.mrb[0].mxu0
        %v832 = vadd.f32 0.0, %v831
        %v833 = vpop.f32.mrb[0].mxu0
        %v834 = vpop.f32.mrb[0].mxu0
        %v835 = vadd.f32 0.0, %v834
        %v836 = vpop.f32.mrb[0].mxu0
        %837 = vmatprep.mubr.bf16.mxu0 0
        %838 = vmatmul.mubr.bf16.gmra.mrb[0].mxu0 %v714
        %v839 = vpop.f32.mrb[0].mxu0
        %v840 = vadd.f32 0.0, %v839
        %v841 = vpop.f32.mrb[0].mxu0
        %v842 = vpop.f32.mrb[0].mxu0
        %v843 = vadd.f32 0.0, %v842
        %v844 = vpop.f32.mrb[0].mxu0
        %845 = vmatprep.mubr.bf16.mxu0 0
        %846 = vmatmul.mubr.bf16.gmra.mrb[0].mxu0 %v717
        %v847 = vpop.f32.mrb[0].mxu0
        %v848 = vadd.f32 0.0, %v847
        %v849 = vpop.f32.mrb[0].mxu0
        %v850 = vpop.f32.mrb[0].mxu0
        %v851 = vadd.f32 0.0, %v850
        %v852 = vpop.f32.mrb[0].mxu0
        %853 = vmatprep.mubr.bf16.mxu0 0
        %854 = vmatmul.mubr.bf16.gmra.mrb[0].mxu0 %v720
        %v855 = vpop.f32.mrb[0].mxu0
        %v856 = vadd.f32 0.0, %v855
        %v857 = vpop.f32.mrb[0].mxu0
        %v858 = vpop.f32.mrb[0].mxu0
        %v859 = vadd.f32 0.0, %v858
        %v860 = vpop.f32.mrb[0].mxu0
        %861 = vmatprep.mubr.bf16.mxu0 0
        %862 = vmatmul.mubr.bf16.gmra.mrb[0].mxu0 %v723
        %v863 = vpop.f32.mrb[0].mxu0
        %v864 = vadd.f32 0.0, %v863
        %v865 = vpop.f32.mrb[0].mxu0
        %v866 = vpop.f32.mrb[0].mxu0
        %v867 = vadd.f32 0.0, %v866
        %v868 = vpop.f32.mrb[0].mxu0
        %869 = vmatprep.mubr.bf16.mxu0 0
        %870 = vmatmul.mubr.bf16.gmra.mrb[0].mxu0 %v726
        %v871 = vpop.f32.mrb[0].mxu0
        %v872 = vadd.f32 0.0, %v871
        %v873 = vpop.f32.mrb[0].mxu0
        %v874 = vpop.f32.mrb[0].mxu0
        %v875 = vadd.f32 0.0, %v874
        %v876 = vpop.f32.mrb[0].mxu0
        %877 = vmatprep.mubr.bf16.mxu0 0
        %878 = vmatmul.mubr.bf16.gmra.mrb[0].mxu0 %v729
        %v879 = vpop.f32.mrb[0].mxu0
        %v880 = vadd.f32 0.0, %v879
        %v881 = vpop.f32.mrb[0].mxu0
        %v882 = vpop.f32.mrb[0].mxu0
        %v883 = vadd.f32 0.0, %v882
        %v884 = vpop.f32.mrb[0].mxu0
        %885 = vmatprep.mubr.bf16.mxu0 0
        %886 = vmatmul.mubr.bf16.gmra.mrb[0].mxu0 %v732
        %v887 = vpop.f32.mrb[0].mxu0
        %v888 = vadd.f32 0.0, %v887
        %v889 = vpop.f32.mrb[0].mxu0
        %v890 = vpop.f32.mrb[0].mxu0
        %v891 = vadd.f32 0.0, %v890
        %v892 = vpop.f32.mrb[0].mxu0
        %893 = vmatprep.mubr.bf16.mxu0 0
        %894 = vmatmul.mubr.bf16.gmra.mrb[0].mxu0 %v735
        %v895 = vpop.f32.mrb[0].mxu0
        %v896 = vadd.f32 0.0, %v895
        %v897 = vpop.f32.mrb[0].mxu0
        %v898 = vpop.f32.mrb[0].mxu0
        %v899 = vadd.f32 0.0, %v898
        %v900 = vpop.f32.mrb[0].mxu0
        %901 = vdwg.mxu0
        %vm902 = vcmask 64512
        %903 = vst.msk [vmem:[%s307] sm:$0xff] %vm902, %v776
        %904 = vst.msk [vmem:[%s307 + $0x8] sm:$0xff] %vm902, %v779
        %905 = vst.msk [vmem:[%s307 + $0x10] sm:$0xff] %vm902, %v784
        %906 = vst.msk [vmem:[%s307 + $0x18] sm:$0xff] %vm902, %v787
        %907 = vst.msk [vmem:[%s307 + $0x20] sm:$0xff] %vm902, %v792
        %908 = vst.msk [vmem:[%s307 + $0x28] sm:$0xff] %vm902, %v795
        %909 = vst.msk [vmem:[%s307 + $0x30] sm:$0xff] %vm902, %v800
        %910 = vst.msk [vmem:[%s307 + $0x38] sm:$0xff] %vm902, %v803
        %911 = vst.msk [vmem:[%s307 + $0x40] sm:$0xff] %vm902, %v808
        %912 = vst.msk [vmem:[%s307 + $0x48] sm:$0xff] %vm902, %v811
        %913 = vst.msk [vmem:[%s307 + $0x50] sm:$0xff] %vm902, %v816
        %914 = vst.msk [vmem:[%s307 + $0x58] sm:$0xff] %vm902, %v819
        %915 = vst.msk [vmem:[%s307 + $0x60] sm:$0xff] %vm902, %v824
        %916 = vst.msk [vmem:[%s307 + $0x68] sm:$0xff] %vm902, %v827
        %917 = vst.msk [vmem:[%s307 + $0x70] sm:$0xff] %vm902, %v832
        %918 = vst.msk [vmem:[%s307 + $0x78] sm:$0xff] %vm902, %v835
        %919 = vst.msk [vmem:[%s307 + $0x80] sm:$0xff] %vm902, %v840
        %920 = vst.msk [vmem:[%s307 + $0x88] sm:$0xff] %vm902, %v843
        %921 = vst.msk [vmem:[%s307 + $0x90] sm:$0xff] %vm902, %v848
        %922 = vst.msk [vmem:[%s307 + $0x98] sm:$0xff] %vm902, %v851
        %923 = vst.msk [vmem:[%s307 + $0xa0] sm:$0xff] %vm902, %v856
        %924 = vst.msk [vmem:[%s307 + $0xa8] sm:$0xff] %vm902, %v859
        %925 = vst.msk [vmem:[%s307 + $0xb0] sm:$0xff] %vm902, %v864
        %926 = vst.msk [vmem:[%s307 + $0xb8] sm:$0xff] %vm902, %v867
        %927 = vst.msk [vmem:[%s307 + $0xc0] sm:$0xff] %vm902, %v872
        %928 = vst.msk [vmem:[%s307 + $0xc8] sm:$0xff] %vm902, %v875
        %929 = vst.msk [vmem:[%s307 + $0xd0] sm:$0xff] %vm902, %v880
        %930 = vst.msk [vmem:[%s307 + $0xd8] sm:$0xff] %vm902, %v883
        %931 = vst.msk [vmem:[%s307 + $0xe0] sm:$0xff] %vm902, %v888
        %932 = vst.msk [vmem:[%s307 + $0xe8] sm:$0xff] %vm902, %v891
        %933 = vst.msk [vmem:[%s307 + $0xf0] sm:$0xff] %vm902, %v896
        %934 = vst.msk [vmem:[%s307 + $0xf8] sm:$0xff] %vm902, %v899
        %p935 = scmp.eq.s32.totalorder %s27, 0
        // Predicated region
        $region53: #{inverted_residual_forward.4} parent=35 // pred_check
          %p936 = pneg %p935
        $region54: #{inverted_residual_forward.4} parent=35 // pred_check_branch
          %938 = sbr.rel (%p936) target = $region56
        $region55: #{inverted_residual_forward.4} parent=35 // pred_region
          %vm939 = vcmask 57344
          %940 = vst.msk [vmem:[#allocation11] sm:$0x1] %vm939, 0.0
          %941 = vst.msk [vmem:[#allocation13] sm:$0x1] %vm939, 0.0
        $region56: #{inverted_residual_forward.4} parent=35 // pred_fallthru
          _
        %v942 = vld [vmem:[#allocation11] sm:$0x1]
        %v943 = vsel %vm902, %v776, 0.0
        %v944 = vsel %vm902, %v779, 0.0
        %v945 = vadd.f32 %v943, %v944
        %v946 = vsel %vm902, %v784, 0.0
        %v947 = vadd.f32 %v945, %v946
        %v948 = vsel %vm902, %v787, 0.0
        %v949 = vadd.f32 %v947, %v948
        %v950 = vsel %vm902, %v792, 0.0
        %v951 = vadd.f32 %v949, %v950
        %v952 = vsel %vm902, %v795, 0.0
        %v953 = vadd.f32 %v951, %v952
        %v954 = vsel %vm902, %v800, 0.0
        %v955 = vadd.f32 %v953, %v954
        %v956 = vsel %vm902, %v803, 0.0
        %v957 = vadd.f32 %v955, %v956
        %v958 = vsel %vm902, %v808, 0.0
        %v959 = vadd.f32 %v957, %v958
        %v960 = vsel %vm902, %v811, 0.0
        %v961 = vadd.f32 %v959, %v960
        %v962 = vsel %vm902, %v816, 0.0
        %v963 = vadd.f32 %v961, %v962
        %v964 = vsel %vm902, %v819, 0.0
        %v965 = vadd.f32 %v963, %v964
        %v966 = vsel %vm902, %v824, 0.0
        %v967 = vadd.f32 %v965, %v966
        %v968 = vsel %vm902, %v827, 0.0
        %v969 = vadd.f32 %v967, %v968
        %v970 = vsel %vm902, %v832, 0.0
        %v971 = vadd.f32 %v969, %v970
        %v972 = vsel %vm902, %v835, 0.0
        %v973 = vadd.f32 %v971, %v972
        %v974 = vsel %vm902, %v840, 0.0
        %v975 = vadd.f32 %v973, %v974
        %v976 = vsel %vm902, %v843, 0.0
        %v977 = vadd.f32 %v975, %v976
        %v978 = vsel %vm902, %v848, 0.0
        %v979 = vadd.f32 %v977, %v978
        %v980 = vsel %vm902, %v851, 0.0
        %v981 = vadd.f32 %v979, %v980
        %v982 = vsel %vm902, %v856, 0.0
        %v983 = vadd.f32 %v981, %v982
        %v984 = vsel %vm902, %v859, 0.0
        %v985 = vadd.f32 %v983, %v984
        %v986 = vsel %vm902, %v864, 0.0
        %v987 = vadd.f32 %v985, %v986
        %v988 = vsel %vm902, %v867, 0.0
        %v989 = vadd.f32 %v987, %v988
        %v990 = vsel %vm902, %v872, 0.0
        %v991 = vadd.f32 %v989, %v990
        %v992 = vsel %vm902, %v875, 0.0
        %v993 = vadd.f32 %v991, %v992
        %v994 = vsel %vm902, %v880, 0.0
        %v995 = vadd.f32 %v993, %v994
        %v996 = vsel %vm902, %v883, 0.0
        %v997 = vadd.f32 %v995, %v996
        %v998 = vsel %vm902, %v888, 0.0
        %v999 = vadd.f32 %v997, %v998
        %v1000 = vsel %vm902, %v891, 0.0
        %v1001 = vadd.f32 %v999, %v1000
        %v1002 = vsel %vm902, %v896, 0.0
        %v1003 = vadd.f32 %v1001, %v1002
        %v1004 = vsel %vm902, %v899, 0.0
        %v1005 = vadd.f32 %v1003, %v1004
        %v1006 = vrot.slane %v1005, 4
        %v1007 = vadd.f32 %v1005, %v1006
        %v1008 = vrot.slane %v1007, 2
        %v1009 = vadd.f32 %v1007, %v1008
        %v1010 = vrot.slane %v1009, 1
        %v1011 = vadd.f32 %v1009, %v1010
        %v1012 = vadd.f32 %v942, %v1011
        %vm1013 = vcmask 57344
        %1014 = vst.msk [vmem:[#allocation11] sm:$0x1] %vm1013, %v1012
        %v1015 = vld [vmem:[#allocation13] sm:$0x1]
        %v1016 = vmul.f32 %v776, %v776
        %v1017 = vmul.f32 %v779, %v779
        %v1018 = vmul.f32 %v784, %v784
        %v1019 = vmul.f32 %v787, %v787
        %v1020 = vmul.f32 %v792, %v792
        %v1021 = vmul.f32 %v795, %v795
        %v1022 = vmul.f32 %v800, %v800
        %v1023 = vmul.f32 %v803, %v803
        %v1024 = vmul.f32 %v808, %v808
        %v1025 = vmul.f32 %v811, %v811
        %v1026 = vmul.f32 %v816, %v816
        %v1027 = vmul.f32 %v819, %v819
        %v1028 = vmul.f32 %v824, %v824
        %v1029 = vmul.f32 %v827, %v827
        %v1030 = vmul.f32 %v832, %v832
        %v1031 = vmul.f32 %v835, %v835
        %v1032 = vmul.f32 %v840, %v840
        %v1033 = vmul.f32 %v843, %v843
        %v1034 = vmul.f32 %v848, %v848
        %v1035 = vmul.f32 %v851, %v851
        %v1036 = vmul.f32 %v856, %v856
        %v1037 = vmul.f32 %v859, %v859
        %v1038 = vmul.f32 %v864, %v864
        %v1039 = vmul.f32 %v867, %v867
        %v1040 = vmul.f32 %v872, %v872
        %v1041 = vmul.f32 %v875, %v875
        %v1042 = vmul.f32 %v880, %v880
        %v1043 = vmul.f32 %v883, %v883
        %v1044 = vmul.f32 %v888, %v888
        %v1045 = vmul.f32 %v891, %v891
        %v1046 = vmul.f32 %v896, %v896
        %v1047 = vmul.f32 %v899, %v899
        %v1048 = vsel %vm902, %v1016, 0.0
        %v1049 = vsel %vm902, %v1017, 0.0
        %v1050 = vadd.f32 %v1048, %v1049
        %v1051 = vsel %vm902, %v1018, 0.0
        %v1052 = vadd.f32 %v1050, %v1051
        %v1053 = vsel %vm902, %v1019, 0.0
        %v1054 = vadd.f32 %v1052, %v1053
        %v1055 = vsel %vm902, %v1020, 0.0
        %v1056 = vadd.f32 %v1054, %v1055
        %v1057 = vsel %vm902, %v1021, 0.0
        %v1058 = vadd.f32 %v1056, %v1057
        %v1059 = vsel %vm902, %v1022, 0.0
        %v1060 = vadd.f32 %v1058, %v1059
        %v1061 = vsel %vm902, %v1023, 0.0
        %v1062 = vadd.f32 %v1060, %v1061
        %v1063 = vsel %vm902, %v1024, 0.0
        %v1064 = vadd.f32 %v1062, %v1063
        %v1065 = vsel %vm902, %v1025, 0.0
        %v1066 = vadd.f32 %v1064, %v1065
        %v1067 = vsel %vm902, %v1026, 0.0
        %v1068 = vadd.f32 %v1066, %v1067
        %v1069 = vsel %vm902, %v1027, 0.0
        %v1070 = vadd.f32 %v1068, %v1069
        %v1071 = vsel %vm902, %v1028, 0.0
        %v1072 = vadd.f32 %v1070, %v1071
        %v1073 = vsel %vm902, %v1029, 0.0
        %v1074 = vadd.f32 %v1072, %v1073
        %v1075 = vsel %vm902, %v1030, 0.0
        %v1076 = vadd.f32 %v1074, %v1075
        %v1077 = vsel %vm902, %v1031, 0.0
        %v1078 = vadd.f32 %v1076, %v1077
        %v1079 = vsel %vm902, %v1032, 0.0
        %v1080 = vadd.f32 %v1078, %v1079
        %v1081 = vsel %vm902, %v1033, 0.0
        %v1082 = vadd.f32 %v1080, %v1081
        %v1083 = vsel %vm902, %v1034, 0.0
        %v1084 = vadd.f32 %v1082, %v1083
        %v1085 = vsel %vm902, %v1035, 0.0
        %v1086 = vadd.f32 %v1084, %v1085
        %v1087 = vsel %vm902, %v1036, 0.0
        %v1088 = vadd.f32 %v1086, %v1087
        %v1089 = vsel %vm902, %v1037, 0.0
        %v1090 = vadd.f32 %v1088, %v1089
        %v1091 = vsel %vm902, %v1038, 0.0
        %v1092 = vadd.f32 %v1090, %v1091
        %v1093 = vsel %vm902, %v1039, 0.0
        %v1094 = vadd.f32 %v1092, %v1093
        %v1095 = vsel %vm902, %v1040, 0.0
        %v1096 = vadd.f32 %v1094, %v1095
        %v1097 = vsel %vm902, %v1041, 0.0
        %v1098 = vadd.f32 %v1096, %v1097
        %v1099 = vsel %vm902, %v1042, 0.0
        %v1100 = vadd.f32 %v1098, %v1099
        %v1101 = vsel %vm902, %v1043, 0.0
        %v1102 = vadd.f32 %v1100, %v1101
        %v1103 = vsel %vm902, %v1044, 0.0
        %v1104 = vadd.f32 %v1102, %v1103
        %v1105 = vsel %vm902, %v1045, 0.0
        %v1106 = vadd.f32 %v1104, %v1105
        %v1107 = vsel %vm902, %v1046, 0.0
        %v1108 = vadd.f32 %v1106, %v1107
        %v1109 = vsel %vm902, %v1047, 0.0
        %v1110 = vadd.f32 %v1108, %v1109
        %v1111 = vrot.slane %v1110, 4
        %v1112 = vadd.f32 %v1110, %v1111
        %v1113 = vrot.slane %v1112, 2
        %v1114 = vadd.f32 %v1112, %v1113
        %v1115 = vrot.slane %v1114, 1
        %v1116 = vadd.f32 %v1114, %v1115
        %v1117 = vadd.f32 %v1015, %v1116
        %1118 = vst.msk [vmem:[#allocation13] sm:$0x1] %vm1013, %v1117
        %s1119 = sand.u32 %s124, 1
        %s1120 = scalar_lea.sflag [#allocation4], %s1119
        %s1121 = sand.u32 %s124, 1
        %s1122 = smul.addr %s1121, 256
        %s1123 = scalar_lea.vmem [#allocation10], %s1122
        // Predicated region
        $region57: #{inverted_residual_forward.4} parent=35 // pred_check
          %p1124 = pneg %p134
        $region58: #{inverted_residual_forward.4} parent=35 // pred_check_branch
          %1126 = sbr.rel (%p1124) target = $region60
        $region59: #{inverted_residual_forward.4} parent=35 // pred_region
          %s1127 = smul.u32 32, %s27
          %s1128 = ssub.s32 53, %s1127
          %p1129 = scmp.lt.s32.totalorder %s1128, 32
          %s1130 = scalar_select %p1129, %s1128, 32
          %s1131 = smul.u32 128, %s1130
          %s1133 = ssub.s32 4096, %s1131
          %1134 = vsyncadd %s1120, %s1133
          %p1135 = scmp.ne.s32.totalorder 0, %s1131
          %s1136 = smul.addr %s1127, 128
          %s1137 = scalar_lea.hbm %s4, %s1136
          %s1138 = smul.u32 8, %s1130
          %s1139 = sshll.u32 %s1123, 4
          %s1140 = int_to_ptr.vmem [resolvable:$true] %s1139
          %s1141 = sshll.u32 %s1138, 4
          %1145 = dma.vmem_to_hbm [thread:$0]  (%p1135), %s1140, %s1141, %s1137, %s1120, 128, 128, 8
        $region60: #{inverted_residual_forward.4} parent=35 // pred_fallthru
          _
        // Predicated region
        $region61: #{inverted_residual_forward.4} parent=35 // pred_check
          %p1146 = pneg %p155
        $region62: #{inverted_residual_forward.4} parent=35 // pred_check_branch
          %1148 = sbr.rel (%p1146) target = $region64
        $region63: #{inverted_residual_forward.4} parent=35 // pred_region
          %s1150 = ssub.s32 16, 16
          %1151 = vsyncadd [#allocation12], %s1150
          %s1153 = sshll.u32 [#allocation11], 4
          %s1154 = int_to_ptr.vmem [resolvable:$true] %s1153
          %1156 = dma.vmem_to_hbm [thread:$0]  %s1154, 16, %s5, [#allocation12]
        $region64: #{inverted_residual_forward.4} parent=35 // pred_fallthru
          _
        // Predicated region
        $region65: #{inverted_residual_forward.4} parent=35 // pred_check
          %p1157 = pneg %p176
        $region66: #{inverted_residual_forward.4} parent=35 // pred_check_branch
          %1159 = sbr.rel (%p1157) target = $region68
        $region67: #{inverted_residual_forward.4} parent=35 // pred_region
          %s1161 = ssub.s32 16, 16
          %1162 = vsyncadd [#allocation12], %s1161
          %s1164 = sshll.u32 [#allocation13], 4
          %s1165 = int_to_ptr.vmem [resolvable:$true] %s1164
          %1167 = dma.vmem_to_hbm [thread:$0]  %s1165, 16, %s6, [#allocation12]
        $region68: #{inverted_residual_forward.4} parent=35 // pred_fallthru
          _
        // Predicated region
        $region69: #{inverted_residual_forward.4} parent=35 // pred_check
          %p1168 = pneg %p155
        $region70: #{inverted_residual_forward.4} parent=35 // pred_check_branch
          %1170 = sbr.rel (%p1168) target = $region72
        $region71: #{inverted_residual_forward.4} parent=35 // pred_region
          %1171 = dma.done [#allocation12], 16
        $region72: #{inverted_residual_forward.4} parent=35 // pred_fallthru
          _
        // Predicated region
        $region73: #{inverted_residual_forward.4} parent=35 // pred_check
          %p1172 = pneg %p176
        $region74: #{inverted_residual_forward.4} parent=35 // pred_check_branch
          %1174 = sbr.rel (%p1172) target = $region76
        $region75: #{inverted_residual_forward.4} parent=35 // pred_region
          %1175 = dma.done [#allocation12], 16
        $region76: #{inverted_residual_forward.4} parent=35 // pred_fallthru
          _
      $region36: #{inverted_residual_forward.4} parent=5 // pred_fallthru
        _
      %p1176 = scmp.le.s32.totalorder 2, %s22
      // Predicated region
      $region77: #{inverted_residual_forward.4} parent=5 // pred_check
        %p1177 = pneg %p1176
      $region78: #{inverted_residual_forward.4} parent=5 // pred_check_branch
        %1179 = sbr.rel (%p1177) target = $region80
      $region79: #{inverted_residual_forward.4} parent=5 // pred_region
        %s1180 = ssub.s32 %s22, 2
        // Predicated region
        $region81: #{inverted_residual_forward.4} parent=79 // pred_check
          %p1181 = pneg %p140
        $region82: #{inverted_residual_forward.4} parent=79 // pred_check_branch
          %1183 = sbr.rel (%p1181) target = $region84
        $region83: #{inverted_residual_forward.4} parent=79 // pred_region
          %s1184 = sand.u32 %s125, 1
          %s1185 = scalar_lea.sflag [#allocation4], %s1184
          %s1186 = sand.u32 %s125, 1
          %s1187 = smul.addr %s1186, 256
          %s1188 = scalar_lea.vmem [#allocation10], %s1187
          %1189 = dma.done %s1185, 4096
        $region84: #{inverted_residual_forward.4} parent=79 // pred_fallthru
          _
      $region80: #{inverted_residual_forward.4} parent=5 // pred_fallthru
        _
    $region6: #{inverted_residual_forward.4} parent=1 // loop_footer
      %s26 = sadd.s32 1, %s22
    $region7: #{inverted_residual_forward.4} parent=1 // loop_footer_branch
      %21 = sbr.rel target = $region3
    $region8: #{inverted_residual_forward.4} parent=1 // loop_exit
      _
    %1190 = vsyncpa [#allocation3], 1
    %s1191 = scalar_lea.sflag [#allocation3], 1
    %1192 = vsyncpa %s1191, 1
    %1193 = vsyncpa [#allocation6], 1
    %1194 = vsyncpa [#allocation9], 1
    %1195 = vsyncpa [#allocation4], 1
    %s1196 = scalar_lea.sflag [#allocation4], 1
    %1197 = vsyncpa %s1196, 1
    %1198 = vsyncpa [#allocation12], 1

// kernel: inverted_residual_forward.3
$region0: #{inverted_residual_forward.3}
  #allocation0 [shape = 'u32[]', space=smem, size = 0x4, offset = 0x4, fixed_abs, tag = 'smem constant byte address 0x4 - core index']
  #allocation1 [shape = 'u32[144,128]{1,0:T(1,128)}', space=vmem, size = 0x12000, scoped, tag = 'internal scratch']
  %s0 = inlined_call_operand.hbm [shape: f32[2,17,16,4], index: 0, kind: input, shape index: {}]
  %s1 = inlined_call_operand.hbm [shape: f32[4,24], index: 1, kind: input, shape index: {}]
  %s2 = inlined_call_operand.hbm [shape: f32[1,24], index: 2, kind: input, shape index: {}]
  %s3 = inlined_call_operand.hbm [shape: f32[9,24], index: 3, kind: input, shape index: {}]
  %s4 = inlined_call_operand.hbm [shape: bf16[2,15,14,24], index: 4, kind: output, shape index: {0}]
  %s5 = inlined_call_operand.hbm [shape: f32[1,24], index: 5, kind: output, shape index: {1}]
  %s6 = inlined_call_operand.hbm [shape: f32[1,24], index: 6, kind: output, shape index: {2}]
  %7 = xla_tuple %s4, %s5, %s6
  %s8 = sld [smem:[#allocation0]]
  $region85: #{inverted_residual_forward.3} parent=0
    _
  %s10 = ssub.s32 1, %s8
  %s11 = scalar_select 0, %s10, %s8
  $region1: #{inverted_residual_forward.3} parent=0
    #allocation2 [shape = 'u8[278528]{0}', space=vmem, size = 0x44000, scoped, tag = 'input window, operand 0']
    #allocation3 [shape = 's32[2]{0}', space=sflag, size = 0x8, scoped, tag = 'scoped memory for inverted_residual_forward.3']
    #allocation4 [shape = 's32[2]{0}', space=sflag, size = 0x8, scoped, tag = 'scoped memory for inverted_residual_forward.3']
    #allocation5 [shape = 'u8[2048]{0}', space=vmem, size = 0x800, scoped, tag = 'input window, operand 1, single buffered']
    #allocation6 [shape = 's32[1]{0}', space=sflag, size = 0x4, scoped, tag = 'scoped memory for inverted_residual_forward.3']
    #allocation7 [shape = 'u8[512]{0}', space=vmem, size = 0x400, scoped, tag = 'input window, operand 2, single buffered']
    #allocation8 [shape = 'u8[8192]{0}', space=vmem, size = 0x2000, scoped, tag = 'input window, operand 3, single buffered']
    #allocation9 [shape = 's32[1]{0}', space=sflag, size = 0x4, scoped, tag = 'scoped memory for inverted_residual_forward.3']
    #allocation10 [shape = 'u8[122880]{0}', space=vmem, size = 0x1e000, scoped, tag = 'output window, operand 0']
    #allocation11 [shape = 'u8[512]{0}', space=vmem, size = 0x400, scoped, tag = 'output window, operand 1, single buffered']
    #allocation12 [shape = 's32[1]{0}', space=sflag, size = 0x4, scoped, tag = 'scoped memory for inverted_residual_forward.3']
    #allocation13 [shape = 'u8[512]{0}', space=vmem, size = 0x400, scoped, tag = 'output window, operand 2, single buffered']
    %12 = vsyncpa [#allocation3], 0
    %s13 = scalar_lea.sflag [#allocation3], 1
    %14 = vsyncpa %s13, 0
    %15 = vsyncpa [#allocation6], 0
    %16 = vsyncpa [#allocation9], 0
    %17 = vsyncpa [#allocation4], 0
    %s18 = scalar_lea.sflag [#allocation4], 1
    %19 = vsyncpa %s18, 0
    %20 = vsyncpa [#allocation12], 0
    loop: start=0, step=1, limit=4
    $region2: #{inverted_residual_forward.3} parent=1 // loop_pre_header
      _
    $region3: #{inverted_residual_forward.3} parent=1 // loop_header
      %s22 = sphi 0, %s26
      %p23 = scmp.ge.s32.totalorder %s22, 4
      %s32 = sphi 0, %s34
      %s35 = sphi 0, %s32
      %s36 = sphi 0, %s35
      %s52 = sphi 0, %s36
      %s56 = sphi 0, %s56
      %s58 = sphi 0, %s56
      %s59 = sphi 0, %s58
      %s73 = sphi 0, %s59
      %s77 = sphi 0, %s77
      %s79 = sphi 0, %s77
      %s80 = sphi 0, %s79
      %s94 = sphi 0, %s80
      %s98 = sphi 0, %s98
      %s100 = sphi 0, %s98
      %s101 = sphi 0, %s100
      %s115 = sphi 0, %s101
      %s121 = sphi 0, %s123
      %s124 = sphi 0, %s121
      %s125 = sphi 0, %s124
      %s141 = sphi 0, %s125
      %s145 = sphi 0, %s145
      %s147 = sphi 0, %s145
      %s148 = sphi 0, %s147
      %s162 = sphi 0, %s148
      %s166 = sphi 0, %s166
      %s168 = sphi 0, %s166
      %s169 = sphi 0, %s168
      %s183 = sphi 0, %s169
    $region4: #{inverted_residual_forward.3} parent=1 // loop_header_branch
      %25 = sbr.rel (%p23) target = $region8
    $region5: #{inverted_residual_forward.3} parent=1 // loop_body
      %s27 = ssub.s32 %s22, 1
      %s28 = ssub.s32 %s22, 2
      %s29 = sadd.s32 %s22, 1
      %s30 = ssub.s32 %s22, %s29
      %p31 = scmp.eq.s32.totalorder %s30, 0
      %s33 = sadd.s32 %s32, 1
      %s34 = scalar_select %p31, %s32, %s33
      %p37 = pneg %p31
      %p38 = scmp.eq.s32.totalorder %s22, 1
      %p39 = por %p37, %p38
      %p40 = scmp.ne.s32.totalorder %s32, %s35
      %p41 = scmp.eq.s32.totalorder %s22, 0
      %p42 = por %p40, %p41
      %p43 = scmp.ne.s32.totalorder %s32, %s35
      %p44 = scmp.eq.s32.totalorder %s27, 1
      %p45 = por %p43, %p44
      %p46 = scmp.ne.s32.totalorder %s35, %s36
      %p47 = scmp.eq.s32.totalorder %s27, 0
      %p48 = por %p46, %p47
      %p49 = scmp.ne.s32.totalorder %s35, %s36
      %p50 = scmp.eq.s32.totalorder %s28, 1
      %p51 = por %p49, %p50
      %p53 = scmp.ne.s32.totalorder %s36, %s52
      %p54 = scmp.eq.s32.totalorder %s28, 0
      %p55 = por %p53, %p54
      %s57 = sadd.s32 %s56, 1
      %p60 = scmp.eq.s32.totalorder %s22, 1
      %p61 = scmp.ne.s32.totalorder %s56, %s58
      %p62 = scmp.eq.s32.totalorder %s22, 0
      %p63 = por %p61, %p62
      %p64 = scmp.ne.s32.totalorder %s56, %s58
      %p65 = scmp.eq.s32.totalorder %s27, 1
      %p66 = por %p64, %p65
      %p67 = scmp.ne.s32.totalorder %s58, %s59
      %p68 = scmp.eq.s32.totalorder %s27, 0
      %p69 = por %p67, %p68
      %p70 = scmp.ne.s32.totalorder %s58, %s59
      %p71 = scmp.eq.s32.totalorder %s28, 1
      %p72 = por %p70, %p71
      %p74 = scmp.ne.s32.totalorder %s59, %s73
      %p75 = scmp.eq.s32.totalorder %s28, 0
      %p76 = por %p74, %p75
      %s78 = sadd.s32 %s77, 1
      %p81 = scmp.eq.s32.totalorder %s22, 1
      %p82 = scmp.ne.s32.totalorder %s77, %s79
      %p83 = scmp.eq.s32.totalorder %s22, 0
      %p84 = por %p82, %p83
      %p85 = scmp.ne.s32.totalorder %s77, %s79
      %p86 = scmp.eq.s32.totalorder %s27, 1
      %p87 = por %p85, %p86
      %p88 = scmp.ne.s32.totalorder %s79, %s80
      %p89 = scmp.eq.s32.totalorder %s27, 0
      %p90 = por %p88, %p89
      %p91 = scmp.ne.s32.totalorder %s79, %s80
      %p92 = scmp.eq.s32.totalorder %s28, 1
      %p93 = por %p91, %p92
      %p95 = scmp.ne.s32.totalorder %s80, %s94
      %p96 = scmp.eq.s32.totalorder %s28, 0
      %p97 = por %p95, %p96
      %s99 = sadd.s32 %s98, 1
      %p102 = scmp.eq.s32.totalorder %s22, 1
      %p103 = scmp.ne.s32.totalorder %s98, %s100
      %p104 = scmp.eq.s32.totalorder %s22, 0
      %p105 = por %p103, %p104
      %p106 = scmp.ne.s32.totalorder %s98, %s100
      %p107 = scmp.eq.s32.totalorder %s27, 1
      %p108 = por %p106, %p107
      %p109 = scmp.ne.s32.totalorder %s100, %s101
      %p110 = scmp.eq.s32.totalorder %s27, 0
      %p111 = por %p109, %p110
      %p112 = scmp.ne.s32.totalorder %s100, %s101
      %p113 = scmp.eq.s32.totalorder %s28, 1
      %p114 = por %p112, %p113
      %p116 = scmp.ne.s32.totalorder %s101, %s115
      %p117 = scmp.eq.s32.totalorder %s28, 0
      %p118 = por %p116, %p117
      %s119 = ssub.s32 %s22, %s29
      %p120 = scmp.eq.s32.totalorder %s119, 0
      %s122 = sadd.s32 %s121, 1
      %s123 = scalar_select %p120, %s121, %s122
      %p126 = pneg %p120
      %p127 = scmp.eq.s32.totalorder %s22, 1
      %p128 = por %p126, %p127
      %p129 = scmp.ne.s32.totalorder %s121, %s124
      %p130 = scmp.eq.s32.totalorder %s22, 0
      %p131 = por %p129, %p130
      %p132 = scmp.ne.s32.totalorder %s121, %s124
      %p133 = scmp.eq.s32.totalorder %s27, 1
      %p134 = por %p132, %p133
      %p135 = scmp.ne.s32.totalorder %s124, %s125
      %p136 = scmp.eq.s32.totalorder %s27, 0
      %p137 = por %p135, %p136
      %p138 = scmp.ne.s32.totalorder %s124, %s125
      %p139 = scmp.eq.s32.totalorder %s28, 1
      %p140 = por %p138, %p139
      %p142 = scmp.ne.s32.totalorder %s125, %s141
      %p143 = scmp.eq.s32.totalorder %s28, 0
      %p144 = por %p142, %p143
      %s146 = sadd.s32 %s145, 1
      %p149 = scmp.eq.s32.totalorder %s22, 1
      %p150 = scmp.ne.s32.totalorder %s145, %s147
      %p151 = scmp.eq.s32.totalorder %s22, 0
      %p152 = por %p150, %p151
      %p153 = scmp.ne.s32.totalorder %s145, %s147
      %p154 = scmp.eq.s32.totalorder %s27, 1
      %p155 = por %p153, %p154
      %p156 = scmp.ne.s32.totalorder %s147, %s148
      %p157 = scmp.eq.s32.totalorder %s27, 0
      %p158 = por %p156, %p157
      %p159 = scmp.ne.s32.totalorder %s147, %s148
      %p160 = scmp.eq.s32.totalorder %s28, 1
      %p161 = por %p159, %p160
      %p163 = scmp.ne.s32.totalorder %s148, %s162
      %p164 = scmp.eq.s32.totalorder %s28, 0
      %p165 = por %p163, %p164
      %s167 = sadd.s32 %s166, 1
      %p170 = scmp.eq.s32.totalorder %s22, 1
      %p171 = scmp.ne.s32.totalorder %s166, %s168
      %p172 = scmp.eq.s32.totalorder %s22, 0
      %p173 = por %p171, %p172
      %p174 = scmp.ne.s32.totalorder %s166, %s168
      %p175 = scmp.eq.s32.totalorder %s27, 1
      %p176 = por %p174, %p175
      %p177 = scmp.ne.s32.totalorder %s168, %s169
      %p178 = scmp.eq.s32.totalorder %s27, 0
      %p179 = por %p177, %p178
      %p180 = scmp.ne.s32.totalorder %s168, %s169
      %p181 = scmp.eq.s32.totalorder %s28, 1
      %p182 = por %p180, %p181
      %p184 = scmp.ne.s32.totalorder %s169, %s183
      %p185 = scmp.eq.s32.totalorder %s28, 0
      %p186 = por %p184, %p185
      %p187 = scmp.le.s32.totalorder 1, %s22
      %p188 = scmp.lt.s32.totalorder %s22, 3
      %p189 = pnand %p187, %p188
      %p190 = pneg %p189
      // Predicated region
      $region9: #{inverted_residual_forward.3} parent=5 // pred_check
        _
      $region10: #{inverted_residual_forward.3} parent=5 // pred_check_branch
        %192 = sbr.rel (%p189) target = $region12
      $region11: #{inverted_residual_forward.3} parent=5 // pred_region
        %s193 = ssub.s32 %s22, 1
        // Predicated region
        $region13: #{inverted_residual_forward.3} parent=11 // pred_check
          %p194 = pneg %p69
        $region14: #{inverted_residual_forward.3} parent=11 // pred_check_branch
          %196 = sbr.rel (%p194) target = $region16
        $region15: #{inverted_residual_forward.3} parent=11 // pred_region
          %s198 = ssub.s32 64, 64
          %199 = vsyncadd [#allocation6], %s198
          %s201 = sshll.u32 [#allocation5], 4
          %s202 = int_to_ptr.vmem [resolvable:$true] %s201
          %204 = dma.hbm_to_vmem [thread:$0]  %s1, 64, %s202, [#allocation6]
        $region16: #{inverted_residual_forward.3} parent=11 // pred_fallthru
          _
        // Predicated region
        $region17: #{inverted_residual_forward.3} parent=11 // pred_check
          %p205 = pneg %p90
        $region18: #{inverted_residual_forward.3} parent=11 // pred_check_branch
          %207 = sbr.rel (%p205) target = $region20
        $region19: #{inverted_residual_forward.3} parent=11 // pred_region
          %s209 = ssub.s32 16, 16
          %210 = vsyncadd [#allocation6], %s209
          %s212 = sshll.u32 [#allocation7], 4
          %s213 = int_to_ptr.vmem [resolvable:$true] %s212
          %215 = dma.hbm_to_vmem [thread:$0]  %s2, 16, %s213, [#allocation6]
        $region20: #{inverted_residual_forward.3} parent=11 // pred_fallthru
          _
        // Predicated region
        $region21: #{inverted_residual_forward.3} parent=11 // pred_check
          %p216 = pneg %p111
        $region22: #{inverted_residual_forward.3} parent=11 // pred_check_branch
          %218 = sbr.rel (%p216) target = $region24
        $region23: #{inverted_residual_forward.3} parent=11 // pred_region
          %s220 = ssub.s32 256, 256
          %221 = vsyncadd [#allocation9], %s220
          %s222 = sshll.u32 [#allocation8], 4
          %s223 = int_to_ptr.vmem [resolvable:$true] %s222
          %228 = dma.hbm_to_vmem [thread:$0]  %s3, 256, %s223, [#allocation9], 128, 128, 8
        $region24: #{inverted_residual_forward.3} parent=11 // pred_fallthru
          _
      $region12: #{inverted_residual_forward.3} parent=5 // pred_fallthru
        _
      %p229 = scmp.lt.s32.totalorder %s22, 2
      // Predicated region
      $region25: #{inverted_residual_forward.3} parent=5 // pred_check
        %p230 = pneg %p229
      $region26: #{inverted_residual_forward.3} parent=5 // pred_check_branch
        %232 = sbr.rel (%p230) target = $region28
      $region27: #{inverted_residual_forward.3} parent=5 // pred_region
        // Predicated region
        $region29: #{inverted_residual_forward.3} parent=27 // pred_check
          %p233 = pneg %p42
        $region30: #{inverted_residual_forward.3} parent=27 // pred_check_branch
          %235 = sbr.rel (%p233) target = $region32
        $region31: #{inverted_residual_forward.3} parent=27 // pred_region
          %s236 = sand.u32 %s32, 1
          %s237 = scalar_lea.sflag [#allocation3], %s236
          %s238 = sand.u32 %s32, 1
          %s239 = smul.addr %s238, 272
          %s240 = scalar_lea.vmem [#allocation2], %s239
          %s242 = ssub.s32 4352, 4352
          %243 = vsyncadd %s237, %s242
          %s244 = smul.addr %s22, 34
          %s245 = smul.addr %s244, 128
          %s246 = scalar_lea.hbm %s0, %s245
          %s247 = sshll.u32 %s240, 4
          %s248 = int_to_ptr.vmem [resolvable:$true] %s247
          %253 = dma.hbm_to_vmem [thread:$0]  %s246, 4352, %s248, %s237, 128, 128, 8
        $region32: #{inverted_residual_forward.3} parent=27 // pred_fallthru
          _
      $region28: #{inverted_residual_forward.3} parent=5 // pred_fallthru
        _
      %p254 = scmp.le.s32.totalorder 1, %s22
      %p255 = scmp.lt.s32.totalorder %s22, 3
      %p256 = pnand %p254, %p255
      %p257 = pneg %p256
      // Predicated region
      $region33: #{inverted_residual_forward.3} parent=5 // pred_check
        _
      $region34: #{inverted_residual_forward.3} parent=5 // pred_check_branch
        %259 = sbr.rel (%p256) target = $region36
      $region35: #{inverted_residual_forward.3} parent=5 // pred_region
        %s260 = ssub.s32 %s22, 1
        %s261 = sand.u32 %s35, 1
        %s262 = scalar_lea.sflag [#allocation3], %s261
        %s263 = sand.u32 %s35, 1
        %s264 = smul.addr %s263, 272
        %s265 = scalar_lea.vmem [#allocation2], %s264
        // Predicated region
        $region37: #{inverted_residual_forward.3} parent=35 // pred_check
          %p266 = pneg %p48
        $region38: #{inverted_residual_forward.3} parent=35 // pred_check_branch
          %268 = sbr.rel (%p266) target = $region40
        $region39: #{inverted_residual_forward.3} parent=35 // pred_region
          %269 = dma.done %s262, 4352
        $region40: #{inverted_residual_forward.3} parent=35 // pred_fallthru
          _
        // Predicated region
        $region41: #{inverted_residual_forward.3} parent=35 // pred_check
          %p270 = pneg %p69
        $region42: #{inverted_residual_forward.3} parent=35 // pred_check_branch
          %272 = sbr.rel (%p270) target = $region44
        $region43: #{inverted_residual_forward.3} parent=35 // pred_region
          %273 = dma.done [#allocation6], 64
        $region44: #{inverted_residual_forward.3} parent=35 // pred_fallthru
          _
        // Predicated region
        $region45: #{inverted_residual_forward.3} parent=35 // pred_check
          %p274 = pneg %p90
        $region46: #{inverted_residual_forward.3} parent=35 // pred_check_branch
          %276 = sbr.rel (%p274) target = $region48
        $region47: #{inverted_residual_forward.3} parent=35 // pred_region
          %277 = dma.done [#allocation6], 16
        $region48: #{inverted_residual_forward.3} parent=35 // pred_fallthru
          _
        // Predicated region
        $region49: #{inverted_residual_forward.3} parent=35 // pred_check
          %p278 = pneg %p111
        $region50: #{inverted_residual_forward.3} parent=35 // pred_check_branch
          %280 = sbr.rel (%p278) target = $region52
        $region51: #{inverted_residual_forward.3} parent=35 // pred_region
          %281 = dma.done [#allocation9], 256
        $region52: #{inverted_residual_forward.3} parent=35 // pred_fallthru
          _
        %s282 = sand.u32 %s35, 1
        %s283 = scalar_lea.sflag [#allocation3], %s282
        %s284 = sand.u32 %s35, 1
        %s285 = smul.addr %s284, 272
        %s286 = scalar_lea.vmem [#allocation2], %s285
        %p287 = pneg %p48
        %p288 = pneg %p45
        %p289 = pneg %p69
        %p290 = pneg %p66
        %p291 = pneg %p90
        %p292 = pneg %p87
        %p293 = pneg %p111
        %p294 = pneg %p108
        %p295 = pneg %p137
        %p296 = pneg %p134
        %s297 = sand.u32 %s124, 1
        %s298 = scalar_lea.sflag [#allocation4], %s297
        %s299 = sand.u32 %s124, 1
        %s300 = smul.addr %s299, 120
        %s301 = scalar_lea.vmem [#allocation10], %s300
        %p302 = pneg %p158
        %p303 = pneg %p155
        %p304 = pneg %p179
        %p305 = pneg %p176
        %v306 = vld [vmem:[%s265] sm:$0xff]
        %v307 = vld [vmem:[%s265 + $0x8] sm:$0xff]
        %v308 = vld [vmem:[%s265 + $0x10] sm:$0xff]
        %v309 = vld [vmem:[%s265 + $0x18] sm:$0xff]
        %v310 = vld [vmem:[%s265 + $0x20] sm:$0xff]
        %v311 = vld [vmem:[%s265 + $0x28] sm:$0xff]
        %v312 = vld [vmem:[%s265 + $0x30] sm:$0xff]
        %v313 = vld [vmem:[%s265 + $0x38] sm:$0xff]
        %v314 = vld [vmem:[%s265 + $0x40] sm:$0xff]
        %v315 = vld [vmem:[%s265 + $0x48] sm:$0xff]
        %v316 = vld [vmem:[%s265 + $0x50] sm:$0xff]
        %v317 = vld [vmem:[%s265 + $0x58] sm:$0xff]
        %v318 = vld [vmem:[%s265 + $0x60] sm:$0xff]
        %v319 = vld [vmem:[%s265 + $0x68] sm:$0xff]
        %v320 = vld [vmem:[%s265 + $0x70] sm:$0xff]
        %v321 = vld [vmem:[%s265 + $0x78] sm:$0xff]
        %v322 = vld [vmem:[%s265 + $0x80] sm:$0xff]
        %v323 = vld [vmem:[%s265 + $0x88] sm:$0xff]
        %v324 = vld [vmem:[%s265 + $0x90] sm:$0xff]
        %v325 = vld [vmem:[%s265 + $0x98] sm:$0xff]
        %v326 = vld [vmem:[%s265 + $0xa0] sm:$0xff]
        %v327 = vld [vmem:[%s265 + $0xa8] sm:$0xff]
        %v328 = vld [vmem:[%s265 + $0xb0] sm:$0xff]
        %v329 = vld [vmem:[%s265 + $0xb8] sm:$0xff]
        %v330 = vld [vmem:[%s265 + $0xc0] sm:$0xff]
        %v331 = vld [vmem:[%s265 + $0xc8] sm:$0xff]
        %v332 = vld [vmem:[%s265 + $0xd0] sm:$0xff]
        %v333 = vld [vmem:[%s265 + $0xd8] sm:$0xff]
        %v334 = vld [vmem:[%s265 + $0xe0] sm:$0xff]
        %v335 = vld [vmem:[%s265 + $0xe8] sm:$0xff]
        %v336 = vld [vmem:[%s265 + $0xf0] sm:$0xff]
        %v337 = vld [vmem:[%s265 + $0xf8] sm:$0xff]
        %v338 = vld [vmem:[%s265 + $0x100] sm:$0xff]
        %v339 = vld [vmem:[%s265 + $0x108] sm:$0xff]
        %v340 = vld [vmem:[#allocation5] sm:$0xf]
        %v341 = vld [vmem:[#allocation7] sm:$0x1]
        %v343 = vlaneseq
        %v344 = vshrl.u32 %v343, 7
        %v345 = vsub.s32 0, %v344
        %v346 = vrot.slane %v341, %v345
        %v348 = vadd.f32 %v346, 0.0
        %350 = vset.pattern.permute.xlu0 0
        %351 = vperm.xlu0 %350, %v306
        %v352 = vpop.permute.xlu0 %351
        %355 = vset.pattern.permute.xlu0 0
        %356 = vperm.xlu0 %355, %v307
        %v357 = vpop.permute.xlu0 %356
        %360 = vset.pattern.permute.xlu0 0
        %361 = vperm.xlu0 %360, %v308
        %v362 = vpop.permute.xlu0 %361
        %365 = vset.pattern.permute.xlu0 0
        %366 = vperm.xlu0 %365, %v309
        %v367 = vpop.permute.xlu0 %366
        %370 = vset.pattern.permute.xlu0 0
        %371 = vperm.xlu0 %370, %v310
        %v372 = vpop.permute.xlu0 %371
        %375 = vset.pattern.permute.xlu0 0
        %376 = vperm.xlu0 %375, %v311
        %v377 = vpop.permute.xlu0 %376
        %380 = vset.pattern.permute.xlu0 0
        %381 = vperm.xlu0 %380, %v312
        %v382 = vpop.permute.xlu0 %381
        %385 = vset.pattern.permute.xlu0 0
        %386 = vperm.xlu0 %385, %v313
        %v387 = vpop.permute.xlu0 %386
        %390 = vset.pattern.permute.xlu0 0
        %391 = vperm.xlu0 %390, %v314
        %v392 = vpop.permute.xlu0 %391
        %395 = vset.pattern.permute.xlu0 0
        %396 = vperm.xlu0 %395, %v315
        %v397 = vpop.permute.xlu0 %396
        %400 = vset.pattern.permute.xlu0 0
        %401 = vperm.xlu0 %400, %v316
        %v402 = vpop.permute.xlu0 %401
        %405 = vset.pattern.permute.xlu0 0
        %406 = vperm.xlu0 %405, %v317
        %v407 = vpop.permute.xlu0 %406
        %410 = vset.pattern.permute.xlu0 0
        %411 = vperm.xlu0 %410, %v318
        %v412 = vpop.permute.xlu0 %411
        %415 = vset.pattern.permute.xlu0 0
        %416 = vperm.xlu0 %415, %v319
        %v417 = vpop.permute.xlu0 %416
        %420 = vset.pattern.permute.xlu0 0
        %421 = vperm.xlu0 %420, %v320
        %v422 = vpop.permute.xlu0 %421
        %425 = vset.pattern.permute.xlu0 0
        %426 = vperm.xlu0 %425, %v321
        %v427 = vpop.permute.xlu0 %426
        %430 = vset.pattern.permute.xlu0 0
        %431 = vperm.xlu0 %430, %v322
        %v432 = vpop.permute.xlu0 %431
        %435 = vset.pattern.permute.xlu0 0
        %436 = vperm.xlu0 %435, %v323
        %v437 = vpop.permute.xlu0 %436
        %440 = vset.pattern.permute.xlu0 0
        %441 = vperm.xlu0 %440, %v324
        %v442 = vpop.permute.xlu0 %441
        %445 = vset.pattern.permute.xlu0 0
        %446 = vperm.xlu0 %445, %v325
        %v447 = vpop.permute.xlu0 %446
        %450 = vset.pattern.permute.xlu0 0
        %451 = vperm.xlu0 %450, %v326
        %v452 = vpop.permute.xlu0 %451
        %455 = vset.pattern.permute.xlu0 0
        %456 = vperm.xlu0 %455, %v327
        %v457 = vpop.permute.xlu0 %456
        %460 = vset.pattern.permute.xlu0 0
        %461 = vperm.xlu0 %460, %v328
        %v462 = vpop.permute.xlu0 %461
        %465 = vset.pattern.permute.xlu0 0
        %466 = vperm.xlu0 %465, %v329
        %v467 = vpop.permute.xlu0 %466
        %470 = vset.pattern.permute.xlu0 0
        %471 = vperm.xlu0 %470, %v330
        %v472 = vpop.permute.xlu0 %471
        %475 = vset.pattern.permute.xlu0 0
        %476 = vperm.xlu0 %475, %v331
        %v477 = vpop.permute.xlu0 %476
        %480 = vset.pattern.permute.xlu0 0
        %481 = vperm.xlu0 %480, %v332
        %v482 = vpop.permute.xlu0 %481
        %485 = vset.pattern.permute.xlu0 0
        %486 = vperm.xlu0 %485, %v333
        %v487 = vpop.permute.xlu0 %486
        %490 = vset.pattern.permute.xlu0 0
        %491 = vperm.xlu0 %490, %v334
        %v492 = vpop.permute.xlu0 %491
        %495 = vset.pattern.permute.xlu0 0
        %496 = vperm.xlu0 %495, %v335
        %v497 = vpop.permute.xlu0 %496
        %500 = vset.pattern.permute.xlu0 0
        %501 = vperm.xlu0 %500, %v336
        %v502 = vpop.permute.xlu0 %501
        %505 = vset.pattern.permute.xlu0 0
        %506 = vperm.xlu0 %505, %v337
        %v507 = vpop.permute.xlu0 %506
        %510 = vset.pattern.permute.xlu0 0
        %511 = vperm.xlu0 %510, %v338
        %v512 = vpop.permute.xlu0 %511
        %515 = vset.pattern.permute.xlu0 0
        %516 = vperm.xlu0 %515, %v339
        %v517 = vpop.permute.xlu0 %516
        %v519 = vlaneseq
        %v520 = vshrl.u32 %v519, 7
        %v521 = vsub.s32 0, %v520
        %v522 = vrot.slane %v340, %v521
        %v523 = vmul.f32 %v352, %v522
        %v524 = vmul.f32 %v357, %v522
        %v525 = vmul.f32 %v362, %v522
        %v526 = vmul.f32 %v367, %v522
        %v527 = vmul.f32 %v372, %v522
        %v528 = vmul.f32 %v377, %v522
        %v529 = vmul.f32 %v382, %v522
        %v530 = vmul.f32 %v387, %v522
        %v531 = vmul.f32 %v392, %v522
        %v532 = vmul.f32 %v397, %v522
        %v533 = vmul.f32 %v402, %v522
        %v534 = vmul.f32 %v407, %v522
        %v535 = vmul.f32 %v412, %v522
        %v536 = vmul.f32 %v417, %v522
        %v537 = vmul.f32 %v422, %v522
        %v538 = vmul.f32 %v427, %v522
        %v539 = vmul.f32 %v432, %v522
        %v540 = vmul.f32 %v437, %v522
        %v541 = vmul.f32 %v442, %v522
        %v542 = vmul.f32 %v447, %v522
        %v543 = vmul.f32 %v452, %v522
        %v544 = vmul.f32 %v457, %v522
        %v545 = vmul.f32 %v462, %v522
        %v546 = vmul.f32 %v467, %v522
        %v547 = vmul.f32 %v472, %v522
        %v548 = vmul.f32 %v477, %v522
        %v549 = vmul.f32 %v482, %v522
        %v550 = vmul.f32 %v487, %v522
        %v551 = vmul.f32 %v492, %v522
        %v552 = vmul.f32 %v497, %v522
        %v553 = vmul.f32 %v502, %v522
        %v554 = vmul.f32 %v507, %v522
        %v555 = vmul.f32 %v512, %v522
        %v556 = vmul.f32 %v517, %v522
        %v557 = vadd.f32 %v348, %v523
        %v558 = vadd.f32 %v348, %v524
        %v559 = vadd.f32 %v348, %v525
        %v560 = vadd.f32 %v348, %v526
        %v561 = vadd.f32 %v348, %v527
        %v562 = vadd.f32 %v348, %v528
        %v563 = vadd.f32 %v348, %v529
        %v564 = vadd.f32 %v348, %v530
        %v565 = vadd.f32 %v348, %v531
        %v566 = vadd.f32 %v348, %v532
        %v567 = vadd.f32 %v348, %v533
        %v568 = vadd.f32 %v348, %v534
        %v569 = vadd.f32 %v348, %v535
        %v570 = vadd.f32 %v348, %v536
        %v571 = vadd.f32 %v348, %v537
        %v572 = vadd.f32 %v348, %v538
        %v573 = vadd.f32 %v348, %v539
        %v574 = vadd.f32 %v348, %v540
        %v575 = vadd.f32 %v348, %v541
        %v576 = vadd.f32 %v348, %v542
        %v577 = vadd.f32 %v348, %v543
        %v578 = vadd.f32 %v348, %v544
        %v579 = vadd.f32 %v348, %v545
        %v580 = vadd.f32 %v348, %v546
        %v581 = vadd.f32 %v348, %v547
        %v582 = vadd.f32 %v348, %v548
        %v583 = vadd.f32 %v348, %v549
        %v584 = vadd.f32 %v348, %v550
        %v585 = vadd.f32 %v348, %v551
        %v586 = vadd.f32 %v348, %v552
        %v587 = vadd.f32 %v348, %v553
        %v588 = vadd.f32 %v348, %v554
        %v589 = vadd.f32 %v348, %v555
        %v590 = vadd.f32 %v348, %v556
        %591 = vset.pattern.permute.xlu0 1
        %592 = vperm.xlu0 %591, %v306
        %v593 = vpop.permute.xlu0 %592
        %595 = vset.pattern.permute.xlu0 1
        %596 = vperm.xlu0 %595, %v307
        %v597 = vpop.permute.xlu0 %596
        %599 = vset.pattern.permute.xlu0 1
        %600 = vperm.xlu0 %599, %v308
        %v601 = vpop.permute.xlu0 %600
        %603 = vset.pattern.permute.xlu0 1
        %604 = vperm.xlu0 %603, %v309
        %v605 = vpop.permute.xlu0 %604
        %607 = vset.pattern.permute.xlu0 1
        %608 = vperm.xlu0 %607, %v310
        %v609 = vpop.permute.xlu0 %608
        %611 = vset.pattern.permute.xlu0 1
        %612 = vperm.xlu0 %611, %v311
        %v613 = vpop.permute.xlu0 %612
        %615 = vset.pattern.permute.xlu0 1
        %616 = vperm.xlu0 %615, %v312
        %v617 = vpop.permute.xlu0 %616
        %619 = vset.pattern.permute.xlu0 1
        %620 = vperm.xlu0 %619, %v313
        %v621 = vpop.permute.xlu0 %620
        %623 = vset.pattern.permute.xlu0 1
        %624 = vperm.xlu0 %623, %v314
        %v625 = vpop.permute.xlu0 %624
        %627 = vset.pattern.permute.xlu0 1
        %628 = vperm.xlu0 %627, %v315
        %v629 = vpop.permute.xlu0 %628
        %631 = vset.pattern.permute.xlu0 1
        %632 = vperm.xlu0 %631, %v316
        %v633 = vpop.permute.xlu0 %632
        %635 = vset.pattern.permute.xlu0 1
        %636 = vperm.xlu0 %635, %v317
        %v637 = vpop.permute.xlu0 %636
        %639 = vset.pattern.permute.xlu0 1
        %640 = vperm.xlu0 %639, %v318
        %v641 = vpop.permute.xlu0 %640
        %643 = vset.pattern.permute.xlu0 1
        %644 = vperm.xlu0 %643, %v319
        %v645 = vpop.permute.xlu0 %644
        %647 = vset.pattern.permute.xlu0 1
        %648 = vperm.xlu0 %647, %v320
        %v649 = vpop.permute.xlu0 %648
        %651 = vset.pattern.permute.xlu0 1
        %652 = vperm.xlu0 %651, %v321
        %v653 = vpop.permute.xlu0 %652
        %655 = vset.pattern.permute.xlu0 1
        %656 = vperm.xlu0 %655, %v322
        %v657 = vpop.permute.xlu0 %656
        %659 = vset.pattern.permute.xlu0 1
        %660 = vperm.xlu0 %659, %v323
        %v661 = vpop.permute.xlu0 %660
        %663 = vset.pattern.permute.xlu0 1
        %664 = vperm.xlu0 %663, %v324
        %v665 = vpop.permute.xlu0 %664
        %667 = vset.pattern.permute.xlu0 1
        %668 = vperm.xlu0 %667, %v325
        %v669 = vpop.permute.xlu0 %668
        %671 = vset.pattern.permute.xlu0 1
        %672 = vperm.xlu0 %671, %v326
        %v673 = vpop.permute.xlu0 %672
        %675 = vset.pattern.permute.xlu0 1
        %676 = vperm.xlu0 %675, %v327
        %v677 = vpop.permute.xlu0 %676
        %679 = vset.pattern.permute.xlu0 1
        %680 = vperm.xlu0 %679, %v328
        %v681 = vpop.permute.xlu0 %680
        %683 = vset.pattern.permute.xlu0 1
        %684 = vperm.xlu0 %683, %v329
        %v685 = vpop.permute.xlu0 %684
        %687 = vset.pattern.permute.xlu0 1
        %688 = vperm.xlu0 %687, %v330
        %v689 = vpop.permute.xlu0 %688
        %691 = vset.pattern.permute.xlu0 1
        %692 = vperm.xlu0 %691, %v331
        %v693 = vpop.permute.xlu0 %692
        %695 = vset.pattern.permute.xlu0 1
        %696 = vperm.xlu0 %695, %v332
        %v697 = vpop.permute.xlu0 %696
        %699 = vset.pattern.permute.xlu0 1
        %700 = vperm.xlu0 %699, %v333
        %v701 = vpop.permute.xlu0 %700
        %703 = vset.pattern.permute.xlu0 1
        %704 = vperm.xlu0 %703, %v334
        %v705 = vpop.permute.xlu0 %704
        %707 = vset.pattern.permute.xlu0 1
        %708 = vperm.xlu0 %707, %v335
        %v709 = vpop.permute.xlu0 %708
        %711 = vset.pattern.permute.xlu0 1
        %712 = vperm.xlu0 %711, %v336
        %v713 = vpop.permute.xlu0 %712
        %715 = vset.pattern.permute.xlu0 1
        %716 = vperm.xlu0 %715, %v337
        %v717 = vpop.permute.xlu0 %716
        %719 = vset.pattern.permute.xlu0 1
        %720 = vperm.xlu0 %719, %v338
        %v721 = vpop.permute.xlu0 %720
        %723 = vset.pattern.permute.xlu0 1
        %724 = vperm.xlu0 %723, %v339
        %v725 = vpop.permute.xlu0 %724
        %v727 = vlaneseq
        %v728 = vshrl.u32 %v727, 7
        %v729 = vsub.s32 1, %v728
        %v730 = vrot.slane %v340, %v729
        %v731 = vmul.f32 %v593, %v730
        %v732 = vmul.f32 %v597, %v730
        %v733 = vmul.f32 %v601, %v730
        %v734 = vmul.f32 %v605, %v730
        %v735 = vmul.f32 %v609, %v730
        %v736 = vmul.f32 %v613, %v730
        %v737 = vmul.f32 %v617, %v730
        %v738 = vmul.f32 %v621, %v730
        %v739 = vmul.f32 %v625, %v730
        %v740 = vmul.f32 %v629, %v730
        %v741 = vmul.f32 %v633, %v730
        %v742 = vmul.f32 %v637, %v730
        %v743 = vmul.f32 %v641, %v730
        %v744 = vmul.f32 %v645, %v730
        %v745 = vmul.f32 %v649, %v730
        %v746 = vmul.f32 %v653, %v730
        %v747 = vmul.f32 %v657, %v730
        %v748 = vmul.f32 %v661, %v730
        %v749 = vmul.f32 %v665, %v730
        %v750 = vmul.f32 %v669, %v730
        %v751 = vmul.f32 %v673, %v730
        %v752 = vmul.f32 %v677, %v730
        %v753 = vmul.f32 %v681, %v730
        %v754 = vmul.f32 %v685, %v730
        %v755 = vmul.f32 %v689, %v730
        %v756 = vmul.f32 %v693, %v730
        %v757 = vmul.f32 %v697, %v730
        %v758 = vmul.f32 %v701, %v730
        %v759 = vmul.f32 %v705, %v730
        %v760 = vmul.f32 %v709, %v730
        %v761 = vmul.f32 %v713, %v730
        %v762 = vmul.f32 %v717, %v730
        %v763 = vmul.f32 %v721, %v730
        %v764 = vmul.f32 %v725, %v730
        %v765 = vadd.f32 %v557, %v731
        %v766 = vadd.f32 %v558, %v732
        %v767 = vadd.f32 %v559, %v733
        %v768 = vadd.f32 %v560, %v734
        %v769 = vadd.f32 %v561, %v735
        %v770 = vadd.f32 %v562, %v736
        %v771 = vadd.f32 %v563, %v737
        %v772 = vadd.f32 %v564, %v738
        %v773 = vadd.f32 %v565, %v739
        %v774 = vadd.f32 %v566, %v740
        %v775 = vadd.f32 %v567, %v741
        %v776 = vadd.f32 %v568, %v742
        %v777 = vadd.f32 %v569, %v743
        %v778 = vadd.f32 %v570, %v744
        %v779 = vadd.f32 %v571, %v745
        %v780 = vadd.f32 %v572, %v746
        %v781 = vadd.f32 %v573, %v747
        %v782 = vadd.f32 %v574, %v748
        %v783 = vadd.f32 %v575, %v749
        %v784 = vadd.f32 %v576, %v750
        %v785 = vadd.f32 %v577, %v751
        %v786 = vadd.f32 %v578, %v752
        %v787 = vadd.f32 %v579, %v753
        %v788 = vadd.f32 %v580, %v754
        %v789 = vadd.f32 %v581, %v755
        %v790 = vadd.f32 %v582, %v756
        %v791 = vadd.f32 %v583, %v757
        %v792 = vadd.f32 %v584, %v758
        %v793 = vadd.f32 %v585, %v759
        %v794 = vadd.f32 %v586, %v760
        %v795 = vadd.f32 %v587, %v761
        %v796 = vadd.f32 %v588, %v762
        %v797 = vadd.f32 %v589, %v763
        %v798 = vadd.f32 %v590, %v764
        %799 = vset.pattern.permute.xlu0 2
        %800 = vperm.xlu0 %799, %v306
        %v801 = vpop.permute.xlu0 %800
        %803 = vset.pattern.permute.xlu0 2
        %804 = vperm.xlu0 %803, %v307
        %v805 = vpop.permute.xlu0 %804
        %807 = vset.pattern.permute.xlu0 2
        %808 = vperm.xlu0 %807, %v308
        %v809 = vpop.permute.xlu0 %808
        %811 = vset.pattern.permute.xlu0 2
        %812 = vperm.xlu0 %811, %v309
        %v813 = vpop.permute.xlu0 %812
        %815 = vset.pattern.permute.xlu0 2
        %816 = vperm.xlu0 %815, %v310
        %v817 = vpop.permute.xlu0 %816
        %819 = vset.pattern.permute.xlu0 2
        %820 = vperm.xlu0 %819, %v311
        %v821 = vpop.permute.xlu0 %820
        %823 = vset.pattern.permute.xlu0 2
        %824 = vperm.xlu0 %823, %v312
        %v825 = vpop.permute.xlu0 %824
        %827 = vset.pattern.permute.xlu0 2
        %828 = vperm.xlu0 %827, %v313
        %v829 = vpop.permute.xlu0 %828
        %831 = vset.pattern.permute.xlu0 2
        %832 = vperm.xlu0 %831, %v314
        %v833 = vpop.permute.xlu0 %832
        %835 = vset.pattern.permute.xlu0 2
        %836 = vperm.xlu0 %835, %v315
        %v837 = vpop.permute.xlu0 %836
        %839 = vset.pattern.permute.xlu0 2
        %840 = vperm.xlu0 %839, %v316
        %v841 = vpop.permute.xlu0 %840
        %843 = vset.pattern.permute.xlu0 2
        %844 = vperm.xlu0 %843, %v317
        %v845 = vpop.permute.xlu0 %844
        %847 = vset.pattern.permute.xlu0 2
        %848 = vperm.xlu0 %847, %v318
        %v849 = vpop.permute.xlu0 %848
        %851 = vset.pattern.permute.xlu0 2
        %852 = vperm.xlu0 %851, %v319
        %v853 = vpop.permute.xlu0 %852
        %855 = vset.pattern.permute.xlu0 2
        %856 = vperm.xlu0 %855, %v320
        %v857 = vpop.permute.xlu0 %856
        %859 = vset.pattern.permute.xlu0 2
        %860 = vperm.xlu0 %859, %v321
        %v861 = vpop.permute.xlu0 %860
        %863 = vset.pattern.permute.xlu0 2
        %864 = vperm.xlu0 %863, %v322
        %v865 = vpop.permute.xlu0 %864
        %867 = vset.pattern.permute.xlu0 2
        %868 = vperm.xlu0 %867, %v323
        %v869 = vpop.permute.xlu0 %868
        %871 = vset.pattern.permute.xlu0 2
        %872 = vperm.xlu0 %871, %v324
        %v873 = vpop.permute.xlu0 %872
        %875 = vset.pattern.permute.xlu0 2
        %876 = vperm.xlu0 %875, %v325
        %v877 = vpop.permute.xlu0 %876
        %879 = vset.pattern.permute.xlu0 2
        %880 = vperm.xlu0 %879, %v326
        %v881 = vpop.permute.xlu0 %880
        %883 = vset.pattern.permute.xlu0 2
        %884 = vperm.xlu0 %883, %v327
        %v885 = vpop.permute.xlu0 %884
        %887 = vset.pattern.permute.xlu0 2
        %888 = vperm.xlu0 %887, %v328
        %v889 = vpop.permute.xlu0 %888
        %891 = vset.pattern.permute.xlu0 2
        %892 = vperm.xlu0 %891, %v329
        %v893 = vpop.permute.xlu0 %892
        %895 = vset.pattern.permute.xlu0 2
        %896 = vperm.xlu0 %895, %v330
        %v897 = vpop.permute.xlu0 %896
        %899 = vset.pattern.permute.xlu0 2
        %900 = vperm.xlu0 %899, %v331
        %v901 = vpop.permute.xlu0 %900
        %903 = vset.pattern.permute.xlu0 2
        %904 = vperm.xlu0 %903, %v332
        %v905 = vpop.permute.xlu0 %904
        %907 = vset.pattern.permute.xlu0 2
        %908 = vperm.xlu0 %907, %v333
        %v909 = vpop.permute.xlu0 %908
        %911 = vset.pattern.permute.xlu0 2
        %912 = vperm.xlu0 %911, %v334
        %v913 = vpop.permute.xlu0 %912
        %915 = vset.pattern.permute.xlu0 2
        %916 = vperm.xlu0 %915, %v335
        %v917 = vpop.permute.xlu0 %916
        %919 = vset.pattern.permute.xlu0 2
        %920 = vperm.xlu0 %919, %v336
        %v921 = vpop.permute.xlu0 %920
        %923 = vset.pattern.permute.xlu0 2
        %924 = vperm.xlu0 %923, %v337
        %v925 = vpop.permute.xlu0 %924
        %927 = vset.pattern.permute.xlu0 2
        %928 = vperm.xlu0 %927, %v338
        %v929 = vpop.permute.xlu0 %928
        %931 = vset.pattern.permute.xlu0 2
        %932 = vperm.xlu0 %931, %v339
        %v933 = vpop.permute.xlu0 %932
        %v935 = vlaneseq
        %v936 = vshrl.u32 %v935, 7
        %v937 = vsub.s32 2, %v936
        %v938 = vrot.slane %v340, %v937
        %v939 = vmul.f32 %v801, %v938
        %v940 = vmul.f32 %v805, %v938
        %v941 = vmul.f32 %v809, %v938
        %v942 = vmul.f32 %v813, %v938
        %v943 = vmul.f32 %v817, %v938
        %v944 = vmul.f32 %v821, %v938
        %v945 = vmul.f32 %v825, %v938
        %v946 = vmul.f32 %v829, %v938
        %v947 = vmul.f32 %v833, %v938
        %v948 = vmul.f32 %v837, %v938
        %v949 = vmul.f32 %v841, %v938
        %v950 = vmul.f32 %v845, %v938
        %v951 = vmul.f32 %v849, %v938
        %v952 = vmul.f32 %v853, %v938
        %v953 = vmul.f32 %v857, %v938
        %v954 = vmul.f32 %v861, %v938
        %v955 = vmul.f32 %v865, %v938
        %v956 = vmul.f32 %v869, %v938
        %v957 = vmul.f32 %v873, %v938
        %v958 = vmul.f32 %v877, %v938
        %v959 = vmul.f32 %v881, %v938
        %v960 = vmul.f32 %v885, %v938
        %v961 = vmul.f32 %v889, %v938
        %v962 = vmul.f32 %v893, %v938
        %v963 = vmul.f32 %v897, %v938
        %v964 = vmul.f32 %v901, %v938
        %v965 = vmul.f32 %v905, %v938
        %v966 = vmul.f32 %v909, %v938
        %v967 = vmul.f32 %v913, %v938
        %v968 = vmul.f32 %v917, %v938
        %v969 = vmul.f32 %v921, %v938
        %v970 = vmul.f32 %v925, %v938
        %v971 = vmul.f32 %v929, %v938
        %v972 = vmul.f32 %v933, %v938
        %v973 = vadd.f32 %v765, %v939
        %v974 = vadd.f32 %v766, %v940
        %v975 = vadd.f32 %v767, %v941
        %v976 = vadd.f32 %v768, %v942
        %v977 = vadd.f32 %v769, %v943
        %v978 = vadd.f32 %v770, %v944
        %v979 = vadd.f32 %v771, %v945
        %v980 = vadd.f32 %v772, %v946
        %v981 = vadd.f32 %v773, %v947
        %v982 = vadd.f32 %v774, %v948
        %v983 = vadd.f32 %v775, %v949
        %v984 = vadd.f32 %v776, %v950
        %v985 = vadd.f32 %v777, %v951
        %v986 = vadd.f32 %v778, %v952
        %v987 = vadd.f32 %v779, %v953
        %v988 = vadd.f32 %v780, %v954
        %v989 = vadd.f32 %v781, %v955
        %v990 = vadd.f32 %v782, %v956
        %v991 = vadd.f32 %v783, %v957
        %v992 = vadd.f32 %v784, %v958
        %v993 = vadd.f32 %v785, %v959
        %v994 = vadd.f32 %v786, %v960
        %v995 = vadd.f32 %v787, %v961
        %v996 = vadd.f32 %v788, %v962
        %v997 = vadd.f32 %v789, %v963
        %v998 = vadd.f32 %v790, %v964
        %v999 = vadd.f32 %v791, %v965
        %v1000 = vadd.f32 %v792, %v966
        %v1001 = vadd.f32 %v793, %v967
        %v1002 = vadd.f32 %v794, %v968
        %v1003 = vadd.f32 %v795, %v969
        %v1004 = vadd.f32 %v796, %v970
        %v1005 = vadd.f32 %v797, %v971
        %v1006 = vadd.f32 %v798, %v972
        %1007 = vset.pattern.permute.xlu0 3
        %1008 = vperm.xlu0 %1007, %v306
        %v1009 = vpop.permute.xlu0 %1008
        %1011 = vset.pattern.permute.xlu0 3
        %1012 = vperm.xlu0 %1011, %v307
        %v1013 = vpop.permute.xlu0 %1012
        %1015 = vset.pattern.permute.xlu0 3
        %1016 = vperm.xlu0 %1015, %v308
        %v1017 = vpop.permute.xlu0 %1016
        %1019 = vset.pattern.permute.xlu0 3
        %1020 = vperm.xlu0 %1019, %v309
        %v1021 = vpop.permute.xlu0 %1020
        %1023 = vset.pattern.permute.xlu0 3
        %1024 = vperm.xlu0 %1023, %v310
        %v1025 = vpop.permute.xlu0 %1024
        %1027 = vset.pattern.permute.xlu0 3
        %1028 = vperm.xlu0 %1027, %v311
        %v1029 = vpop.permute.xlu0 %1028
        %1031 = vset.pattern.permute.xlu0 3
        %1032 = vperm.xlu0 %1031, %v312
        %v1033 = vpop.permute.xlu0 %1032
        %1035 = vset.pattern.permute.xlu0 3
        %1036 = vperm.xlu0 %1035, %v313
        %v1037 = vpop.permute.xlu0 %1036
        %1039 = vset.pattern.permute.xlu0 3
        %1040 = vperm.xlu0 %1039, %v314
        %v1041 = vpop.permute.xlu0 %1040
        %1043 = vset.pattern.permute.xlu0 3
        %1044 = vperm.xlu0 %1043, %v315
        %v1045 = vpop.permute.xlu0 %1044
        %1047 = vset.pattern.permute.xlu0 3
        %1048 = vperm.xlu0 %1047, %v316
        %v1049 = vpop.permute.xlu0 %1048
        %1051 = vset.pattern.permute.xlu0 3
        %1052 = vperm.xlu0 %1051, %v317
        %v1053 = vpop.permute.xlu0 %1052
        %1055 = vset.pattern.permute.xlu0 3
        %1056 = vperm.xlu0 %1055, %v318
        %v1057 = vpop.permute.xlu0 %1056
        %1059 = vset.pattern.permute.xlu0 3
        %1060 = vperm.xlu0 %1059, %v319
        %v1061 = vpop.permute.xlu0 %1060
        %1063 = vset.pattern.permute.xlu0 3
        %1064 = vperm.xlu0 %1063, %v320
        %v1065 = vpop.permute.xlu0 %1064
        %1067 = vset.pattern.permute.xlu0 3
        %1068 = vperm.xlu0 %1067, %v321
        %v1069 = vpop.permute.xlu0 %1068
        %1071 = vset.pattern.permute.xlu0 3
        %1072 = vperm.xlu0 %1071, %v322
        %v1073 = vpop.permute.xlu0 %1072
        %1075 = vset.pattern.permute.xlu0 3
        %1076 = vperm.xlu0 %1075, %v323
        %v1077 = vpop.permute.xlu0 %1076
        %1079 = vset.pattern.permute.xlu0 3
        %1080 = vperm.xlu0 %1079, %v324
        %v1081 = vpop.permute.xlu0 %1080
        %1083 = vset.pattern.permute.xlu0 3
        %1084 = vperm.xlu0 %1083, %v325
        %v1085 = vpop.permute.xlu0 %1084
        %1087 = vset.pattern.permute.xlu0 3
        %1088 = vperm.xlu0 %1087, %v326
        %v1089 = vpop.permute.xlu0 %1088
        %1091 = vset.pattern.permute.xlu0 3
        %1092 = vperm.xlu0 %1091, %v327
        %v1093 = vpop.permute.xlu0 %1092
        %1095 = vset.pattern.permute.xlu0 3
        %1096 = vperm.xlu0 %1095, %v328
        %v1097 = vpop.permute.xlu0 %1096
        %1099 = vset.pattern.permute.xlu0 3
        %1100 = vperm.xlu0 %1099, %v329
        %v1101 = vpop.permute.xlu0 %1100
        %1103 = vset.pattern.permute.xlu0 3
        %1104 = vperm.xlu0 %1103, %v330
        %v1105 = vpop.permute.xlu0 %1104
        %1107 = vset.pattern.permute.xlu0 3
        %1108 = vperm.xlu0 %1107, %v331
        %v1109 = vpop.permute.xlu0 %1108
        %1111 = vset.pattern.permute.xlu0 3
        %1112 = vperm.xlu0 %1111, %v332
        %v1113 = vpop.permute.xlu0 %1112
        %1115 = vset.pattern.permute.xlu0 3
        %1116 = vperm.xlu0 %1115, %v333
        %v1117 = vpop.permute.xlu0 %1116
        %1119 = vset.pattern.permute.xlu0 3
        %1120 = vperm.xlu0 %1119, %v334
        %v1121 = vpop.permute.xlu0 %1120
        %1123 = vset.pattern.permute.xlu0 3
        %1124 = vperm.xlu0 %1123, %v335
        %v1125 = vpop.permute.xlu0 %1124
        %1127 = vset.pattern.permute.xlu0 3
        %1128 = vperm.xlu0 %1127, %v336
        %v1129 = vpop.permute.xlu0 %1128
        %1131 = vset.pattern.permute.xlu0 3
        %1132 = vperm.xlu0 %1131, %v337
        %v1133 = vpop.permute.xlu0 %1132
        %1135 = vset.pattern.permute.xlu0 3
        %1136 = vperm.xlu0 %1135, %v338
        %v1137 = vpop.permute.xlu0 %1136
        %1139 = vset.pattern.permute.xlu0 3
        %1140 = vperm.xlu0 %1139, %v339
        %v1141 = vpop.permute.xlu0 %1140
        %v1143 = vlaneseq
        %v1144 = vshrl.u32 %v1143, 7
        %v1145 = vsub.s32 3, %v1144
        %v1146 = vrot.slane %v340, %v1145
        %v1147 = vmul.f32 %v1009, %v1146
        %v1148 = vmul.f32 %v1013, %v1146
        %v1149 = vmul.f32 %v1017, %v1146
        %v1150 = vmul.f32 %v1021, %v1146
        %v1151 = vmul.f32 %v1025, %v1146
        %v1152 = vmul.f32 %v1029, %v1146
        %v1153 = vmul.f32 %v1033, %v1146
        %v1154 = vmul.f32 %v1037, %v1146
        %v1155 = vmul.f32 %v1041, %v1146
        %v1156 = vmul.f32 %v1045, %v1146
        %v1157 = vmul.f32 %v1049, %v1146
        %v1158 = vmul.f32 %v1053, %v1146
        %v1159 = vmul.f32 %v1057, %v1146
        %v1160 = vmul.f32 %v1061, %v1146
        %v1161 = vmul.f32 %v1065, %v1146
        %v1162 = vmul.f32 %v1069, %v1146
        %v1163 = vmul.f32 %v1073, %v1146
        %v1164 = vmul.f32 %v1077, %v1146
        %v1165 = vmul.f32 %v1081, %v1146
        %v1166 = vmul.f32 %v1085, %v1146
        %v1167 = vmul.f32 %v1089, %v1146
        %v1168 = vmul.f32 %v1093, %v1146
        %v1169 = vmul.f32 %v1097, %v1146
        %v1170 = vmul.f32 %v1101, %v1146
        %v1171 = vmul.f32 %v1105, %v1146
        %v1172 = vmul.f32 %v1109, %v1146
        %v1173 = vmul.f32 %v1113, %v1146
        %v1174 = vmul.f32 %v1117, %v1146
        %v1175 = vmul.f32 %v1121, %v1146
        %v1176 = vmul.f32 %v1125, %v1146
        %v1177 = vmul.f32 %v1129, %v1146
        %v1178 = vmul.f32 %v1133, %v1146
        %v1179 = vmul.f32 %v1137, %v1146
        %v1180 = vmul.f32 %v1141, %v1146
        %v1181 = vadd.f32 %v973, %v1147
        %v1182 = vadd.f32 %v974, %v1148
        %v1183 = vadd.f32 %v975, %v1149
        %v1184 = vadd.f32 %v976, %v1150
        %v1185 = vadd.f32 %v977, %v1151
        %v1186 = vadd.f32 %v978, %v1152
        %v1187 = vadd.f32 %v979, %v1153
        %v1188 = vadd.f32 %v980, %v1154
        %v1189 = vadd.f32 %v981, %v1155
        %v1190 = vadd.f32 %v982, %v1156
        %v1191 = vadd.f32 %v983, %v1157
        %v1192 = vadd.f32 %v984, %v1158
        %v1193 = vadd.f32 %v985, %v1159
        %v1194 = vadd.f32 %v986, %v1160
        %v1195 = vadd.f32 %v987, %v1161
        %v1196 = vadd.f32 %v988, %v1162
        %v1197 = vadd.f32 %v989, %v1163
        %v1198 = vadd.f32 %v990, %v1164
        %v1199 = vadd.f32 %v991, %v1165
        %v1200 = vadd.f32 %v992, %v1166
        %v1201 = vadd.f32 %v993, %v1167
        %v1202 = vadd.f32 %v994, %v1168
        %v1203 = vadd.f32 %v995, %v1169
        %v1204 = vadd.f32 %v996, %v1170
        %v1205 = vadd.f32 %v997, %v1171
        %v1206 = vadd.f32 %v998, %v1172
        %v1207 = vadd.f32 %v999, %v1173
        %v1208 = vadd.f32 %v1000, %v1174
        %v1209 = vadd.f32 %v1001, %v1175
        %v1210 = vadd.f32 %v1002, %v1176
        %v1211 = vadd.f32 %v1003, %v1177
        %v1212 = vadd.f32 %v1004, %v1178
        %v1213 = vadd.f32 %v1005, %v1179
        %v1214 = vadd.f32 %v1006, %v1180
        %v1215 = vmax.f32 %v1181, 0.0
        %v1216 = vmax.f32 %v1182, 0.0
        %v1217 = vmax.f32 %v1183, 0.0
        %v1218 = vmax.f32 %v1184, 0.0
        %v1219 = vmax.f32 %v1185, 0.0
        %v1220 = vmax.f32 %v1186, 0.0
        %v1221 = vmax.f32 %v1187, 0.0
        %v1222 = vmax.f32 %v1188, 0.0
        %v1223 = vmax.f32 %v1189, 0.0
        %v1224 = vmax.f32 %v1190, 0.0
        %v1225 = vmax.f32 %v1191, 0.0
        %v1226 = vmax.f32 %v1192, 0.0
        %v1227 = vmax.f32 %v1193, 0.0
        %v1228 = vmax.f32 %v1194, 0.0
        %v1229 = vmax.f32 %v1195, 0.0
        %v1230 = vmax.f32 %v1196, 0.0
        %v1231 = vmax.f32 %v1197, 0.0
        %v1232 = vmax.f32 %v1198, 0.0
        %v1233 = vmax.f32 %v1199, 0.0
        %v1234 = vmax.f32 %v1200, 0.0
        %v1235 = vmax.f32 %v1201, 0.0
        %v1236 = vmax.f32 %v1202, 0.0
        %v1237 = vmax.f32 %v1203, 0.0
        %v1238 = vmax.f32 %v1204, 0.0
        %v1239 = vmax.f32 %v1205, 0.0
        %v1240 = vmax.f32 %v1206, 0.0
        %v1241 = vmax.f32 %v1207, 0.0
        %v1242 = vmax.f32 %v1208, 0.0
        %v1243 = vmax.f32 %v1209, 0.0
        %v1244 = vmax.f32 %v1210, 0.0
        %v1245 = vmax.f32 %v1211, 0.0
        %v1246 = vmax.f32 %v1212, 0.0
        %v1247 = vmax.f32 %v1213, 0.0
        %v1248 = vmax.f32 %v1214, 0.0
        %v1249 = vmin.f32 %v1215, 6.0
        %v1250 = vmin.f32 %v1216, 6.0
        %v1251 = vmin.f32 %v1217, 6.0
        %v1252 = vmin.f32 %v1218, 6.0
        %v1253 = vmin.f32 %v1219, 6.0
        %v1254 = vmin.f32 %v1220, 6.0
        %v1255 = vmin.f32 %v1221, 6.0
        %v1256 = vmin.f32 %v1222, 6.0
        %v1257 = vmin.f32 %v1223, 6.0
        %v1258 = vmin.f32 %v1224, 6.0
        %v1259 = vmin.f32 %v1225, 6.0
        %v1260 = vmin.f32 %v1226, 6.0
        %v1261 = vmin.f32 %v1227, 6.0
        %v1262 = vmin.f32 %v1228, 6.0
        %v1263 = vmin.f32 %v1229, 6.0
        %v1264 = vmin.f32 %v1230, 6.0
        %v1265 = vmin.f32 %v1231, 6.0
        %v1266 = vmin.f32 %v1232, 6.0
        %v1267 = vmin.f32 %v1233, 6.0
        %v1268 = vmin.f32 %v1234, 6.0
        %v1269 = vmin.f32 %v1235, 6.0
        %v1270 = vmin.f32 %v1236, 6.0
        %v1271 = vmin.f32 %v1237, 6.0
        %v1272 = vmin.f32 %v1238, 6.0
        %v1273 = vmin.f32 %v1239, 6.0
        %v1274 = vmin.f32 %v1240, 6.0
        %v1275 = vmin.f32 %v1241, 6.0
        %v1276 = vmin.f32 %v1242, 6.0
        %v1277 = vmin.f32 %v1243, 6.0
        %v1278 = vmin.f32 %v1244, 6.0
        %v1279 = vmin.f32 %v1245, 6.0
        %v1280 = vmin.f32 %v1246, 6.0
        %v1281 = vmin.f32 %v1247, 6.0
        %v1282 = vmin.f32 %v1248, 6.0
        %v1283 = vld [vmem:[#allocation8] sm:$0xff]
        %v1284 = vld [vmem:[#allocation8 + $0x8] sm:$0x1]
        %v1285 = vlaneseq
        %v1286 = vshrl.u32 %v1285, 7
        %v1287 = vsub.s32 0, %v1286
        %v1288 = vrot.slane %v1283, %v1287
        %v1289 = vmul.f32 %v1249, %v1288
        %v1290 = vmul.f32 %v1250, %v1288
        %v1291 = vmul.f32 %v1251, %v1288
        %v1292 = vmul.f32 %v1252, %v1288
        %v1293 = vmul.f32 %v1253, %v1288
        %v1294 = vmul.f32 %v1254, %v1288
        %v1295 = vmul.f32 %v1255, %v1288
        %v1296 = vmul.f32 %v1256, %v1288
        %v1297 = vmul.f32 %v1257, %v1288
        %v1298 = vmul.f32 %v1258, %v1288
        %v1299 = vmul.f32 %v1259, %v1288
        %v1300 = vmul.f32 %v1260, %v1288
        %v1301 = vmul.f32 %v1261, %v1288
        %v1302 = vmul.f32 %v1262, %v1288
        %v1303 = vmul.f32 %v1263, %v1288
        %v1304 = vmul.f32 %v1264, %v1288
        %v1305 = vmul.f32 %v1265, %v1288
        %v1306 = vmul.f32 %v1266, %v1288
        %v1307 = vmul.f32 %v1267, %v1288
        %v1308 = vmul.f32 %v1268, %v1288
        %v1309 = vmul.f32 %v1269, %v1288
        %v1310 = vmul.f32 %v1270, %v1288
        %v1311 = vmul.f32 %v1271, %v1288
        %v1312 = vmul.f32 %v1272, %v1288
        %v1313 = vmul.f32 %v1273, %v1288
        %v1314 = vmul.f32 %v1274, %v1288
        %v1315 = vmul.f32 %v1275, %v1288
        %v1316 = vmul.f32 %v1276, %v1288
        %v1317 = vmul.f32 %v1277, %v1288
        %v1318 = vmul.f32 %v1278, %v1288
        %v1319 = vadd.f32 %v1289, 0.0
        %v1320 = vadd.f32 %v1290, 0.0
        %v1321 = vadd.f32 %v1291, 0.0
        %v1322 = vadd.f32 %v1292, 0.0
        %v1323 = vadd.f32 %v1293, 0.0
        %v1324 = vadd.f32 %v1294, 0.0
        %v1325 = vadd.f32 %v1295, 0.0
        %v1326 = vadd.f32 %v1296, 0.0
        %v1327 = vadd.f32 %v1297, 0.0
        %v1328 = vadd.f32 %v1298, 0.0
        %v1329 = vadd.f32 %v1299, 0.0
        %v1330 = vadd.f32 %v1300, 0.0
        %v1331 = vadd.f32 %v1301, 0.0
        %v1332 = vadd.f32 %v1302, 0.0
        %v1333 = vadd.f32 %v1303, 0.0
        %v1334 = vadd.f32 %v1304, 0.0
        %v1335 = vadd.f32 %v1305, 0.0
        %v1336 = vadd.f32 %v1306, 0.0
        %v1337 = vadd.f32 %v1307, 0.0
        %v1338 = vadd.f32 %v1308, 0.0
        %v1339 = vadd.f32 %v1309, 0.0
        %v1340 = vadd.f32 %v1310, 0.0
        %v1341 = vadd.f32 %v1311, 0.0
        %v1342 = vadd.f32 %v1312, 0.0
        %v1343 = vadd.f32 %v1313, 0.0
        %v1344 = vadd.f32 %v1314, 0.0
        %v1345 = vadd.f32 %v1315, 0.0
        %v1346 = vadd.f32 %v1316, 0.0
        %v1347 = vadd.f32 %v1317, 0.0
        %v1348 = vadd.f32 %v1318, 0.0
        %v1349 = vlaneseq
        %v1350 = vshrl.u32 %v1349, 7
        %v1351 = vsub.s32 1, %v1350
        %v1352 = vrot.slane %v1283, %v1351
        %v1353 = vmul.f32 %v1249, %v1352
        %v1354 = vmul.f32 %v1250, %v1352
        %v1355 = vmul.f32 %v1251, %v1352
        %v1356 = vmul.f32 %v1252, %v1352
        %v1357 = vmul.f32 %v1253, %v1352
        %v1358 = vmul.f32 %v1254, %v1352
        %v1359 = vmul.f32 %v1255, %v1352
        %v1360 = vmul.f32 %v1256, %v1352
        %v1361 = vmul.f32 %v1257, %v1352
        %v1362 = vmul.f32 %v1258, %v1352
        %v1363 = vmul.f32 %v1259, %v1352
        %v1364 = vmul.f32 %v1260, %v1352
        %v1365 = vmul.f32 %v1261, %v1352
        %v1366 = vmul.f32 %v1262, %v1352
        %v1367 = vmul.f32 %v1263, %v1352
        %v1368 = vmul.f32 %v1264, %v1352
        %v1369 = vmul.f32 %v1265, %v1352
        %v1370 = vmul.f32 %v1266, %v1352
        %v1371 = vmul.f32 %v1267, %v1352
        %v1372 = vmul.f32 %v1268, %v1352
        %v1373 = vmul.f32 %v1269, %v1352
        %v1374 = vmul.f32 %v1270, %v1352
        %v1375 = vmul.f32 %v1271, %v1352
        %v1376 = vmul.f32 %v1272, %v1352
        %v1377 = vmul.f32 %v1273, %v1352
        %v1378 = vmul.f32 %v1274, %v1352
        %v1379 = vmul.f32 %v1275, %v1352
        %v1380 = vmul.f32 %v1276, %v1352
        %v1381 = vmul.f32 %v1277, %v1352
        %v1382 = vmul.f32 %v1278, %v1352
        %vm1413 = vcmask 1046528
        %v1414 = vrot.slane %v1353, 1
        %v1415 = vrot.slane %v1354, 1
        %v1416 = vsel %vm1413, %v1414, %v1415
        %v1417 = vrot.slane %v1355, 1
        %v1418 = vrot.slane %v1356, 1
        %v1419 = vsel %vm1413, %v1417, %v1418
        %v1420 = vrot.slane %v1357, 1
        %v1421 = vrot.slane %v1358, 1
        %v1422 = vsel %vm1413, %v1420, %v1421
        %v1423 = vrot.slane %v1359, 1
        %v1424 = vrot.slane %v1360, 1
        %v1425 = vsel %vm1413, %v1423, %v1424
        %v1426 = vrot.slane %v1361, 1
        %v1427 = vrot.slane %v1362, 1
        %v1428 = vsel %vm1413, %v1426, %v1427
        %v1429 = vrot.slane %v1363, 1
        %v1430 = vrot.slane %v1364, 1
        %v1431 = vsel %vm1413, %v1429, %v1430
        %v1432 = vrot.slane %v1365, 1
        %v1433 = vrot.slane %v1366, 1
        %v1434 = vsel %vm1413, %v1432, %v1433
        %v1435 = vrot.slane %v1367, 1
        %v1436 = vrot.slane %v1368, 1
        %v1437 = vsel %vm1413, %v1435, %v1436
        %v1438 = vrot.slane %v1369, 1
        %v1439 = vrot.slane %v1370, 1
        %v1440 = vsel %vm1413, %v1438, %v1439
        %v1441 = vrot.slane %v1371, 1
        %v1442 = vrot.slane %v1372, 1
        %v1443 = vsel %vm1413, %v1441, %v1442
        %v1444 = vrot.slane %v1373, 1
        %v1445 = vrot.slane %v1374, 1
        %v1446 = vsel %vm1413, %v1444, %v1445
        %v1447 = vrot.slane %v1375, 1
        %v1448 = vrot.slane %v1376, 1
        %v1449 = vsel %vm1413, %v1447, %v1448
        %v1450 = vrot.slane %v1377, 1
        %v1451 = vrot.slane %v1378, 1
        %v1452 = vsel %vm1413, %v1450, %v1451
        %v1453 = vrot.slane %v1379, 1
        %v1454 = vrot.slane %v1380, 1
        %v1455 = vsel %vm1413, %v1453, %v1454
        %v1456 = vrot.slane %v1381, 1
        %v1457 = vrot.slane %v1382, 1
        %v1458 = vsel %vm1413, %v1456, %v1457
        %v1489 = vadd.f32 %v1319, %v1416
        %v1490 = vadd.f32 %v1320, %v1415
        %v1491 = vadd.f32 %v1321, %v1419
        %v1492 = vadd.f32 %v1322, %v1418
        %v1493 = vadd.f32 %v1323, %v1422
        %v1494 = vadd.f32 %v1324, %v1421
        %v1495 = vadd.f32 %v1325, %v1425
        %v1496 = vadd.f32 %v1326, %v1424
        %v1497 = vadd.f32 %v1327, %v1428
        %v1498 = vadd.f32 %v1328, %v1427
        %v1499 = vadd.f32 %v1329, %v1431
        %v1500 = vadd.f32 %v1330, %v1430
        %v1501 = vadd.f32 %v1331, %v1434
        %v1502 = vadd.f32 %v1332, %v1433
        %v1503 = vadd.f32 %v1333, %v1437
        %v1504 = vadd.f32 %v1334, %v1436
        %v1505 = vadd.f32 %v1335, %v1440
        %v1506 = vadd.f32 %v1336, %v1439
        %v1507 = vadd.f32 %v1337, %v1443
        %v1508 = vadd.f32 %v1338, %v1442
        %v1509 = vadd.f32 %v1339, %v1446
        %v1510 = vadd.f32 %v1340, %v1445
        %v1511 = vadd.f32 %v1341, %v1449
        %v1512 = vadd.f32 %v1342, %v1448
        %v1513 = vadd.f32 %v1343, %v1452
        %v1514 = vadd.f32 %v1344, %v1451
        %v1515 = vadd.f32 %v1345, %v1455
        %v1516 = vadd.f32 %v1346, %v1454
        %v1517 = vadd.f32 %v1347, %v1458
        %v1518 = vadd.f32 %v1348, %v1457
        %v1519 = vlaneseq
        %v1520 = vshrl.u32 %v1519, 7
        %v1521 = vsub.s32 2, %v1520
        %v1522 = vrot.slane %v1283, %v1521
        %v1523 = vmul.f32 %v1249, %v1522
        %v1524 = vmul.f32 %v1250, %v1522
        %v1525 = vmul.f32 %v1251, %v1522
        %v1526 = vmul.f32 %v1252, %v1522
        %v1527 = vmul.f32 %v1253, %v1522
        %v1528 = vmul.f32 %v1254, %v1522
        %v1529 = vmul.f32 %v1255, %v1522
        %v1530 = vmul.f32 %v1256, %v1522
        %v1531 = vmul.f32 %v1257, %v1522
        %v1532 = vmul.f32 %v1258, %v1522
        %v1533 = vmul.f32 %v1259, %v1522
        %v1534 = vmul.f32 %v1260, %v1522
        %v1535 = vmul.f32 %v1261, %v1522
        %v1536 = vmul.f32 %v1262, %v1522
        %v1537 = vmul.f32 %v1263, %v1522
        %v1538 = vmul.f32 %v1264, %v1522
        %v1539 = vmul.f32 %v1265, %v1522
        %v1540 = vmul.f32 %v1266, %v1522
        %v1541 = vmul.f32 %v1267, %v1522
        %v1542 = vmul.f32 %v1268, %v1522
        %v1543 = vmul.f32 %v1269, %v1522
        %v1544 = vmul.f32 %v1270, %v1522
        %v1545 = vmul.f32 %v1271, %v1522
        %v1546 = vmul.f32 %v1272, %v1522
        %v1547 = vmul.f32 %v1273, %v1522
        %v1548 = vmul.f32 %v1274, %v1522
        %v1549 = vmul.f32 %v1275, %v1522
        %v1550 = vmul.f32 %v1276, %v1522
        %v1551 = vmul.f32 %v1277, %v1522
        %v1552 = vmul.f32 %v1278, %v1522
        %vm1583 = vcmask 1045504
        %v1584 = vrot.slane %v1523, 2
        %v1585 = vrot.slane %v1524, 2
        %v1586 = vsel %vm1583, %v1584, %v1585
        %v1587 = vrot.slane %v1525, 2
        %v1588 = vrot.slane %v1526, 2
        %v1589 = vsel %vm1583, %v1587, %v1588
        %v1590 = vrot.slane %v1527, 2
        %v1591 = vrot.slane %v1528, 2
        %v1592 = vsel %vm1583, %v1590, %v1591
        %v1593 = vrot.slane %v1529, 2
        %v1594 = vrot.slane %v1530, 2
        %v1595 = vsel %vm1583, %v1593, %v1594
        %v1596 = vrot.slane %v1531, 2
        %v1597 = vrot.slane %v1532, 2
        %v1598 = vsel %vm1583, %v1596, %v1597
        %v1599 = vrot.slane %v1533, 2
        %v1600 = vrot.slane %v1534, 2
        %v1601 = vsel %vm1583, %v1599, %v1600
        %v1602 = vrot.slane %v1535, 2
        %v1603 = vrot.slane %v1536, 2
        %v1604 = vsel %vm1583, %v1602, %v1603
        %v1605 = vrot.slane %v1537, 2
        %v1606 = vrot.slane %v1538, 2
        %v1607 = vsel %vm1583, %v1605, %v1606
        %v1608 = vrot.slane %v1539, 2
        %v1609 = vrot.slane %v1540, 2
        %v1610 = vsel %vm1583, %v1608, %v1609
        %v1611 = vrot.slane %v1541, 2
        %v1612 = vrot.slane %v1542, 2
        %v1613 = vsel %vm1583, %v1611, %v1612
        %v1614 = vrot.slane %v1543, 2
        %v1615 = vrot.slane %v1544, 2
        %v1616 = vsel %vm1583, %v1614, %v1615
        %v1617 = vrot.slane %v1545, 2
        %v1618 = vrot.slane %v1546, 2
        %v1619 = vsel %vm1583, %v1617, %v1618
        %v1620 = vrot.slane %v1547, 2
        %v1621 = vrot.slane %v1548, 2
        %v1622 = vsel %vm1583, %v1620, %v1621
        %v1623 = vrot.slane %v1549, 2
        %v1624 = vrot.slane %v1550, 2
        %v1625 = vsel %vm1583, %v1623, %v1624
        %v1626 = vrot.slane %v1551, 2
        %v1627 = vrot.slane %v1552, 2
        %v1628 = vsel %vm1583, %v1626, %v1627
        %v1659 = vadd.f32 %v1489, %v1586
        %v1660 = vadd.f32 %v1490, %v1585
        %v1661 = vadd.f32 %v1491, %v1589
        %v1662 = vadd.f32 %v1492, %v1588
        %v1663 = vadd.f32 %v1493, %v1592
        %v1664 = vadd.f32 %v1494, %v1591
        %v1665 = vadd.f32 %v1495, %v1595
        %v1666 = vadd.f32 %v1496, %v1594
        %v1667 = vadd.f32 %v1497, %v1598
        %v1668 = vadd.f32 %v1498, %v1597
        %v1669 = vadd.f32 %v1499, %v1601
        %v1670 = vadd.f32 %v1500, %v1600
        %v1671 = vadd.f32 %v1501, %v1604
        %v1672 = vadd.f32 %v1502, %v1603
        %v1673 = vadd.f32 %v1503, %v1607
        %v1674 = vadd.f32 %v1504, %v1606
        %v1675 = vadd.f32 %v1505, %v1610
        %v1676 = vadd.f32 %v1506, %v1609
        %v1677 = vadd.f32 %v1507, %v1613
        %v1678 = vadd.f32 %v1508, %v1612
        %v1679 = vadd.f32 %v1509, %v1616
        %v1680 = vadd.f32 %v1510, %v1615
        %v1681 = vadd.f32 %v1511, %v1619
        %v1682 = vadd.f32 %v1512, %v1618
        %v1683 = vadd.f32 %v1513, %v1622
        %v1684 = vadd.f32 %v1514, %v1621
        %v1685 = vadd.f32 %v1515, %v1625
        %v1686 = vadd.f32 %v1516, %v1624
        %v1687 = vadd.f32 %v1517, %v1628
        %v1688 = vadd.f32 %v1518, %v1627
        %v1689 = vlaneseq
        %v1690 = vshrl.u32 %v1689, 7
        %v1691 = vsub.s32 3, %v1690
        %v1692 = vrot.slane %v1283, %v1691
        %v1693 = vmul.f32 %v1251, %v1692
        %v1694 = vmul.f32 %v1252, %v1692
        %v1695 = vmul.f32 %v1253, %v1692
        %v1696 = vmul.f32 %v1254, %v1692
        %v1697 = vmul.f32 %v1255, %v1692
        %v1698 = vmul.f32 %v1256, %v1692
        %v1699 = vmul.f32 %v1257, %v1692
        %v1700 = vmul.f32 %v1258, %v1692
        %v1701 = vmul.f32 %v1259, %v1692
        %v1702 = vmul.f32 %v1260, %v1692
        %v1703 = vmul.f32 %v1261, %v1692
        %v1704 = vmul.f32 %v1262, %v1692
        %v1705 = vmul.f32 %v1263, %v1692
        %v1706 = vmul.f32 %v1264, %v1692
        %v1707 = vmul.f32 %v1265, %v1692
        %v1708 = vmul.f32 %v1266, %v1692
        %v1709 = vmul.f32 %v1267, %v1692
        %v1710 = vmul.f32 %v1268, %v1692
        %v1711 = vmul.f32 %v1269, %v1692
        %v1712 = vmul.f32 %v1270, %v1692
        %v1713 = vmul.f32 %v1271, %v1692
        %v1714 = vmul.f32 %v1272, %v1692
        %v1715 = vmul.f32 %v1273, %v1692
        %v1716 = vmul.f32 %v1274, %v1692
        %v1717 = vmul.f32 %v1275, %v1692
        %v1718 = vmul.f32 %v1276, %v1692
        %v1719 = vmul.f32 %v1277, %v1692
        %v1720 = vmul.f32 %v1278, %v1692
        %v1721 = vmul.f32 %v1279, %v1692
        %v1722 = vmul.f32 %v1280, %v1692
        %v1723 = vadd.f32 %v1659, %v1693
        %v1724 = vadd.f32 %v1660, %v1694
        %v1725 = vadd.f32 %v1661, %v1695
        %v1726 = vadd.f32 %v1662, %v1696
        %v1727 = vadd.f32 %v1663, %v1697
        %v1728 = vadd.f32 %v1664, %v1698
        %v1729 = vadd.f32 %v1665, %v1699
        %v1730 = vadd.f32 %v1666, %v1700
        %v1731 = vadd.f32 %v1667, %v1701
        %v1732 = vadd.f32 %v1668, %v1702
        %v1733 = vadd.f32 %v1669, %v1703
        %v1734 = vadd.f32 %v1670, %v1704
        %v1735 = vadd.f32 %v1671, %v1705
        %v1736 = vadd.f32 %v1672, %v1706
        %v1737 = vadd.f32 %v1673, %v1707
        %v1738 = vadd.f32 %v1674, %v1708
        %v1739 = vadd.f32 %v1675, %v1709
        %v1740 = vadd.f32 %v1676, %v1710
        %v1741 = vadd.f32 %v1677, %v1711
        %v1742 = vadd.f32 %v1678, %v1712
        %v1743 = vadd.f32 %v1679, %v1713
        %v1744 = vadd.f32 %v1680, %v1714
        %v1745 = vadd.f32 %v1681, %v1715
        %v1746 = vadd.f32 %v1682, %v1716
        %v1747 = vadd.f32 %v1683, %v1717
        %v1748 = vadd.f32 %v1684, %v1718
        %v1749 = vadd.f32 %v1685, %v1719
        %v1750 = vadd.f32 %v1686, %v1720
        %v1751 = vadd.f32 %v1687, %v1721
        %v1752 = vadd.f32 %v1688, %v1722
        %v1753 = vlaneseq
        %v1754 = vshrl.u32 %v1753, 7
        %v1755 = vsub.s32 4, %v1754
        %v1756 = vrot.slane %v1283, %v1755
        %v1757 = vmul.f32 %v1251, %v1756
        %v1758 = vmul.f32 %v1252, %v1756
        %v1759 = vmul.f32 %v1253, %v1756
        %v1760 = vmul.f32 %v1254, %v1756
        %v1761 = vmul.f32 %v1255, %v1756
        %v1762 = vmul.f32 %v1256, %v1756
        %v1763 = vmul.f32 %v1257, %v1756
        %v1764 = vmul.f32 %v1258, %v1756
        %v1765 = vmul.f32 %v1259, %v1756
        %v1766 = vmul.f32 %v1260, %v1756
        %v1767 = vmul.f32 %v1261, %v1756
        %v1768 = vmul.f32 %v1262, %v1756
        %v1769 = vmul.f32 %v1263, %v1756
        %v1770 = vmul.f32 %v1264, %v1756
        %v1771 = vmul.f32 %v1265, %v1756
        %v1772 = vmul.f32 %v1266, %v1756
        %v1773 = vmul.f32 %v1267, %v1756
        %v1774 = vmul.f32 %v1268, %v1756
        %v1775 = vmul.f32 %v1269, %v1756
        %v1776 = vmul.f32 %v1270, %v1756
        %v1777 = vmul.f32 %v1271, %v1756
        %v1778 = vmul.f32 %v1272, %v1756
        %v1779 = vmul.f32 %v1273, %v1756
        %v1780 = vmul.f32 %v1274, %v1756
        %v1781 = vmul.f32 %v1275, %v1756
        %v1782 = vmul.f32 %v1276, %v1756
        %v1783 = vmul.f32 %v1277, %v1756
        %v1784 = vmul.f32 %v1278, %v1756
        %v1785 = vmul.f32 %v1279, %v1756
        %v1786 = vmul.f32 %v1280, %v1756
        %v1817 = vrot.slane %v1757, 1
        %v1818 = vrot.slane %v1758, 1
        %v1819 = vsel %vm1413, %v1817, %v1818
        %v1820 = vrot.slane %v1759, 1
        %v1821 = vrot.slane %v1760, 1
        %v1822 = vsel %vm1413, %v1820, %v1821
        %v1823 = vrot.slane %v1761, 1
        %v1824 = vrot.slane %v1762, 1
        %v1825 = vsel %vm1413, %v1823, %v1824
        %v1826 = vrot.slane %v1763, 1
        %v1827 = vrot.slane %v1764, 1
        %v1828 = vsel %vm1413, %v1826, %v1827
        %v1829 = vrot.slane %v1765, 1
        %v1830 = vrot.slane %v1766, 1
        %v1831 = vsel %vm1413, %v1829, %v1830
        %v1832 = vrot.slane %v1767, 1
        %v1833 = vrot.slane %v1768, 1
        %v1834 = vsel %vm1413, %v1832, %v1833
        %v1835 = vrot.slane %v1769, 1
        %v1836 = vrot.slane %v1770, 1
        %v1837 = vsel %vm1413, %v1835, %v1836
        %v1838 = vrot.slane %v1771, 1
        %v1839 = vrot.slane %v1772, 1
        %v1840 = vsel %vm1413, %v1838, %v1839
        %v1841 = vrot.slane %v1773, 1
        %v1842 = vrot.slane %v1774, 1
        %v1843 = vsel %vm1413, %v1841, %v1842
        %v1844 = vrot.slane %v1775, 1
        %v1845 = vrot.slane %v1776, 1
        %v1846 = vsel %vm1413, %v1844, %v1845
        %v1847 = vrot.slane %v1777, 1
        %v1848 = vrot.slane %v1778, 1
        %v1849 = vsel %vm1413, %v1847, %v1848
        %v1850 = vrot.slane %v1779, 1
        %v1851 = vrot.slane %v1780, 1
        %v1852 = vsel %vm1413, %v1850, %v1851
        %v1853 = vrot.slane %v1781, 1
        %v1854 = vrot.slane %v1782, 1
        %v1855 = vsel %vm1413, %v1853, %v1854
        %v1856 = vrot.slane %v1783, 1
        %v1857 = vrot.slane %v1784, 1
        %v1858 = vsel %vm1413, %v1856, %v1857
        %v1859 = vrot.slane %v1785, 1
        %v1860 = vrot.slane %v1786, 1
        %v1861 = vsel %vm1413, %v1859, %v1860
        %v1892 = vadd.f32 %v1723, %v1819
        %v1893 = vadd.f32 %v1724, %v1818
        %v1894 = vadd.f32 %v1725, %v1822
        %v1895 = vadd.f32 %v1726, %v1821
        %v1896 = vadd.f32 %v1727, %v1825
        %v1897 = vadd.f32 %v1728, %v1824
        %v1898 = vadd.f32 %v1729, %v1828
        %v1899 = vadd.f32 %v1730, %v1827
        %v1900 = vadd.f32 %v1731, %v1831
        %v1901 = vadd.f32 %v1732, %v1830
        %v1902 = vadd.f32 %v1733, %v1834
        %v1903 = vadd.f32 %v1734, %v1833
        %v1904 = vadd.f32 %v1735, %v1837
        %v1905 = vadd.f32 %v1736, %v1836
        %v1906 = vadd.f32 %v1737, %v1840
        %v1907 = vadd.f32 %v1738, %v1839
        %v1908 = vadd.f32 %v1739, %v1843
        %v1909 = vadd.f32 %v1740, %v1842
        %v1910 = vadd.f32 %v1741, %v1846
        %v1911 = vadd.f32 %v1742, %v1845
        %v1912 = vadd.f32 %v1743, %v1849
        %v1913 = vadd.f32 %v1744, %v1848
        %v1914 = vadd.f32 %v1745, %v1852
        %v1915 = vadd.f32 %v1746, %v1851
        %v1916 = vadd.f32 %v1747, %v1855
        %v1917 = vadd.f32 %v1748, %v1854
        %v1918 = vadd.f32 %v1749, %v1858
        %v1919 = vadd.f32 %v1750, %v1857
        %v1920 = vadd.f32 %v1751, %v1861
        %v1921 = vadd.f32 %v1752, %v1860
        %v1922 = vlaneseq
        %v1923 = vshrl.u32 %v1922, 7
        %v1924 = vsub.s32 5, %v1923
        %v1925 = vrot.slane %v1283, %v1924
        %v1926 = vmul.f32 %v1251, %v1925
        %v1927 = vmul.f32 %v1252, %v1925
        %v1928 = vmul.f32 %v1253, %v1925
        %v1929 = vmul.f32 %v1254, %v1925
        %v1930 = vmul.f32 %v1255, %v1925
        %v1931 = vmul.f32 %v1256, %v1925
        %v1932 = vmul.f32 %v1257, %v1925
        %v1933 = vmul.f32 %v1258, %v1925
        %v1934 = vmul.f32 %v1259, %v1925
        %v1935 = vmul.f32 %v1260, %v1925
        %v1936 = vmul.f32 %v1261, %v1925
        %v1937 = vmul.f32 %v1262, %v1925
        %v1938 = vmul.f32 %v1263, %v1925
        %v1939 = vmul.f32 %v1264, %v1925
        %v1940 = vmul.f32 %v1265, %v1925
        %v1941 = vmul.f32 %v1266, %v1925
        %v1942 = vmul.f32 %v1267, %v1925
        %v1943 = vmul.f32 %v1268, %v1925
        %v1944 = vmul.f32 %v1269, %v1925
        %v1945 = vmul.f32 %v1270, %v1925
        %v1946 = vmul.f32 %v1271, %v1925
        %v1947 = vmul.f32 %v1272, %v1925
        %v1948 = vmul.f32 %v1273, %v1925
        %v1949 = vmul.f32 %v1274, %v1925
        %v1950 = vmul.f32 %v1275, %v1925
        %v1951 = vmul.f32 %v1276, %v1925
        %v1952 = vmul.f32 %v1277, %v1925
        %v1953 = vmul.f32 %v1278, %v1925
        %v1954 = vmul.f32 %v1279, %v1925
        %v1955 = vmul.f32 %v1280, %v1925
        %v1986 = vrot.slane %v1926, 2
        %v1987 = vrot.slane %v1927, 2
        %v1988 = vsel %vm1583, %v1986, %v1987
        %v1989 = vrot.slane %v1928, 2
        %v1990 = vrot.slane %v1929, 2
        %v1991 = vsel %vm1583, %v1989, %v1990
        %v1992 = vrot.slane %v1930, 2
        %v1993 = vrot.slane %v1931, 2
        %v1994 = vsel %vm1583, %v1992, %v1993
        %v1995 = vrot.slane %v1932, 2
        %v1996 = vrot.slane %v1933, 2
        %v1997 = vsel %vm1583, %v1995, %v1996
        %v1998 = vrot.slane %v1934, 2
        %v1999 = vrot.slane %v1935, 2
        %v2000 = vsel %vm1583, %v1998, %v1999
        %v2001 = vrot.slane %v1936, 2
        %v2002 = vrot.slane %v1937, 2
        %v2003 = vsel %vm1583, %v2001, %v2002
        %v2004 = vrot.slane %v1938, 2
        %v2005 = vrot.slane %v1939, 2
        %v2006 = vsel %vm1583, %v2004, %v2005
        %v2007 = vrot.slane %v1940, 2
        %v2008 = vrot.slane %v1941, 2
        %v2009 = vsel %vm1583, %v2007, %v2008
        %v2010 = vrot.slane %v1942, 2
        %v2011 = vrot.slane %v1943, 2
        %v2012 = vsel %vm1583, %v2010, %v2011
        %v2013 = vrot.slane %v1944, 2
        %v2014 = vrot.slane %v1945, 2
        %v2015 = vsel %vm1583, %v2013, %v2014
        %v2016 = vrot.slane %v1946, 2
        %v2017 = vrot.slane %v1947, 2
        %v2018 = vsel %vm1583, %v2016, %v2017
        %v2019 = vrot.slane %v1948, 2
        %v2020 = vrot.slane %v1949, 2
        %v2021 = vsel %vm1583, %v2019, %v2020
        %v2022 = vrot.slane %v1950, 2
        %v2023 = vrot.slane %v1951, 2
        %v2024 = vsel %vm1583, %v2022, %v2023
        %v2025 = vrot.slane %v1952, 2
        %v2026 = vrot.slane %v1953, 2
        %v2027 = vsel %vm1583, %v2025, %v2026
        %v2028 = vrot.slane %v1954, 2
        %v2029 = vrot.slane %v1955, 2
        %v2030 = vsel %vm1583, %v2028, %v2029
        %v2061 = vadd.f32 %v1892, %v1988
        %v2062 = vadd.f32 %v1893, %v1987
        %v2063 = vadd.f32 %v1894, %v1991
        %v2064 = vadd.f32 %v1895, %v1990
        %v2065 = vadd.f32 %v1896, %v1994
        %v2066 = vadd.f32 %v1897, %v1993
        %v2067 = vadd.f32 %v1898, %v1997
        %v2068 = vadd.f32 %v1899, %v1996
        %v2069 = vadd.f32 %v1900, %v2000
        %v2070 = vadd.f32 %v1901, %v1999
        %v2071 = vadd.f32 %v1902, %v2003
        %v2072 = vadd.f32 %v1903, %v2002
        %v2073 = vadd.f32 %v1904, %v2006
        %v2074 = vadd.f32 %v1905, %v2005
        %v2075 = vadd.f32 %v1906, %v2009
        %v2076 = vadd.f32 %v1907, %v2008
        %v2077 = vadd.f32 %v1908, %v2012
        %v2078 = vadd.f32 %v1909, %v2011
        %v2079 = vadd.f32 %v1910, %v2015
        %v2080 = vadd.f32 %v1911, %v2014
        %v2081 = vadd.f32 %v1912, %v2018
        %v2082 = vadd.f32 %v1913, %v2017
        %v2083 = vadd.f32 %v1914, %v2021
        %v2084 = vadd.f32 %v1915, %v2020
        %v2085 = vadd.f32 %v1916, %v2024
        %v2086 = vadd.f32 %v1917, %v2023
        %v2087 = vadd.f32 %v1918, %v2027
        %v2088 = vadd.f32 %v1919, %v2026
        %v2089 = vadd.f32 %v1920, %v2030
        %v2090 = vadd.f32 %v1921, %v2029
        %v2091 = vlaneseq
        %v2092 = vshrl.u32 %v2091, 7
        %v2093 = vsub.s32 6, %v2092
        %v2094 = vrot.slane %v1283, %v2093
        %v2095 = vmul.f32 %v1253, %v2094
        %v2096 = vmul.f32 %v1254, %v2094
        %v2097 = vmul.f32 %v1255, %v2094
        %v2098 = vmul.f32 %v1256, %v2094
        %v2099 = vmul.f32 %v1257, %v2094
        %v2100 = vmul.f32 %v1258, %v2094
        %v2101 = vmul.f32 %v1259, %v2094
        %v2102 = vmul.f32 %v1260, %v2094
        %v2103 = vmul.f32 %v1261, %v2094
        %v2104 = vmul.f32 %v1262, %v2094
        %v2105 = vmul.f32 %v1263, %v2094
        %v2106 = vmul.f32 %v1264, %v2094
        %v2107 = vmul.f32 %v1265, %v2094
        %v2108 = vmul.f32 %v1266, %v2094
        %v2109 = vmul.f32 %v1267, %v2094
        %v2110 = vmul.f32 %v1268, %v2094
        %v2111 = vmul.f32 %v1269, %v2094
        %v2112 = vmul.f32 %v1270, %v2094
        %v2113 = vmul.f32 %v1271, %v2094
        %v2114 = vmul.f32 %v1272, %v2094
        %v2115 = vmul.f32 %v1273, %v2094
        %v2116 = vmul.f32 %v1274, %v2094
        %v2117 = vmul.f32 %v1275, %v2094
        %v2118 = vmul.f32 %v1276, %v2094
        %v2119 = vmul.f32 %v1277, %v2094
        %v2120 = vmul.f32 %v1278, %v2094
        %v2121 = vmul.f32 %v1279, %v2094
        %v2122 = vmul.f32 %v1280, %v2094
        %v2123 = vmul.f32 %v1281, %v2094
        %v2124 = vmul.f32 %v1282, %v2094
        %v2125 = vadd.f32 %v2061, %v2095
        %v2126 = vadd.f32 %v2062, %v2096
        %v2127 = vadd.f32 %v2063, %v2097
        %v2128 = vadd.f32 %v2064, %v2098
        %v2129 = vadd.f32 %v2065, %v2099
        %v2130 = vadd.f32 %v2066, %v2100
        %v2131 = vadd.f32 %v2067, %v2101
        %v2132 = vadd.f32 %v2068, %v2102
        %v2133 = vadd.f32 %v2069, %v2103
        %v2134 = vadd.f32 %v2070, %v2104
        %v2135 = vadd.f32 %v2071, %v2105
        %v2136 = vadd.f32 %v2072, %v2106
        %v2137 = vadd.f32 %v2073, %v2107
        %v2138 = vadd.f32 %v2074, %v2108
        %v2139 = vadd.f32 %v2075, %v2109
        %v2140 = vadd.f32 %v2076, %v2110
        %v2141 = vadd.f32 %v2077, %v2111
        %v2142 = vadd.f32 %v2078, %v2112
        %v2143 = vadd.f32 %v2079, %v2113
        %v2144 = vadd.f32 %v2080, %v2114
        %v2145 = vadd.f32 %v2081, %v2115
        %v2146 = vadd.f32 %v2082, %v2116
        %v2147 = vadd.f32 %v2083, %v2117
        %v2148 = vadd.f32 %v2084, %v2118
        %v2149 = vadd.f32 %v2085, %v2119
        %v2150 = vadd.f32 %v2086, %v2120
        %v2151 = vadd.f32 %v2087, %v2121
        %v2152 = vadd.f32 %v2088, %v2122
        %v2153 = vadd.f32 %v2089, %v2123
        %v2154 = vadd.f32 %v2090, %v2124
        %v2155 = vlaneseq
        %v2156 = vshrl.u32 %v2155, 7
        %v2157 = vsub.s32 7, %v2156
        %v2158 = vrot.slane %v1283, %v2157
        %v2159 = vmul.f32 %v1253, %v2158
        %v2160 = vmul.f32 %v1254, %v2158
        %v2161 = vmul.f32 %v1255, %v2158
        %v2162 = vmul.f32 %v1256, %v2158
        %v2163 = vmul.f32 %v1257, %v2158
        %v2164 = vmul.f32 %v1258, %v2158
        %v2165 = vmul.f32 %v1259, %v2158
        %v2166 = vmul.f32 %v1260, %v2158
        %v2167 = vmul.f32 %v1261, %v2158
        %v2168 = vmul.f32 %v1262, %v2158
        %v2169 = vmul.f32 %v1263, %v2158
        %v2170 = vmul.f32 %v1264, %v2158
        %v2171 = vmul.f32 %v1265, %v2158
        %v2172 = vmul.f32 %v1266, %v2158
        %v2173 = vmul.f32 %v1267, %v2158
        %v2174 = vmul.f32 %v1268, %v2158
        %v2175 = vmul.f32 %v1269, %v2158
        %v2176 = vmul.f32 %v1270, %v2158
        %v2177 = vmul.f32 %v1271, %v2158
        %v2178 = vmul.f32 %v1272, %v2158
        %v2179 = vmul.f32 %v1273, %v2158
        %v2180 = vmul.f32 %v1274, %v2158
        %v2181 = vmul.f32 %v1275, %v2158
        %v2182 = vmul.f32 %v1276, %v2158
        %v2183 = vmul.f32 %v1277, %v2158
        %v2184 = vmul.f32 %v1278, %v2158
        %v2185 = vmul.f32 %v1279, %v2158
        %v2186 = vmul.f32 %v1280, %v2158
        %v2187 = vmul.f32 %v1281, %v2158
        %v2188 = vmul.f32 %v1282, %v2158
        %v2219 = vrot.slane %v2159, 1
        %v2220 = vrot.slane %v2160, 1
        %v2221 = vsel %vm1413, %v2219, %v2220
        %v2222 = vrot.slane %v2161, 1
        %v2223 = vrot.slane %v2162, 1
        %v2224 = vsel %vm1413, %v2222, %v2223
        %v2225 = vrot.slane %v2163, 1
        %v2226 = vrot.slane %v2164, 1
        %v2227 = vsel %vm1413, %v2225, %v2226
        %v2228 = vrot.slane %v2165, 1
        %v2229 = vrot.slane %v2166, 1
        %v2230 = vsel %vm1413, %v2228, %v2229
        %v2231 = vrot.slane %v2167, 1
        %v2232 = vrot.slane %v2168, 1
        %v2233 = vsel %vm1413, %v2231, %v2232
        %v2234 = vrot.slane %v2169, 1
        %v2235 = vrot.slane %v2170, 1
        %v2236 = vsel %vm1413, %v2234, %v2235
        %v2237 = vrot.slane %v2171, 1
        %v2238 = vrot.slane %v2172, 1
        %v2239 = vsel %vm1413, %v2237, %v2238
        %v2240 = vrot.slane %v2173, 1
        %v2241 = vrot.slane %v2174, 1
        %v2242 = vsel %vm1413, %v2240, %v2241
        %v2243 = vrot.slane %v2175, 1
        %v2244 = vrot.slane %v2176, 1
        %v2245 = vsel %vm1413, %v2243, %v2244
        %v2246 = vrot.slane %v2177, 1
        %v2247 = vrot.slane %v2178, 1
        %v2248 = vsel %vm1413, %v2246, %v2247
        %v2249 = vrot.slane %v2179, 1
        %v2250 = vrot.slane %v2180, 1
        %v2251 = vsel %vm1413, %v2249, %v2250
        %v2252 = vrot.slane %v2181, 1
        %v2253 = vrot.slane %v2182, 1
        %v2254 = vsel %vm1413, %v2252, %v2253
        %v2255 = vrot.slane %v2183, 1
        %v2256 = vrot.slane %v2184, 1
        %v2257 = vsel %vm1413, %v2255, %v2256
        %v2258 = vrot.slane %v2185, 1
        %v2259 = vrot.slane %v2186, 1
        %v2260 = vsel %vm1413, %v2258, %v2259
        %v2261 = vrot.slane %v2187, 1
        %v2262 = vrot.slane %v2188, 1
        %v2263 = vsel %vm1413, %v2261, %v2262
        %v2294 = vadd.f32 %v2125, %v2221
        %v2295 = vadd.f32 %v2126, %v2220
        %v2296 = vadd.f32 %v2127, %v2224
        %v2297 = vadd.f32 %v2128, %v2223
        %v2298 = vadd.f32 %v2129, %v2227
        %v2299 = vadd.f32 %v2130, %v2226
        %v2300 = vadd.f32 %v2131, %v2230
        %v2301 = vadd.f32 %v2132, %v2229
        %v2302 = vadd.f32 %v2133, %v2233
        %v2303 = vadd.f32 %v2134, %v2232
        %v2304 = vadd.f32 %v2135, %v2236
        %v2305 = vadd.f32 %v2136, %v2235
        %v2306 = vadd.f32 %v2137, %v2239
        %v2307 = vadd.f32 %v2138, %v2238
        %v2308 = vadd.f32 %v2139, %v2242
        %v2309 = vadd.f32 %v2140, %v2241
        %v2310 = vadd.f32 %v2141, %v2245
        %v2311 = vadd.f32 %v2142, %v2244
        %v2312 = vadd.f32 %v2143, %v2248
        %v2313 = vadd.f32 %v2144, %v2247
        %v2314 = vadd.f32 %v2145, %v2251
        %v2315 = vadd.f32 %v2146, %v2250
        %v2316 = vadd.f32 %v2147, %v2254
        %v2317 = vadd.f32 %v2148, %v2253
        %v2318 = vadd.f32 %v2149, %v2257
        %v2319 = vadd.f32 %v2150, %v2256
        %v2320 = vadd.f32 %v2151, %v2260
        %v2321 = vadd.f32 %v2152, %v2259
        %v2322 = vadd.f32 %v2153, %v2263
        %v2323 = vadd.f32 %v2154, %v2262
        %v2324 = vlaneseq
        %v2325 = vshrl.u32 %v2324, 7
        %v2326 = vsub.s32 0, %v2325
        %v2327 = vrot.slane %v1284, %v2326
        %v2328 = vmul.f32 %v1253, %v2327
        %v2329 = vmul.f32 %v1254, %v2327
        %v2330 = vmul.f32 %v1255, %v2327
        %v2331 = vmul.f32 %v1256, %v2327
        %v2332 = vmul.f32 %v1257, %v2327
        %v2333 = vmul.f32 %v1258, %v2327
        %v2334 = vmul.f32 %v1259, %v2327
        %v2335 = vmul.f32 %v1260, %v2327
        %v2336 = vmul.f32 %v1261, %v2327
        %v2337 = vmul.f32 %v1262, %v2327
        %v2338 = vmul.f32 %v1263, %v2327
        %v2339 = vmul.f32 %v1264, %v2327
        %v2340 = vmul.f32 %v1265, %v2327
        %v2341 = vmul.f32 %v1266, %v2327
        %v2342 = vmul.f32 %v1267, %v2327
        %v2343 = vmul.f32 %v1268, %v2327
        %v2344 = vmul.f32 %v1269, %v2327
        %v2345 = vmul.f32 %v1270, %v2327
        %v2346 = vmul.f32 %v1271, %v2327
        %v2347 = vmul.f32 %v1272, %v2327
        %v2348 = vmul.f32 %v1273, %v2327
        %v2349 = vmul.f32 %v1274, %v2327
        %v2350 = vmul.f32 %v1275, %v2327
        %v2351 = vmul.f32 %v1276, %v2327
        %v2352 = vmul.f32 %v1277, %v2327
        %v2353 = vmul.f32 %v1278, %v2327
        %v2354 = vmul.f32 %v1279, %v2327
        %v2355 = vmul.f32 %v1280, %v2327
        %v2356 = vmul.f32 %v1281, %v2327
        %v2357 = vmul.f32 %v1282, %v2327
        %v2388 = vrot.slane %v2328, 2
        %v2389 = vrot.slane %v2329, 2
        %v2390 = vsel %vm1583, %v2388, %v2389
        %v2391 = vrot.slane %v2330, 2
        %v2392 = vrot.slane %v2331, 2
        %v2393 = vsel %vm1583, %v2391, %v2392
        %v2394 = vrot.slane %v2332, 2
        %v2395 = vrot.slane %v2333, 2
        %v2396 = vsel %vm1583, %v2394, %v2395
        %v2397 = vrot.slane %v2334, 2
        %v2398 = vrot.slane %v2335, 2
        %v2399 = vsel %vm1583, %v2397, %v2398
        %v2400 = vrot.slane %v2336, 2
        %v2401 = vrot.slane %v2337, 2
        %v2402 = vsel %vm1583, %v2400, %v2401
        %v2403 = vrot.slane %v2338, 2
        %v2404 = vrot.slane %v2339, 2
        %v2405 = vsel %vm1583, %v2403, %v2404
        %v2406 = vrot.slane %v2340, 2
        %v2407 = vrot.slane %v2341, 2
        %v2408 = vsel %vm1583, %v2406, %v2407
        %v2409 = vrot.slane %v2342, 2
        %v2410 = vrot.slane %v2343, 2
        %v2411 = vsel %vm1583, %v2409, %v2410
        %v2412 = vrot.slane %v2344, 2
        %v2413 = vrot.slane %v2345, 2
        %v2414 = vsel %vm1583, %v2412, %v2413
        %v2415 = vrot.slane %v2346, 2
        %v2416 = vrot.slane %v2347, 2
        %v2417 = vsel %vm1583, %v2415, %v2416
        %v2418 = vrot.slane %v2348, 2
        %v2419 = vrot.slane %v2349, 2
        %v2420 = vsel %vm1583, %v2418, %v2419
        %v2421 = vrot.slane %v2350, 2
        %v2422 = vrot.slane %v2351, 2
        %v2423 = vsel %vm1583, %v2421, %v2422
        %v2424 = vrot.slane %v2352, 2
        %v2425 = vrot.slane %v2353, 2
        %v2426 = vsel %vm1583, %v2424, %v2425
        %v2427 = vrot.slane %v2354, 2
        %v2428 = vrot.slane %v2355, 2
        %v2429 = vsel %vm1583, %v2427, %v2428
        %v2430 = vrot.slane %v2356, 2
        %v2431 = vrot.slane %v2357, 2
        %v2432 = vsel %vm1583, %v2430, %v2431
        %v2463 = vadd.f32 %v2294, %v2390
        %v2464 = vadd.f32 %v2295, %v2389
        %v2465 = vadd.f32 %v2296, %v2393
        %v2466 = vadd.f32 %v2297, %v2392
        %v2467 = vadd.f32 %v2298, %v2396
        %v2468 = vadd.f32 %v2299, %v2395
        %v2469 = vadd.f32 %v2300, %v2399
        %v2470 = vadd.f32 %v2301, %v2398
        %v2471 = vadd.f32 %v2302, %v2402
        %v2472 = vadd.f32 %v2303, %v2401
        %v2473 = vadd.f32 %v2304, %v2405
        %v2474 = vadd.f32 %v2305, %v2404
        %v2475 = vadd.f32 %v2306, %v2408
        %v2476 = vadd.f32 %v2307, %v2407
        %v2477 = vadd.f32 %v2308, %v2411
        %v2478 = vadd.f32 %v2309, %v2410
        %v2479 = vadd.f32 %v2310, %v2414
        %v2480 = vadd.f32 %v2311, %v2413
        %v2481 = vadd.f32 %v2312, %v2417
        %v2482 = vadd.f32 %v2313, %v2416
        %v2483 = vadd.f32 %v2314, %v2420
        %v2484 = vadd.f32 %v2315, %v2419
        %v2485 = vadd.f32 %v2316, %v2423
        %v2486 = vadd.f32 %v2317, %v2422
        %v2487 = vadd.f32 %v2318, %v2426
        %v2488 = vadd.f32 %v2319, %v2425
        %v2489 = vadd.f32 %v2320, %v2429
        %v2490 = vadd.f32 %v2321, %v2428
        %v2491 = vadd.f32 %v2322, %v2432
        %v2492 = vadd.f32 %v2323, %v2431
        %v2493 = vpack.c.bf16 %v2464, %v2463
        %v2494 = vpack.c.bf16 %v2466, %v2465
        %v2495 = vpack.c.bf16 %v2468, %v2467
        %v2496 = vpack.c.bf16 %v2470, %v2469
        %v2497 = vpack.c.bf16 %v2472, %v2471
        %v2498 = vpack.c.bf16 %v2474, %v2473
        %v2499 = vpack.c.bf16 %v2476, %v2475
        %v2500 = vpack.c.bf16 %v2478, %v2477
        %v2501 = vpack.c.bf16 %v2480, %v2479
        %v2502 = vpack.c.bf16 %v2482, %v2481
        %v2503 = vpack.c.bf16 %v2484, %v2483
        %v2504 = vpack.c.bf16 %v2486, %v2485
        %v2505 = vpack.c.bf16 %v2488, %v2487
        %v2506 = vpack.c.bf16 %v2490, %v2489
        %v2507 = vpack.c.bf16 %v2492, %v2491
        %v2523 = vunpack.c.l.b16 %v2493
        %v2524 = vunpack.c.h.b16 %v2493
        %v2525 = vunpack.c.l.b16 %v2494
        %v2526 = vunpack.c.h.b16 %v2494
        %v2527 = vunpack.c.l.b16 %v2495
        %v2528 = vunpack.c.h.b16 %v2495
        %v2529 = vunpack.c.l.b16 %v2496
        %v2530 = vunpack.c.h.b16 %v2496
        %v2531 = vunpack.c.l.b16 %v2497
        %v2532 = vunpack.c.h.b16 %v2497
        %v2533 = vunpack.c.l.b16 %v2498
        %v2534 = vunpack.c.h.b16 %v2498
        %v2535 = vunpack.c.l.b16 %v2499
        %v2536 = vunpack.c.h.b16 %v2499
        %v2537 = vunpack.c.l.b16 %v2500
        %v2538 = vunpack.c.h.b16 %v2500
        %v2539 = vunpack.c.l.b16 %v2501
        %v2540 = vunpack.c.h.b16 %v2501
        %v2541 = vunpack.c.l.b16 %v2502
        %v2542 = vunpack.c.h.b16 %v2502
        %v2543 = vunpack.c.l.b16 %v2503
        %v2544 = vunpack.c.h.b16 %v2503
        %v2545 = vunpack.c.l.b16 %v2504
        %v2546 = vunpack.c.h.b16 %v2504
        %v2547 = vunpack.c.l.b16 %v2505
        %v2548 = vunpack.c.h.b16 %v2505
        %v2549 = vunpack.c.l.b16 %v2506
        %v2550 = vunpack.c.h.b16 %v2506
        %v2551 = vunpack.c.l.b16 %v2507
        %v2552 = vunpack.c.h.b16 %v2507
        %v2553 = vpack.c.b16 %v2523, %v2523
        %v2554 = vpack.c.b16 %v2524, %v2524
        %v2555 = vpack.c.b16 %v2525, %v2525
        %v2556 = vpack.c.b16 %v2526, %v2526
        %v2557 = vpack.c.b16 %v2527, %v2527
        %v2558 = vpack.c.b16 %v2528, %v2528
        %v2559 = vpack.c.b16 %v2529, %v2529
        %v2560 = vpack.c.b16 %v2530, %v2530
        %v2561 = vpack.c.b16 %v2531, %v2531
        %v2562 = vpack.c.b16 %v2532, %v2532
        %v2563 = vpack.c.b16 %v2533, %v2533
        %v2564 = vpack.c.b16 %v2534, %v2534
        %v2565 = vpack.c.b16 %v2535, %v2535
        %v2566 = vpack.c.b16 %v2536, %v2536
        %v2567 = vpack.c.b16 %v2537, %v2537
        %v2568 = vpack.c.b16 %v2538, %v2538
        %v2569 = vpack.c.b16 %v2539, %v2539
        %v2570 = vpack.c.b16 %v2540, %v2540
        %v2571 = vpack.c.b16 %v2541, %v2541
        %v2572 = vpack.c.b16 %v2542, %v2542
        %v2573 = vpack.c.b16 %v2543, %v2543
        %v2574 = vpack.c.b16 %v2544, %v2544
        %v2575 = vpack.c.b16 %v2545, %v2545
        %v2576 = vpack.c.b16 %v2546, %v2546
        %v2577 = vpack.c.b16 %v2547, %v2547
        %v2578 = vpack.c.b16 %v2548, %v2548
        %v2579 = vpack.c.b16 %v2549, %v2549
        %v2580 = vpack.c.b16 %v2550, %v2550
        %v2581 = vpack.c.b16 %v2551, %v2551
        %v2582 = vpack.c.b16 %v2552, %v2552
        %vm2613 = vcmask 191488
        %2614 = vst.msk [vmem:[%s301] sm:$0xf] %vm2613, %v2553
        %vm2615 = vcmask 190464
        %2616 = vst.msk [vmem:[%s301 + $0x4] sm:$0x7] %vm2615, %v2554
        %2617 = vst.msk [vmem:[%s301 + $0x8] sm:$0xf] %vm2613, %v2555
        %2618 = vst.msk [vmem:[%s301 + $0xc] sm:$0x7] %vm2615, %v2556
        %2619 = vst.msk [vmem:[%s301 + $0x10] sm:$0xf] %vm2613, %v2557
        %2620 = vst.msk [vmem:[%s301 + $0x14] sm:$0x7] %vm2615, %v2558
        %2621 = vst.msk [vmem:[%s301 + $0x18] sm:$0xf] %vm2613, %v2559
        %2622 = vst.msk [vmem:[%s301 + $0x1c] sm:$0x7] %vm2615, %v2560
        %2623 = vst.msk [vmem:[%s301 + $0x20] sm:$0xf] %vm2613, %v2561
        %2624 = vst.msk [vmem:[%s301 + $0x24] sm:$0x7] %vm2615, %v2562
        %2625 = vst.msk [vmem:[%s301 + $0x28] sm:$0xf] %vm2613, %v2563
        %2626 = vst.msk [vmem:[%s301 + $0x2c] sm:$0x7] %vm2615, %v2564
        %2627 = vst.msk [vmem:[%s301 + $0x30] sm:$0xf] %vm2613, %v2565
        %2628 = vst.msk [vmem:[%s301 + $0x34] sm:$0x7] %vm2615, %v2566
        %2629 = vst.msk [vmem:[%s301 + $0x38] sm:$0xf] %vm2613, %v2567
        %2630 = vst.msk [vmem:[%s301 + $0x3c] sm:$0x7] %vm2615, %v2568
        %2631 = vst.msk [vmem:[%s301 + $0x40] sm:$0xf] %vm2613, %v2569
        %2632 = vst.msk [vmem:[%s301 + $0x44] sm:$0x7] %vm2615, %v2570
        %2633 = vst.msk [vmem:[%s301 + $0x48] sm:$0xf] %vm2613, %v2571
        %2634 = vst.msk [vmem:[%s301 + $0x4c] sm:$0x7] %vm2615, %v2572
        %2635 = vst.msk [vmem:[%s301 + $0x50] sm:$0xf] %vm2613, %v2573
        %2636 = vst.msk [vmem:[%s301 + $0x54] sm:$0x7] %vm2615, %v2574
        %2637 = vst.msk [vmem:[%s301 + $0x58] sm:$0xf] %vm2613, %v2575
        %2638 = vst.msk [vmem:[%s301 + $0x5c] sm:$0x7] %vm2615, %v2576
        %2639 = vst.msk [vmem:[%s301 + $0x60] sm:$0xf] %vm2613, %v2577
        %2640 = vst.msk [vmem:[%s301 + $0x64] sm:$0x7] %vm2615, %v2578
        %2641 = vst.msk [vmem:[%s301 + $0x68] sm:$0xf] %vm2613, %v2579
        %2642 = vst.msk [vmem:[%s301 + $0x6c] sm:$0x7] %vm2615, %v2580
        %2643 = vst.msk [vmem:[%s301 + $0x70] sm:$0xf] %vm2613, %v2581
        %2644 = vst.msk [vmem:[%s301 + $0x74] sm:$0x7] %vm2615, %v2582
        %p2645 = scmp.eq.s32.totalorder %s27, 0
        // Predicated region
        $region53: #{inverted_residual_forward.3} parent=35 // pred_check
          %p2646 = pneg %p2645
        $region54: #{inverted_residual_forward.3} parent=35 // pred_check_branch
          %2648 = sbr.rel (%p2646) target = $region56
        $region55: #{inverted_residual_forward.3} parent=35 // pred_region
          %vm2649 = vcmask 188416
          %2650 = vst.msk [vmem:[#allocation11] sm:$0x1] %vm2649, 0.0
          %2651 = vst.msk [vmem:[#allocation13] sm:$0x1] %vm2649, 0.0
        $region56: #{inverted_residual_forward.3} parent=35 // pred_fallthru
          _
        %v2652 = vld [vmem:[#allocation11] sm:$0x1]
        %vm2653 = vcmask 195584
        %v2654 = vsel %vm2653, %v2463, 0.0
        %v2655 = vsel %vm2653, %v2465, 0.0
        %v2656 = vadd.f32 %v2654, %v2655
        %v2657 = vsel %vm2653, %v2467, 0.0
        %v2658 = vadd.f32 %v2656, %v2657
        %v2659 = vsel %vm2653, %v2469, 0.0
        %v2660 = vadd.f32 %v2658, %v2659
        %v2661 = vsel %vm2653, %v2471, 0.0
        %v2662 = vadd.f32 %v2660, %v2661
        %v2663 = vsel %vm2653, %v2473, 0.0
        %v2664 = vadd.f32 %v2662, %v2663
        %v2665 = vsel %vm2653, %v2475, 0.0
        %v2666 = vadd.f32 %v2664, %v2665
        %v2667 = vsel %vm2653, %v2477, 0.0
        %v2668 = vadd.f32 %v2666, %v2667
        %v2669 = vsel %vm2653, %v2479, 0.0
        %v2670 = vadd.f32 %v2668, %v2669
        %v2671 = vsel %vm2653, %v2481, 0.0
        %v2672 = vadd.f32 %v2670, %v2671
        %v2673 = vsel %vm2653, %v2483, 0.0
        %v2674 = vadd.f32 %v2672, %v2673
        %v2675 = vsel %vm2653, %v2485, 0.0
        %v2676 = vadd.f32 %v2674, %v2675
        %v2677 = vsel %vm2653, %v2487, 0.0
        %v2678 = vadd.f32 %v2676, %v2677
        %v2679 = vsel %vm2653, %v2489, 0.0
        %v2680 = vadd.f32 %v2678, %v2679
        %v2681 = vsel %vm2653, %v2491, 0.0
        %v2682 = vadd.f32 %v2680, %v2681
        %vm2683 = vcmask 193536
        %v2684 = vsel %vm2683, %v2464, 0.0
        %v2685 = vsel %vm2683, %v2466, 0.0
        %v2686 = vadd.f32 %v2684, %v2685
        %v2687 = vsel %vm2683, %v2468, 0.0
        %v2688 = vadd.f32 %v2686, %v2687
        %v2689 = vsel %vm2683, %v2470, 0.0
        %v2690 = vadd.f32 %v2688, %v2689
        %v2691 = vsel %vm2683, %v2472, 0.0
        %v2692 = vadd.f32 %v2690, %v2691
        %v2693 = vsel %vm2683, %v2474, 0.0
        %v2694 = vadd.f32 %v2692, %v2693
        %v2695 = vsel %vm2683, %v2476, 0.0
        %v2696 = vadd.f32 %v2694, %v2695
        %v2697 = vsel %vm2683, %v2478, 0.0
        %v2698 = vadd.f32 %v2696, %v2697
        %v2699 = vsel %vm2683, %v2480, 0.0
        %v2700 = vadd.f32 %v2698, %v2699
        %v2701 = vsel %vm2683, %v2482, 0.0
        %v2702 = vadd.f32 %v2700, %v2701
        %v2703 = vsel %vm2683, %v2484, 0.0
        %v2704 = vadd.f32 %v2702, %v2703
        %v2705 = vsel %vm2683, %v2486, 0.0
        %v2706 = vadd.f32 %v2704, %v2705
        %v2707 = vsel %vm2683, %v2488, 0.0
        %v2708 = vadd.f32 %v2706, %v2707
        %v2709 = vsel %vm2683, %v2490, 0.0
        %v2710 = vadd.f32 %v2708, %v2709
        %v2711 = vsel %vm2683, %v2492, 0.0
        %v2712 = vadd.f32 %v2710, %v2711
        %v2713 = vsel %vm2653, %v2682, 0.0
        %v2714 = vsel %vm2683, %v2712, 0.0
        %v2715 = vadd.f32 %v2713, %v2714
        %v2716 = vrot.slane %v2715, 4
        %v2717 = vadd.f32 %v2715, %v2716
        %v2718 = vrot.slane %v2717, 2
        %v2719 = vadd.f32 %v2717, %v2718
        %v2720 = vrot.slane %v2719, 1
        %v2721 = vadd.f32 %v2719, %v2720
        %v2722 = vadd.f32 %v2652, %v2721
        %vm2723 = vcmask 188416
        %2724 = vst.msk [vmem:[#allocation11] sm:$0x1] %vm2723, %v2722
        %v2725 = vld [vmem:[#allocation13] sm:$0x1]
        %v2726 = vmul.f32 %v2463, %v2463
        %v2727 = vmul.f32 %v2464, %v2464
        %v2728 = vmul.f32 %v2465, %v2465
        %v2729 = vmul.f32 %v2466, %v2466
        %v2730 = vmul.f32 %v2467, %v2467
        %v2731 = vmul.f32 %v2468, %v2468
        %v2732 = vmul.f32 %v2469, %v2469
        %v2733 = vmul.f32 %v2470, %v2470
        %v2734 = vmul.f32 %v2471, %v2471
        %v2735 = vmul.f32 %v2472, %v2472
        %v2736 = vmul.f32 %v2473, %v2473
        %v2737 = vmul.f32 %v2474, %v2474
        %v2738 = vmul.f32 %v2475, %v2475
        %v2739 = vmul.f32 %v2476, %v2476
        %v2740 = vmul.f32 %v2477, %v2477
        %v2741 = vmul.f32 %v2478, %v2478
        %v2742 = vmul.f32 %v2479, %v2479
        %v2743 = vmul.f32 %v2480, %v2480
        %v2744 = vmul.f32 %v2481, %v2481
        %v2745 = vmul.f32 %v2482, %v2482
        %v2746 = vmul.f32 %v2483, %v2483
        %v2747 = vmul.f32 %v2484, %v2484
        %v2748 = vmul.f32 %v2485, %v2485
        %v2749 = vmul.f32 %v2486, %v2486
        %v2750 = vmul.f32 %v2487, %v2487
        %v2751 = vmul.f32 %v2488, %v2488
        %v2752 = vmul.f32 %v2489, %v2489
        %v2753 = vmul.f32 %v2490, %v2490
        %v2754 = vmul.f32 %v2491, %v2491
        %v2755 = vmul.f32 %v2492, %v2492
        %v2756 = vsel %vm2653, %v2726, 0.0
        %v2757 = vsel %vm2653, %v2728, 0.0
        %v2758 = vadd.f32 %v2756, %v2757
        %v2759 = vsel %vm2653, %v2730, 0.0
        %v2760 = vadd.f32 %v2758, %v2759
        %v2761 = vsel %vm2653, %v2732, 0.0
        %v2762 = vadd.f32 %v2760, %v2761
        %v2763 = vsel %vm2653, %v2734, 0.0
        %v2764 = vadd.f32 %v2762, %v2763
        %v2765 = vsel %vm2653, %v2736, 0.0
        %v2766 = vadd.f32 %v2764, %v2765
        %v2767 = vsel %vm2653, %v2738, 0.0
        %v2768 = vadd.f32 %v2766, %v2767
        %v2769 = vsel %vm2653, %v2740, 0.0
        %v2770 = vadd.f32 %v2768, %v2769
        %v2771 = vsel %vm2653, %v2742, 0.0
        %v2772 = vadd.f32 %v2770, %v2771
        %v2773 = vsel %vm2653, %v2744, 0.0
        %v2774 = vadd.f32 %v2772, %v2773
        %v2775 = vsel %vm2653, %v2746, 0.0
        %v2776 = vadd.f32 %v2774, %v2775
        %v2777 = vsel %vm2653, %v2748, 0.0
        %v2778 = vadd.f32 %v2776, %v2777
        %v2779 = vsel %vm2653, %v2750, 0.0
        %v2780 = vadd.f32 %v2778, %v2779
        %v2781 = vsel %vm2653, %v2752, 0.0
        %v2782 = vadd.f32 %v2780, %v2781
        %v2783 = vsel %vm2653, %v2754, 0.0
        %v2784 = vadd.f32 %v2782, %v2783
        %v2785 = vsel %vm2683, %v2727, 0.0
        %v2786 = vsel %vm2683, %v2729, 0.0
        %v2787 = vadd.f32 %v2785, %v2786
        %v2788 = vsel %vm2683, %v2731, 0.0
        %v2789 = vadd.f32 %v2787, %v2788
        %v2790 = vsel %vm2683, %v2733, 0.0
        %v2791 = vadd.f32 %v2789, %v2790
        %v2792 = vsel %vm2683, %v2735, 0.0
        %v2793 = vadd.f32 %v2791, %v2792
        %v2794 = vsel %vm2683, %v2737, 0.0
        %v2795 = vadd.f32 %v2793, %v2794
        %v2796 = vsel %vm2683, %v2739, 0.0
        %v2797 = vadd.f32 %v2795, %v2796
        %v2798 = vsel %vm2683, %v2741, 0.0
        %v2799 = vadd.f32 %v2797, %v2798
        %v2800 = vsel %vm2683, %v2743, 0.0
        %v2801 = vadd.f32 %v2799, %v2800
        %v2802 = vsel %vm2683, %v2745, 0.0
        %v2803 = vadd.f32 %v2801, %v2802
        %v2804 = vsel %vm2683, %v2747, 0.0
        %v2805 = vadd.f32 %v2803, %v2804
        %v2806 = vsel %vm2683, %v2749, 0.0
        %v2807 = vadd.f32 %v2805, %v2806
        %v2808 = vsel %vm2683, %v2751, 0.0
        %v2809 = vadd.f32 %v2807, %v2808
        %v2810 = vsel %vm2683, %v2753, 0.0
        %v2811 = vadd.f32 %v2809, %v2810
        %v2812 = vsel %vm2683, %v2755, 0.0
        %v2813 = vadd.f32 %v2811, %v2812
        %v2814 = vsel %vm2653, %v2784, 0.0
        %v2815 = vsel %vm2683, %v2813, 0.0
        %v2816 = vadd.f32 %v2814, %v2815
        %v2817 = vrot.slane %v2816, 4
        %v2818 = vadd.f32 %v2816, %v2817
        %v2819 = vrot.slane %v2818, 2
        %v2820 = vadd.f32 %v2818, %v2819
        %v2821 = vrot.slane %v2820, 1
        %v2822 = vadd.f32 %v2820, %v2821
        %v2823 = vadd.f32 %v2725, %v2822
        %2824 = vst.msk [vmem:[#allocation13] sm:$0x1] %vm2723, %v2823
        %s2825 = sand.u32 %s124, 1
        %s2826 = scalar_lea.sflag [#allocation4], %s2825
        %s2827 = sand.u32 %s124, 1
        %s2828 = smul.addr %s2827, 120
        %s2829 = scalar_lea.vmem [#allocation10], %s2828
        // Predicated region
        $region57: #{inverted_residual_forward.3} parent=35 // pred_check
          %p2830 = pneg %p134
        $region58: #{inverted_residual_forward.3} parent=35 // pred_check_branch
          %2832 = sbr.rel (%p2830) target = $region60
        $region59: #{inverted_residual_forward.3} parent=35 // pred_region
          %s2834 = ssub.s32 1920, 1920
          %2835 = vsyncadd %s2826, %s2834
          %s2836 = smul.addr %s27, 30
          %s2837 = smul.addr %s2836, 64
          %s2838 = scalar_lea.hbm %s4, %s2837
          %s2839 = sshll.u32 %s2829, 4
          %s2840 = int_to_ptr.vmem [resolvable:$true] %s2839
          %2845 = dma.vmem_to_hbm [thread:$0]  %s2840, 1920, %s2838, %s2826, 64, 64, 4
        $region60: #{inverted_residual_forward.3} parent=35 // pred_fallthru
          _
        // Predicated region
        $region61: #{inverted_residual_forward.3} parent=35 // pred_check
          %p2846 = pneg %p155
        $region62: #{inverted_residual_forward.3} parent=35 // pred_check_branch
          %2848 = sbr.rel (%p2846) target = $region64
        $region63: #{inverted_residual_forward.3} parent=35 // pred_region
          %s2850 = ssub.s32 16, 16
          %2851 = vsyncadd [#allocation12], %s2850
          %s2853 = sshll.u32 [#allocation11], 4
          %s2854 = int_to_ptr.vmem [resolvable:$true] %s2853
          %2856 = dma.vmem_to_hbm [thread:$0]  %s2854, 16, %s5, [#allocation12]
        $region64: #{inverted_residual_forward.3} parent=35 // pred_fallthru
          _
        // Predicated region
        $region65: #{inverted_residual_forward.3} parent=35 // pred_check
          %p2857 = pneg %p176
        $region66: #{inverted_residual_forward.3} parent=35 // pred_check_branch
          %2859 = sbr.rel (%p2857) target = $region68
        $region67: #{inverted_residual_forward.3} parent=35 // pred_region
          %s2861 = ssub.s32 16, 16
          %2862 = vsyncadd [#allocation12], %s2861
          %s2864 = sshll.u32 [#allocation13], 4
          %s2865 = int_to_ptr.vmem [resolvable:$true] %s2864
          %2867 = dma.vmem_to_hbm [thread:$0]  %s2865, 16, %s6, [#allocation12]
        $region68: #{inverted_residual_forward.3} parent=35 // pred_fallthru
          _
        // Predicated region
        $region69: #{inverted_residual_forward.3} parent=35 // pred_check
          %p2868 = pneg %p155
        $region70: #{inverted_residual_forward.3} parent=35 // pred_check_branch
          %2870 = sbr.rel (%p2868) target = $region72
        $region71: #{inverted_residual_forward.3} parent=35 // pred_region
          %2871 = dma.done [#allocation12], 16
        $region72: #{inverted_residual_forward.3} parent=35 // pred_fallthru
          _
        // Predicated region
        $region73: #{inverted_residual_forward.3} parent=35 // pred_check
          %p2872 = pneg %p176
        $region74: #{inverted_residual_forward.3} parent=35 // pred_check_branch
          %2874 = sbr.rel (%p2872) target = $region76
        $region75: #{inverted_residual_forward.3} parent=35 // pred_region
          %2875 = dma.done [#allocation12], 16
        $region76: #{inverted_residual_forward.3} parent=35 // pred_fallthru
          _
      $region36: #{inverted_residual_forward.3} parent=5 // pred_fallthru
        _
      %p2876 = scmp.le.s32.totalorder 2, %s22
      // Predicated region
      $region77: #{inverted_residual_forward.3} parent=5 // pred_check
        %p2877 = pneg %p2876
      $region78: #{inverted_residual_forward.3} parent=5 // pred_check_branch
        %2879 = sbr.rel (%p2877) target = $region80
      $region79: #{inverted_residual_forward.3} parent=5 // pred_region
        %s2880 = ssub.s32 %s22, 2
        // Predicated region
        $region81: #{inverted_residual_forward.3} parent=79 // pred_check
          %p2881 = pneg %p140
        $region82: #{inverted_residual_forward.3} parent=79 // pred_check_branch
          %2883 = sbr.rel (%p2881) target = $region84
        $region83: #{inverted_residual_forward.3} parent=79 // pred_region
          %s2884 = sand.u32 %s125, 1
          %s2885 = scalar_lea.sflag [#allocation4], %s2884
          %s2886 = sand.u32 %s125, 1
          %s2887 = smul.addr %s2886, 120
          %s2888 = scalar_lea.vmem [#allocation10], %s2887
          %2889 = dma.done %s2885, 1920
        $region84: #{inverted_residual_forward.3} parent=79 // pred_fallthru
          _
      $region80: #{inverted_residual_forward.3} parent=5 // pred_fallthru
        _
    $region6: #{inverted_residual_forward.3} parent=1 // loop_footer
      %s26 = sadd.s32 1, %s22
    $region7: #{inverted_residual_forward.3} parent=1 // loop_footer_branch
      %21 = sbr.rel target = $region3
    $region8: #{inverted_residual_forward.3} parent=1 // loop_exit
      _
    %2890 = vsyncpa [#allocation3], 1
    %s2891 = scalar_lea.sflag [#allocation3], 1
    %2892 = vsyncpa %s2891, 1
    %2893 = vsyncpa [#allocation6], 1
    %2894 = vsyncpa [#allocation9], 1
    %2895 = vsyncpa [#allocation4], 1
    %s2896 = scalar_lea.sflag [#allocation4], 1
    %2897 = vsyncpa %s2896, 1
    %2898 = vsyncpa [#allocation12], 1

</llo_original>
